<compile_context>
chip_gen: v7x
topology: tpu7x:2x2x1
jax: 0.10.0
libtpu: 0.0.40
codegen_flags: <defaults>
</compile_context>

<pallas_src>
import functools

import jax
import jax.numpy as jnp
from jax.experimental import pallas as pl
from jax.experimental.pallas import tpu as pltpu


def _layernorm(x, g, b, eps=1e-5):
    mu = jnp.mean(x, axis=-1, keepdims=True)
    var = jnp.mean((x - mu) ** 2, axis=-1, keepdims=True)
    return (x - mu) * jax.lax.rsqrt(var + eps) * g + b


# ---------------------------------------------------------------------------
# Pallas kernel
# ---------------------------------------------------------------------------
def fused_resblocks_kernel(x_ref, mask_ref, ln1_g, ln1_b, wqkv_t, bqkv, wo_t, bo,
                           ln2_g, ln2_b, wfc_t, bfc, wproj_t, bproj,
                           o_ref, *, num_heads, bf16_gelu):
    """One grid step = (batch tile, layer).  The (bt, Lp, D) f32 residual stream
    lives in the output VMEM block (constant block index over the layer axis),
    so next-layer weight DMA overlaps current-layer compute."""
    layer = pl.program_id(1)

    @pl.when(layer == 0)
    def _init():
        o_ref[...] = x_ref[...]

    x = o_ref[...]                                    # (bt, Lp, D) f32 residual
    bt, L, D = x.shape
    H = num_heads
    hd = D // H

    # ---- attention branch: x + out_proj(MHA(ln_1(x))) ----
    h = _layernorm(x, ln1_g[0], ln1_b[0])
    h2d = h.reshape(bt * L, D).astype(jnp.bfloat16)
    qkv = jnp.dot(h2d, wqkv_t[0], preferred_element_type=jnp.float32) + bqkv[0]
    qkv = qkv.reshape(bt, L, 3 * D).astype(jnp.bfloat16)   # bf16 before head split

    # Heads batched into the leading (major) dim: (H*bt, Lp, hd), order (head, batch).
    # TODO(synk): the single (bt,L,3,H,hd)->(3,H,bt,L,hd) transpose suggested by the
    # perf review mixes tiled and untiled dims and does not lower reliably in Mosaic;
    # keep lane-offset slices + major-dim concat (known-good) on the bf16 copy.
    def heads(base):
        return jnp.concatenate(
            [qkv[:, :, base + i * hd: base + (i + 1) * hd] for i in range(H)],
            axis=0)

    q = heads(0)              # 1/sqrt(hd) folded into wqkv/bqkv at pack time
    k = heads(D)
    v = heads(2 * D)

    s = jnp.einsum("bqd,bkd->bqk", q, k,
                   preferred_element_type=jnp.float32)          # (H*bt, Lp, Lp)
    s = s + mask_ref[...][None]          # resident additive causal+padding mask
    m = jnp.max(s, axis=-1, keepdims=True)
    p = jnp.exp(s - m)
    denom = jnp.sum(p, axis=-1, keepdims=True)
    ctx = jnp.einsum("bqk,bkd->bqd", p.astype(jnp.bfloat16), v,
                     preferred_element_type=jnp.float32)        # (H*bt, Lp, hd)
    ctx = ctx * pl.reciprocal(denom, approx=True)               # deferred norm

    attn = jnp.concatenate([ctx[i * bt:(i + 1) * bt] for i in range(H)],
                           axis=-1)                              # (bt, Lp, D)
    attn2d = attn.reshape(bt * L, D).astype(jnp.bfloat16)
    attn_out = jnp.dot(attn2d, wo_t[0],
                       preferred_element_type=jnp.float32) + bo[0]
    x = x + attn_out.reshape(bt, L, D)

    # ---- MLP branch: x + c_proj(QuickGELU(c_fc(ln_2(x)))) ----
    h2 = _layernorm(x, ln2_g[0], ln2_b[0])
    h2d = h2.reshape(bt * L, D).astype(jnp.bfloat16)
    mfc = jnp.dot(h2d, wfc_t[0], preferred_element_type=jnp.float32) + bfc[0]
    if bf16_gelu:                               # v6e/v7x: bf16 VPU/EUP
        mfc = mfc.astype(jnp.bfloat16)
        mfc = mfc * jax.nn.sigmoid(1.702 * mfc)
    else:                                       # v5e and older: f32 QuickGELU
        mfc = (mfc * jax.nn.sigmoid(1.702 * mfc)).astype(jnp.bfloat16)
    # TODO(synk): K-block the MLP (loop over 4D chunks) if the (bt*Lp, 4D)
    # intermediate ever becomes the VMEM limiter; the bt chooser currently
    # just shrinks the batch tile instead.
    mpr = jnp.dot(mfc, wproj_t[0],
                  preferred_element_type=jnp.float32) + bproj[0]
    o_ref[...] = x + mpr.reshape(bt, L, D)


# ---------------------------------------------------------------------------
# Sizing helpers (per-generation VMEM limit + batch-tile choice)
# ---------------------------------------------------------------------------
def _device_kind():
    try:
        return jax.devices()[0].device_kind.lower()
    except Exception:
        return ""


def _vmem_limit_bytes():
    cap = 64 * 1024 * 1024
    try:
        info = pltpu.get_tpu_info()
        cap = int(getattr(info, "vmem_capacity_bytes", cap)) or cap
    except Exception:
        pass
    # leave headroom for Mosaic internal scratch / double-buffered weight DMA
    return max(32 * 1024 * 1024, min(int(cap * 0.85), cap - 6 * 1024 * 1024))


def _per_layer_weight_bytes(D):
    # bf16 projection weights (3D^2 + D^2 + 4D^2 + 4D^2) + f32 biases/LN params
    return 12 * D * D * 2 + 16 * D * 4


def _act_bytes(bt, Lp, D, H):
    R = bt * Lp
    return (R * D * 4 * 4            # x input + residual output blocks (2 bufs each)
            + R * 3 * D * 6          # qkv f32 + bf16 copy
            + H * bt * Lp * Lp * 8   # scores + probs (f32)
            + R * D * 6              # ctx f32 + attn bf16
            + R * 4 * D * 6          # mfc f32 + bf16
            + R * D * 4)             # mlp out f32


def _pick_bt(B, Lp, D, H, vmem_limit):
    """Largest divisor of B whose activation footprint fits VMEM next to the
    double-buffered weight set.  >=2 tiles only on 2-TensorCore chips (v7x)."""
    budget = vmem_limit - 2 * _per_layer_weight_bytes(D) - (2 << 20)
    multi_tc = "v7" in _device_kind()
    best = 1
    for d in range(1, B + 1):
        if B % d:
            continue
        if multi_tc and B >= 2 and B // d < 2:
            continue
        if _act_bytes(d, Lp, D, H) <= budget:
            best = max(best, d)
    return best


def _pad_len(L):
    if L >= 64:
        return ((L + 127) // 128) * 128     # fill the lane axis of (L, L) scores
    return ((L + 7) // 8) * 8               # at least sublane-aligned


# ---------------------------------------------------------------------------
# Wrappers
# ---------------------------------------------------------------------------
def run_transformer(x, mask, packed, num_heads, bt, vmem_limit):
    B, Lp, D = x.shape
    n_layers = packed["wqkv_t"].shape[0]

    def wspec(shape):
        return pl.BlockSpec((1,) + shape, lambda b, l: (l, 0, 0))

    in_specs = [
        pl.BlockSpec((bt, Lp, D), lambda b, l: (b, 0, 0)),   # x (resident over layers)
        pl.BlockSpec((Lp, Lp), lambda b, l: (0, 0)),         # causal+pad mask (resident)
        wspec((1, D)), wspec((1, D)),                        # ln1 g, b
        wspec((D, 3 * D)), wspec((1, 3 * D)),                # Wqkv^T (bf16), bqkv
        wspec((D, D)), wspec((1, D)),                        # Wout^T (bf16), bout
        wspec((1, D)), wspec((1, D)),                        # ln2 g, b
        wspec((D, 4 * D)), wspec((1, 4 * D)),                # Wfc^T (bf16), bfc
        wspec((4 * D, D)), wspec((1, D)),                    # Wproj^T (bf16), bproj
    ]
    bf16_gelu = not any(v in _device_kind() for v in ("v2", "v3", "v4", "v5"))
    kern = functools.partial(fused_resblocks_kernel,
                             num_heads=num_heads, bf16_gelu=bf16_gelu)
    return pl.pallas_call(
        kern,
        out_shape=jax.ShapeDtypeStruct((B, Lp, D), jnp.float32),
        grid=(B // bt, n_layers),
        in_specs=in_specs,
        out_specs=pl.BlockSpec((bt, Lp, D), lambda b, l: (b, 0, 0)),
        input_output_aliases={0: 0},    # x doubles as the residual output buffer
        compiler_params=pltpu.CompilerParams(
            dimension_semantics=("parallel", "arbitrary"),
            vmem_limit_bytes=vmem_limit,
        ),
    )(x, mask, packed["ln1_g"], packed["ln1_b"], packed["wqkv_t"], packed["bqkv"],
      packed["wo_t"], packed["bo"], packed["ln2_g"], packed["ln2_b"],
      packed["wfc_t"], packed["bfc"], packed["wproj_t"], packed["bproj"])


def text_transformer_forward(text, params, packed, num_heads, bt=None):
    # token embedding + positional embedding (glue: gather)
    x = params["token_embedding"][text] + params["positional_embedding"]  # (B,L,D)
    B, L, D = x.shape
    Lp = _pad_len(L)
    if Lp != L:
        x = jnp.pad(x, ((0, 0), (0, Lp - L), (0, 0)))
    # additive mask: 0 where attendable (causal AND un-padded key), -1e30 else
    pos = jnp.arange(Lp)
    mask = jnp.where((pos[None, :] <= pos[:, None]) & (pos[None, :] < L),
                     0.0, -1e30).astype(jnp.float32)
    vmem_limit = _vmem_limit_bytes()
    if bt is None:
        bt = _pick_bt(B, Lp, D, num_heads, vmem_limit)
    # fused transformer (torch permutes to (L,B,D) and back; cancels)
    x = run_transformer(x, mask, packed, num_heads, bt, vmem_limit)
    # eot (argmax) token gather + final LayerNorm: tiny (B, D) work -> plain JAX
    idx = jnp.argmax(text, axis=-1)
    x_sel = x[jnp.arange(B), idx]                                          # (B, D)
    return _layernorm(x_sel, params["ln_final_g"], params["ln_final_b"])


# ---------------------------------------------------------------------------
# Parameter init (mirrors the module's __init__) + one-time kernel packing
# ---------------------------------------------------------------------------
def init_params(key, context_length, width, layers, vocab_size):
    proj_std = width ** -0.5 * (2 * layers) ** -0.5
    attn_std = width ** -0.5
    fc_std = (2 * width) ** -0.5

    keys = jax.random.split(key, 2 + layers)
    params = {
        "token_embedding": 0.02 * jax.random.normal(
            keys[0], (vocab_size, width), jnp.float32),
        "positional_embedding": 0.01 * jax.random.normal(
            keys[1], (context_length, width), jnp.float32),
        "ln_final_g": jnp.ones((1, width), jnp.float32),
        "ln_final_b": jnp.zeros((1, width), jnp.float32),
        # build_attention_mask: -inf strictly above diagonal (reference only)
        "attn_mask": jnp.triu(
            jnp.full((context_length, context_length), -jnp.inf, jnp.float32), k=1),
    }

    layer_list = []
    for li in range(layers):
        lk = jax.random.split(keys[2 + li], 4)
        in_proj_w = attn_std * jax.random.normal(lk[0], (3 * width, width), jnp.float32)
        out_proj_w = proj_std * jax.random.normal(lk[1], (width, width), jnp.float32)
        c_fc_w = fc_std * jax.random.normal(lk[2], (4 * width, width), jnp.float32)
        c_proj_w = proj_std * jax.random.normal(lk[3], (width, 4 * width), jnp.float32)
        layer_list.append(dict(
            ln1_g=jnp.ones((1, width), jnp.float32),
            ln1_b=jnp.zeros((1, width), jnp.float32),
            wqkv_t=in_proj_w.T, bqkv=jnp.zeros((1, 3 * width), jnp.float32),
            wo_t=out_proj_w.T, bo=jnp.zeros((1, width), jnp.float32),
            ln2_g=jnp.ones((1, width), jnp.float32),
            ln2_b=jnp.zeros((1, width), jnp.float32),
            wfc_t=c_fc_w.T, bfc=jnp.zeros((1, 4 * width), jnp.float32),
            wproj_t=c_proj_w.T, bproj=jnp.zeros((1, width), jnp.float32),
        ))
    params["layers"] = layer_list
    return params


def pack_kernel_params(params, num_heads):
    """One-time transform: stack per-layer weights (leading layer axis), fold the
    1/sqrt(hd) attention scale into the Q columns, and cast weights to bf16.
    TODO(synk): fp8 weight quantization on v7x (halves weight DMA bytes)."""
    D = params["layers"][0]["ln1_g"].shape[-1]
    hd = D // num_heads
    scale = hd ** -0.5

    def stack(name):
        return jnp.stack([lp[name] for lp in params["layers"]], axis=0)

    q_scale = jnp.concatenate([jnp.full((D,), scale, jnp.float32),
                               jnp.ones((2 * D,), jnp.float32)])
    wqkv_t = stack("wqkv_t") * q_scale[None, None, :]
    bqkv = stack("bqkv") * q_scale[None, None, :]

    return {
        "ln1_g": stack("ln1_g"), "ln1_b": stack("ln1_b"),
        "wqkv_t": wqkv_t.astype(jnp.bfloat16), "bqkv": bqkv,
        "wo_t": stack("wo_t").astype(jnp.bfloat16), "bo": stack("bo"),
        "ln2_g": stack("ln2_g"), "ln2_b": stack("ln2_b"),
        "wfc_t": stack("wfc_t").astype(jnp.bfloat16), "bfc": stack("bfc"),
        "wproj_t": stack("wproj_t").astype(jnp.bfloat16), "bproj": stack("bproj"),
    }


# ---------------------------------------------------------------------------
# Pure-JAX f32 reference (module semantics) for correctness check
# ---------------------------------------------------------------------------
def ref_forward(text, params, num_heads):
    x = params["token_embedding"][text] + params["positional_embedding"]
    B, L, D = x.shape
    hd = D // num_heads
    for p in params["layers"]:
        h = _layernorm(x, p["ln1_g"], p["ln1_b"])
        qkv = h @ p["wqkv_t"] + p["bqkv"]
        q, k, v = jnp.split(qkv, 3, axis=-1)
        q = q.reshape(B, L, num_heads, hd).transpose(0, 2, 1, 3) * hd ** -0.5
        k = k.reshape(B, L, num_heads, hd).transpose(0, 2, 1, 3)
        v = v.reshape(B, L, num_heads, hd).transpose(0, 2, 1, 3)
        s = q @ k.transpose(0, 1, 3, 2) + params["attn_mask"]
        a = (jax.nn.softmax(s, axis=-1) @ v).transpose(0, 2, 1, 3).reshape(B, L, D)
        x = x + a @ p["wo_t"] + p["bo"]
        h2 = _layernorm(x, p["ln2_g"], p["ln2_b"])
        m = h2 @ p["wfc_t"] + p["bfc"]
        m = m * jax.nn.sigmoid(1.702 * m)
        x = x + m @ p["wproj_t"] + p["bproj"]
    idx = jnp.argmax(text, axis=-1)
    x = x[jnp.arange(B), idx]
    return _layernorm(x, params["ln_final_g"], params["ln_final_b"])


if __name__ == "__main__":
    # Small config. width=128 -> heads = width // 64 = 2 (exercises the
    # multi-head batched path and keeps the lane axis full).
    context_length = 16
    width = 128
    layers = 2
    vocab_size = 100
    batch = 4
    num_heads = width // 64

    key = jax.random.PRNGKey(0)
    pkey, tkey = jax.random.split(key)
    params = init_params(pkey, context_length, width, layers, vocab_size)
    packed = pack_kernel_params(params, num_heads)      # one-time transform
    text = jax.random.randint(tkey, (batch, context_length), 0, vocab_size, jnp.int32)

    out = text_transformer_forward(text, params, packed, num_heads)
    out = jax.block_until_ready(out)

    ref = ref_forward(text, params, num_heads)
    assert out.shape == (batch, width)
    # bf16 matmul operands (f32 accumulation) => loosen tolerance vs f32 ref.
    err = float(jnp.max(jnp.abs(out - ref)))
    assert jnp.allclose(out, ref, atol=5e-2, rtol=5e-2), err
    print("KERNEL_OK")
</pallas_src>

<mosaic_0001>
module attributes {stable_mosaic.version = 11 : i64} {
  func.func @fused_resblocks_kernel(%arg0: i32, %arg1: i32, %arg2: memref<4x16x128xf32, #tpu.memory_space<vmem>>, %arg3: memref<16x16xf32, #tpu.memory_space<vmem>>, %arg4: memref<1x1x128xf32, #tpu.memory_space<vmem>>, %arg5: memref<1x1x128xf32, #tpu.memory_space<vmem>>, %arg6: memref<1x128x384xbf16, #tpu.memory_space<vmem>>, %arg7: memref<1x1x384xf32, #tpu.memory_space<vmem>>, %arg8: memref<1x128x128xbf16, #tpu.memory_space<vmem>>, %arg9: memref<1x1x128xf32, #tpu.memory_space<vmem>>, %arg10: memref<1x1x128xf32, #tpu.memory_space<vmem>>, %arg11: memref<1x1x128xf32, #tpu.memory_space<vmem>>, %arg12: memref<1x128x512xbf16, #tpu.memory_space<vmem>>, %arg13: memref<1x1x512xf32, #tpu.memory_space<vmem>>, %arg14: memref<1x512x128xbf16, #tpu.memory_space<vmem>>, %arg15: memref<1x1x128xf32, #tpu.memory_space<vmem>>, %arg16: memref<4x16x128xf32, #tpu.memory_space<vmem>>) attributes {dimension_semantics = [#tpu.dimension_semantics<parallel>, #tpu.dimension_semantics<arbitrary>], iteration_bounds = array<i64: 1, 2>, scalar_prefetch = 0 : i64, scratch_operands = 0 : i64, tpu.core_type = #tpu.core_type<tc>, window_params = [{transform_indices = @transform_0, window_bounds = array<i64: 4, 16, 128>}, {pipeline_mode = #tpu.pipeline_mode<synchronous>, transform_indices = @transform_1, window_bounds = array<i64: 16, 16>}, {transform_indices = @transform_2, window_bounds = array<i64: 1, 1, 128>}, {transform_indices = @transform_3, window_bounds = array<i64: 1, 1, 128>}, {transform_indices = @transform_4, window_bounds = array<i64: 1, 128, 384>}, {transform_indices = @transform_5, window_bounds = array<i64: 1, 1, 384>}, {transform_indices = @transform_6, window_bounds = array<i64: 1, 128, 128>}, {transform_indices = @transform_7, window_bounds = array<i64: 1, 1, 128>}, {transform_indices = @transform_8, window_bounds = array<i64: 1, 1, 128>}, {transform_indices = @transform_9, window_bounds = array<i64: 1, 1, 128>}, {transform_indices = @transform_10, window_bounds = array<i64: 1, 128, 512>}, {transform_indices = @transform_11, window_bounds = array<i64: 1, 1, 512>}, {transform_indices = @transform_12, window_bounds = array<i64: 1, 512, 128>}, {transform_indices = @transform_13, window_bounds = array<i64: 1, 1, 128>}, {transform_indices = @transform_14, window_bounds = array<i64: 4, 16, 128>}]} {
    %c0_i32 = arith.constant 0 : i32
    %0 = arith.cmpi eq, %arg1, %c0_i32 : i32
    %1 = arith.extui %0 : i1 to i32
    %c0_i32_0 = arith.constant 0 : i32
    %2 = arith.cmpi ne, %1, %c0_i32_0 : i32
    scf.if %2 {
      %c0_63 = arith.constant 0 : index
      %c0_64 = arith.constant 0 : index
      %c0_65 = arith.constant 0 : index
      %139 = vector.load %arg2[%c0_63, %c0_64, %c0_65] : memref<4x16x128xf32, #tpu.memory_space<vmem>>, vector<4x16x128xf32>
      %c0_66 = arith.constant 0 : index
      %c0_67 = arith.constant 0 : index
      %c0_68 = arith.constant 0 : index
      %140 = vector.load %arg16[%c0_66, %c0_67, %c0_68] : memref<4x16x128xf32, #tpu.memory_space<vmem>>, vector<4x16x128xf32>
      tpu.vector_store %arg16[%c0_66, %c0_67, %c0_68], %139 {strides = array<i32>} : memref<4x16x128xf32, #tpu.memory_space<vmem>>, vector<4x16x128xf32>,
    } else {
    }
    %c0 = arith.constant 0 : index
    %c0_1 = arith.constant 0 : index
    %c0_2 = arith.constant 0 : index
    %3 = vector.load %arg16[%c0, %c0_1, %c0_2] : memref<4x16x128xf32, #tpu.memory_space<vmem>>, vector<4x16x128xf32>
    %c0_3 = arith.constant 0 : index
    %c0_4 = arith.constant 0 : index
    %c0_5 = arith.constant 0 : index
    %4 = vector.load %arg4[%c0_3, %c0_4, %c0_5] : memref<1x1x128xf32, #tpu.memory_space<vmem>>, vector<1x1x128xf32>
    %5 = vector.shape_cast %4 : vector<1x1x128xf32> to vector<1x128xf32>
    %c0_6 = arith.constant 0 : index
    %c0_7 = arith.constant 0 : index
    %c0_8 = arith.constant 0 : index
    %6 = vector.load %arg5[%c0_6, %c0_7, %c0_8] : memref<1x1x128xf32, #tpu.memory_space<vmem>>, vector<1x1x128xf32>
    %7 = vector.shape_cast %6 : vector<1x1x128xf32> to vector<1x128xf32>
    %cst = arith.constant dense<0.000000e+00> : vector<4x16xf32>
    %8 = vector.multi_reduction <add>, %3, %cst [2] : vector<4x16x128xf32> to vector<4x16xf32>
    %9 = vector.shape_cast %8 : vector<4x16xf32> to vector<4x16x1xf32>
    %cst_9 = arith.constant 1.280000e+02 : f32
    %10 = vector.broadcast %cst_9 : f32 to vector<4x16x1xf32>
    %11 = arith.divf %9, %10 : vector<4x16x1xf32>
    %12 = vector.broadcast %11 : vector<4x16x1xf32> to vector<4x16x128xf32>
    %13 = arith.subf %3, %12 : vector<4x16x128xf32>
    %14 = arith.mulf %13, %13 : vector<4x16x128xf32>
    %cst_10 = arith.constant dense<0.000000e+00> : vector<4x16xf32>
    %15 = vector.multi_reduction <add>, %14, %cst_10 [2] : vector<4x16x128xf32> to vector<4x16xf32>
    %16 = vector.shape_cast %15 : vector<4x16xf32> to vector<4x16x1xf32>
    %cst_11 = arith.constant 1.280000e+02 : f32
    %17 = vector.broadcast %cst_11 : f32 to vector<4x16x1xf32>
    %18 = arith.divf %16, %17 : vector<4x16x1xf32>
    %19 = vector.broadcast %11 : vector<4x16x1xf32> to vector<4x16x128xf32>
    %20 = arith.subf %3, %19 : vector<4x16x128xf32>
    %cst_12 = arith.constant 9.99999974E-6 : f32
    %21 = vector.broadcast %cst_12 : f32 to vector<4x16x1xf32>
    %22 = arith.addf %18, %21 : vector<4x16x1xf32>
    %23 = math.rsqrt %22 : vector<4x16x1xf32>
    %24 = vector.broadcast %23 : vector<4x16x1xf32> to vector<4x16x128xf32>
    %25 = arith.mulf %20, %24 : vector<4x16x128xf32>
    %26 = vector.shape_cast %5 : vector<1x128xf32> to vector<1x1x128xf32>
    %27 = vector.broadcast %26 : vector<1x1x128xf32> to vector<4x16x128xf32>
    %28 = arith.mulf %25, %27 : vector<4x16x128xf32>
    %29 = vector.shape_cast %7 : vector<1x128xf32> to vector<1x1x128xf32>
    %30 = vector.broadcast %29 : vector<1x1x128xf32> to vector<4x16x128xf32>
    %31 = arith.addf %28, %30 : vector<4x16x128xf32>
    %32 = vector.shape_cast %31 : vector<4x16x128xf32> to vector<64x128xf32>
    %33 = arith.truncf %32 : vector<64x128xf32> to vector<64x128xbf16>
    %c0_13 = arith.constant 0 : index
    %c0_14 = arith.constant 0 : index
    %c0_15 = arith.constant 0 : index
    %34 = vector.load %arg6[%c0_13, %c0_14, %c0_15] : memref<1x128x384xbf16, #tpu.memory_space<vmem>>, vector<1x128x384xbf16>
    %35 = vector.shape_cast %34 : vector<1x128x384xbf16> to vector<128x384xbf16>
    %cst_16 = arith.constant dense<0.000000e+00> : vector<64x384xf32>
    %36 = tpu.matmul %33, %35, %cst_16 {dimension_numbers = #tpu.dot_dimension_numbers<[1], [0], [0], [1], [0, 0, 1, 1], [], []>} : vector<64x128xbf16>, vector<128x384xbf16>, vector<64x384xf32> -> vector<64x384xf32>
    %c0_17 = arith.constant 0 : index
    %c0_18 = arith.constant 0 : index
    %c0_19 = arith.constant 0 : index
    %37 = vector.load %arg7[%c0_17, %c0_18, %c0_19] : memref<1x1x384xf32, #tpu.memory_space<vmem>>, vector<1x1x384xf32>
    %38 = vector.shape_cast %37 : vector<1x1x384xf32> to vector<1x384xf32>
    %39 = vector.broadcast %38 : vector<1x384xf32> to vector<64x384xf32>
    %40 = arith.addf %36, %39 : vector<64x384xf32>
    %41 = vector.shape_cast %40 : vector<64x384xf32> to vector<4x16x384xf32>
    %42 = arith.truncf %41 : vector<4x16x384xf32> to vector<4x16x384xbf16>
    %43 = vector.extract_strided_slice %42 {offsets = [0, 0, 0], sizes = [4, 16, 64], strides = [1, 1, 1]} : vector<4x16x384xbf16> to vector<4x16x64xbf16>
    %44 = vector.extract_strided_slice %42 {offsets = [0, 0, 64], sizes = [4, 16, 64], strides = [1, 1, 1]} : vector<4x16x384xbf16> to vector<4x16x64xbf16>
    %45 = tpu.concatenate %43, %44 in 0 : vector<4x16x64xbf16>, vector<4x16x64xbf16> -> vector<8x16x64xbf16>
    %46 = vector.extract_strided_slice %42 {offsets = [0, 0, 128], sizes = [4, 16, 64], strides = [1, 1, 1]} : vector<4x16x384xbf16> to vector<4x16x64xbf16>
    %47 = vector.extract_strided_slice %42 {offsets = [0, 0, 192], sizes = [4, 16, 64], strides = [1, 1, 1]} : vector<4x16x384xbf16> to vector<4x16x64xbf16>
    %48 = tpu.concatenate %46, %47 in 0 : vector<4x16x64xbf16>, vector<4x16x64xbf16> -> vector<8x16x64xbf16>
    %49 = vector.extract_strided_slice %42 {offsets = [0, 0, 256], sizes = [4, 16, 64], strides = [1, 1, 1]} : vector<4x16x384xbf16> to vector<4x16x64xbf16>
    %50 = vector.extract_strided_slice %42 {offsets = [0, 0, 320], sizes = [4, 16, 64], strides = [1, 1, 1]} : vector<4x16x384xbf16> to vector<4x16x64xbf16>
    %51 = tpu.concatenate %49, %50 in 0 : vector<4x16x64xbf16>, vector<4x16x64xbf16> -> vector<8x16x64xbf16>
    "tpu.trace_start"() <{level = 10 : i32, message = "bqd,bkd->bqk"}> : () -> ()
    %cst_20 = arith.constant dense<0.000000e+00> : vector<8x16x16xf32>
    %52 = tpu.matmul %45, %48, %cst_20 {dimension_numbers = #tpu.dot_dimension_numbers<[2], [2], [1], [1], [0, 0, 0, 1, 1, 1], [0], [0]>} : vector<8x16x64xbf16>, vector<8x16x64xbf16>, vector<8x16x16xf32> -> vector<8x16x16xf32>
    "tpu.trace_stop"() : () -> ()
    %c0_21 = arith.constant 0 : index
    %c0_22 = arith.constant 0 : index
    %53 = vector.load %arg3[%c0_21, %c0_22] : memref<16x16xf32, #tpu.memory_space<vmem>>, vector<16x16xf32>
    %54 = vector.shape_cast %53 : vector<16x16xf32> to vector<1x16x16xf32>
    %55 = vector.broadcast %54 : vector<1x16x16xf32> to vector<8x16x16xf32>
    %56 = arith.addf %52, %55 : vector<8x16x16xf32>
    %cst_23 = arith.constant dense<0xFF800000> : vector<8x16xf32>
    %57 = vector.multi_reduction <maximumf>, %56, %cst_23 [2] : vector<8x16x16xf32> to vector<8x16xf32>
    %58 = vector.shape_cast %57 : vector<8x16xf32> to vector<8x16x1xf32>
    %59 = vector.broadcast %58 : vector<8x16x1xf32> to vector<8x16x16xf32>
    %60 = arith.subf %56, %59 : vector<8x16x16xf32>
    %61 = math.exp %60 : vector<8x16x16xf32>
    %cst_24 = arith.constant dense<0.000000e+00> : vector<8x16xf32>
    %62 = vector.multi_reduction <add>, %61, %cst_24 [2] : vector<8x16x16xf32> to vector<8x16xf32>
    %63 = vector.shape_cast %62 : vector<8x16xf32> to vector<8x16x1xf32>
    %64 = arith.truncf %61 : vector<8x16x16xf32> to vector<8x16x16xbf16>
    "tpu.trace_start"() <{level = 10 : i32, message = "bqk,bkd->bqd"}> : () -> ()
    %cst_25 = arith.constant dense<0.000000e+00> : vector<8x16x64xf32>
    %65 = tpu.matmul %64, %51, %cst_25 {dimension_numbers = #tpu.dot_dimension_numbers<[2], [1], [1], [2], [0, 0, 0, 1, 1, 2], [0], [0]>} : vector<8x16x16xbf16>, vector<8x16x64xbf16>, vector<8x16x64xf32> -> vector<8x16x64xf32>
    "tpu.trace_stop"() : () -> ()
    %66 = tpu.reciprocal %63 {approx = true} : vector<8x16x1xf32> -> vector<8x16x1xf32>
    %67 = vector.broadcast %66 : vector<8x16x1xf32> to vector<8x16x64xf32>
    %68 = arith.mulf %65, %67 : vector<8x16x64xf32>
    %69 = vector.extract_strided_slice %68 {offsets = [0, 0, 0], sizes = [4, 16, 64], strides = [1, 1, 1]} : vector<8x16x64xf32> to vector<4x16x64xf32>
    %70 = vector.extract_strided_slice %68 {offsets = [4, 0, 0], sizes = [4, 16, 64], strides = [1, 1, 1]} : vector<8x16x64xf32> to vector<4x16x64xf32>
    %71 = tpu.concatenate %69, %70 in 2 : vector<4x16x64xf32>, vector<4x16x64xf32> -> vector<4x16x128xf32>
    %72 = vector.shape_cast %71 : vector<4x16x128xf32> to vector<64x128xf32>
    %73 = arith.truncf %72 : vector<64x128xf32> to vector<64x128xbf16>
    %c0_26 = arith.constant 0 : index
    %c0_27 = arith.constant 0 : index
    %c0_28 = arith.constant 0 : index
    %74 = vector.load %arg8[%c0_26, %c0_27, %c0_28] : memref<1x128x128xbf16, #tpu.memory_space<vmem>>, vector<1x128x128xbf16>
    %75 = vector.shape_cast %74 : vector<1x128x128xbf16> to vector<128x128xbf16>
    %cst_29 = arith.constant dense<0.000000e+00> : vector<64x128xf32>
    %76 = tpu.matmul %73, %75, %cst_29 {dimension_numbers = #tpu.dot_dimension_numbers<[1], [0], [0], [1], [0, 0, 1, 1], [], []>} : vector<64x128xbf16>, vector<128x128xbf16>, vector<64x128xf32> -> vector<64x128xf32>
    %c0_30 = arith.constant 0 : index
    %c0_31 = arith.constant 0 : index
    %c0_32 = arith.constant 0 : index
    %77 = vector.load %arg9[%c0_30, %c0_31, %c0_32] : memref<1x1x128xf32, #tpu.memory_space<vmem>>, vector<1x1x128xf32>
    %78 = vector.shape_cast %77 : vector<1x1x128xf32> to vector<1x128xf32>
    %79 = vector.broadcast %78 : vector<1x128xf32> to vector<64x128xf32>
    %80 = arith.addf %76, %79 : vector<64x128xf32>
    %81 = vector.shape_cast %80 : vector<64x128xf32> to vector<4x16x128xf32>
    %82 = arith.addf %3, %81 : vector<4x16x128xf32>
    %c0_33 = arith.constant 0 : index
    %c0_34 = arith.constant 0 : index
    %c0_35 = arith.constant 0 : index
    %83 = vector.load %arg10[%c0_33, %c0_34, %c0_35] : memref<1x1x128xf32, #tpu.memory_space<vmem>>, vector<1x1x128xf32>
    %84 = vector.shape_cast %83 : vector<1x1x128xf32> to vector<1x128xf32>
    %c0_36 = arith.constant 0 : index
    %c0_37 = arith.constant 0 : index
    %c0_38 = arith.constant 0 : index
    %85 = vector.load %arg11[%c0_36, %c0_37, %c0_38] : memref<1x1x128xf32, #tpu.memory_space<vmem>>, vector<1x1x128xf32>
    %86 = vector.shape_cast %85 : vector<1x1x128xf32> to vector<1x128xf32>
    %cst_39 = arith.constant dense<0.000000e+00> : vector<4x16xf32>
    %87 = vector.multi_reduction <add>, %82, %cst_39 [2] : vector<4x16x128xf32> to vector<4x16xf32>
    %88 = vector.shape_cast %87 : vector<4x16xf32> to vector<4x16x1xf32>
    %cst_40 = arith.constant 1.280000e+02 : f32
    %89 = vector.broadcast %cst_40 : f32 to vector<4x16x1xf32>
    %90 = arith.divf %88, %89 : vector<4x16x1xf32>
    %91 = vector.broadcast %90 : vector<4x16x1xf32> to vector<4x16x128xf32>
    %92 = arith.subf %82, %91 : vector<4x16x128xf32>
    %93 = arith.mulf %92, %92 : vector<4x16x128xf32>
    %cst_41 = arith.constant dense<0.000000e+00> : vector<4x16xf32>
    %94 = vector.multi_reduction <add>, %93, %cst_41 [2] : vector<4x16x128xf32> to vector<4x16xf32>
    %95 = vector.shape_cast %94 : vector<4x16xf32> to vector<4x16x1xf32>
    %cst_42 = arith.constant 1.280000e+02 : f32
    %96 = vector.broadcast %cst_42 : f32 to vector<4x16x1xf32>
    %97 = arith.divf %95, %96 : vector<4x16x1xf32>
    %98 = vector.broadcast %90 : vector<4x16x1xf32> to vector<4x16x128xf32>
    %99 = arith.subf %82, %98 : vector<4x16x128xf32>
    %cst_43 = arith.constant 9.99999974E-6 : f32
    %100 = vector.broadcast %cst_43 : f32 to vector<4x16x1xf32>
    %101 = arith.addf %97, %100 : vector<4x16x1xf32>
    %102 = math.rsqrt %101 : vector<4x16x1xf32>
    %103 = vector.broadcast %102 : vector<4x16x1xf32> to vector<4x16x128xf32>
    %104 = arith.mulf %99, %103 : vector<4x16x128xf32>
    %105 = vector.shape_cast %84 : vector<1x128xf32> to vector<1x1x128xf32>
    %106 = vector.broadcast %105 : vector<1x1x128xf32> to vector<4x16x128xf32>
    %107 = arith.mulf %104, %106 : vector<4x16x128xf32>
    %108 = vector.shape_cast %86 : vector<1x128xf32> to vector<1x1x128xf32>
    %109 = vector.broadcast %108 : vector<1x1x128xf32> to vector<4x16x128xf32>
    %110 = arith.addf %107, %109 : vector<4x16x128xf32>
    %111 = vector.shape_cast %110 : vector<4x16x128xf32> to vector<64x128xf32>
    %112 = arith.truncf %111 : vector<64x128xf32> to vector<64x128xbf16>
    %c0_44 = arith.constant 0 : index
    %c0_45 = arith.constant 0 : index
    %c0_46 = arith.constant 0 : index
    %113 = vector.load %arg12[%c0_44, %c0_45, %c0_46] : memref<1x128x512xbf16, #tpu.memory_space<vmem>>, vector<1x128x512xbf16>
    %114 = vector.shape_cast %113 : vector<1x128x512xbf16> to vector<128x512xbf16>
    %cst_47 = arith.constant dense<0.000000e+00> : vector<64x512xf32>
    %115 = tpu.matmul %112, %114, %cst_47 {dimension_numbers = #tpu.dot_dimension_numbers<[1], [0], [0], [1], [0, 0, 1, 1], [], []>} : vector<64x128xbf16>, vector<128x512xbf16>, vector<64x512xf32> -> vector<64x512xf32>
    %c0_48 = arith.constant 0 : index
    %c0_49 = arith.constant 0 : index
    %c0_50 = arith.constant 0 : index
    %116 = vector.load %arg13[%c0_48, %c0_49, %c0_50] : memref<1x1x512xf32, #tpu.memory_space<vmem>>, vector<1x1x512xf32>
    %117 = vector.shape_cast %116 : vector<1x1x512xf32> to vector<1x512xf32>
    %118 = vector.broadcast %117 : vector<1x512xf32> to vector<64x512xf32>
    %119 = arith.addf %115, %118 : vector<64x512xf32>
    %120 = arith.truncf %119 : vector<64x512xf32> to vector<64x512xbf16>
    %cst_51 = arith.constant 1.703130e+00 : bf16
    %121 = vector.broadcast %cst_51 : bf16 to vector<64x512xbf16>
    %122 = arith.mulf %121, %120 : vector<64x512xbf16>
    %123 = arith.negf %122 : vector<64x512xbf16>
    %124 = math.exp %123 : vector<64x512xbf16>
    %cst_52 = arith.constant 1.000000e+00 : bf16
    %125 = vector.broadcast %cst_52 : bf16 to vector<64x512xbf16>
    %126 = arith.addf %125, %124 : vector<64x512xbf16>
    %127 = arith.divf %125, %126 : vector<64x512xbf16>
    %128 = arith.mulf %120, %127 : vector<64x512xbf16>
    %c0_53 = arith.constant 0 : index
    %c0_54 = arith.constant 0 : index
    %c0_55 = arith.constant 0 : index
    %129 = vector.load %arg14[%c0_53, %c0_54, %c0_55] : memref<1x512x128xbf16, #tpu.memory_space<vmem>>, vector<1x512x128xbf16>
    %130 = vector.shape_cast %129 : vector<1x512x128xbf16> to vector<512x128xbf16>
    %cst_56 = arith.constant dense<0.000000e+00> : vector<64x128xf32>
    %131 = tpu.matmul %128, %130, %cst_56 {dimension_numbers = #tpu.dot_dimension_numbers<[1], [0], [0], [1], [0, 0, 1, 1], [], []>} : vector<64x512xbf16>, vector<512x128xbf16>, vector<64x128xf32> -> vector<64x128xf32>
    %c0_57 = arith.constant 0 : index
    %c0_58 = arith.constant 0 : index
    %c0_59 = arith.constant 0 : index
    %132 = vector.load %arg15[%c0_57, %c0_58, %c0_59] : memref<1x1x128xf32, #tpu.memory_space<vmem>>, vector<1x1x128xf32>
    %133 = vector.shape_cast %132 : vector<1x1x128xf32> to vector<1x128xf32>
    %134 = vector.broadcast %133 : vector<1x128xf32> to vector<64x128xf32>
    %135 = arith.addf %131, %134 : vector<64x128xf32>
    %136 = vector.shape_cast %135 : vector<64x128xf32> to vector<4x16x128xf32>
    %137 = arith.addf %82, %136 : vector<4x16x128xf32>
    %c0_60 = arith.constant 0 : index
    %c0_61 = arith.constant 0 : index
    %c0_62 = arith.constant 0 : index
    %138 = vector.load %arg16[%c0_60, %c0_61, %c0_62] : memref<4x16x128xf32, #tpu.memory_space<vmem>>, vector<4x16x128xf32>
    tpu.vector_store %arg16[%c0_60, %c0_61, %c0_62], %137 {strides = array<i32>} : memref<4x16x128xf32, #tpu.memory_space<vmem>>, vector<4x16x128xf32>,
    return
  }
  func.func @transform_0(%arg0: i32, %arg1: i32) -> (i32, i32, i32) {
    %c0_i32 = arith.constant 0 : i32
    %c0_i32_0 = arith.constant 0 : i32
    %c0_i32_1 = arith.constant 0 : i32
    return %arg0, %c0_i32, %c0_i32_0 : i32, i32, i32
  }
  func.func @transform_1(%arg0: i32, %arg1: i32) -> (i32, i32) {
    %c0_i32 = arith.constant 0 : i32
    %c0_i32_0 = arith.constant 0 : i32
    %c0_i32_1 = arith.constant 0 : i32
    return %c0_i32, %c0_i32_0 : i32, i32
  }
  func.func @transform_2(%arg0: i32, %arg1: i32) -> (i32, i32, i32) {
    %c0_i32 = arith.constant 0 : i32
    %c0_i32_0 = arith.constant 0 : i32
    %c0_i32_1 = arith.constant 0 : i32
    return %arg1, %c0_i32, %c0_i32_0 : i32, i32, i32
  }
  func.func @transform_3(%arg0: i32, %arg1: i32) -> (i32, i32, i32) {
    %c0_i32 = arith.constant 0 : i32
    %c0_i32_0 = arith.constant 0 : i32
    %c0_i32_1 = arith.constant 0 : i32
    return %arg1, %c0_i32, %c0_i32_0 : i32, i32, i32
  }
  func.func @transform_4(%arg0: i32, %arg1: i32) -> (i32, i32, i32) {
    %c0_i32 = arith.constant 0 : i32
    %c0_i32_0 = arith.constant 0 : i32
    %c0_i32_1 = arith.constant 0 : i32
    return %arg1, %c0_i32, %c0_i32_0 : i32, i32, i32
  }
  func.func @transform_5(%arg0: i32, %arg1: i32) -> (i32, i32, i32) {
    %c0_i32 = arith.constant 0 : i32
    %c0_i32_0 = arith.constant 0 : i32
    %c0_i32_1 = arith.constant 0 : i32
    return %arg1, %c0_i32, %c0_i32_0 : i32, i32, i32
  }
  func.func @transform_6(%arg0: i32, %arg1: i32) -> (i32, i32, i32) {
    %c0_i32 = arith.constant 0 : i32
    %c0_i32_0 = arith.constant 0 : i32
    %c0_i32_1 = arith.constant 0 : i32
    return %arg1, %c0_i32, %c0_i32_0 : i32, i32, i32
  }
  func.func @transform_7(%arg0: i32, %arg1: i32) -> (i32, i32, i32) {
    %c0_i32 = arith.constant 0 : i32
    %c0_i32_0 = arith.constant 0 : i32
    %c0_i32_1 = arith.constant 0 : i32
    return %arg1, %c0_i32, %c0_i32_0 : i32, i32, i32
  }
  func.func @transform_8(%arg0: i32, %arg1: i32) -> (i32, i32, i32) {
    %c0_i32 = arith.constant 0 : i32
    %c0_i32_0 = arith.constant 0 : i32
    %c0_i32_1 = arith.constant 0 : i32
    return %arg1, %c0_i32, %c0_i32_0 : i32, i32, i32
  }
  func.func @transform_9(%arg0: i32, %arg1: i32) -> (i32, i32, i32) {
    %c0_i32 = arith.constant 0 : i32
    %c0_i32_0 = arith.constant 0 : i32
    %c0_i32_1 = arith.constant 0 : i32
    return %arg1, %c0_i32, %c0_i32_0 : i32, i32, i32
  }
  func.func @transform_10(%arg0: i32, %arg1: i32) -> (i32, i32, i32) {
    %c0_i32 = arith.constant 0 : i32
    %c0_i32_0 = arith.constant 0 : i32
    %c0_i32_1 = arith.constant 0 : i32
    return %arg1, %c0_i32, %c0_i32_0 : i32, i32, i32
  }
  func.func @transform_11(%arg0: i32, %arg1: i32) -> (i32, i32, i32) {
    %c0_i32 = arith.constant 0 : i32
    %c0_i32_0 = arith.constant 0 : i32
    %c0_i32_1 = arith.constant 0 : i32
    return %arg1, %c0_i32, %c0_i32_0 : i32, i32, i32
  }
  func.func @transform_12(%arg0: i32, %arg1: i32) -> (i32, i32, i32) {
    %c0_i32 = arith.constant 0 : i32
    %c0_i32_0 = arith.constant 0 : i32
    %c0_i32_1 = arith.constant 0 : i32
    return %arg1, %c0_i32, %c0_i32_0 : i32, i32, i32
  }
  func.func @transform_13(%arg0: i32, %arg1: i32) -> (i32, i32, i32) {
    %c0_i32 = arith.constant 0 : i32
    %c0_i32_0 = arith.constant 0 : i32
    %c0_i32_1 = arith.constant 0 : i32
    return %arg1, %c0_i32, %c0_i32_0 : i32, i32, i32
  }
  func.func @transform_14(%arg0: i32, %arg1: i32) -> (i32, i32, i32) {
    %c0_i32 = arith.constant 0 : i32
    %c0_i32_0 = arith.constant 0 : i32
    %c0_i32_1 = arith.constant 0 : i32
    return %arg0, %c0_i32, %c0_i32_0 : i32, i32, i32
  }
}

</mosaic_0001>

<llo_original>
// kernel: tpu_custom_call.1
$region0: #{tpu_custom_call.1}
  #allocation0 [shape = 'u32[]', space=smem, size = 0x4, offset = 0x4, fixed_abs, tag = 'smem constant byte address 0x4 - core index']
  #allocation1 [shape = 'u32[144,128]{1,0:T(1,128)}', space=vmem, size = 0x12000, scoped, tag = 'internal scratch']
  %s0 = inlined_call_operand.hbm [shape: f32[4,16,128], index: 0, kind: input, shape index: {}, may-alias: {0,14}]
  %s1 = inlined_call_operand.vmem [shape: f32[16,16], index: 1, kind: input, shape index: {}]
  %s2 = inlined_call_operand.vmem [shape: f32[2,1,128], index: 2, kind: input, shape index: {}]
  %s3 = inlined_call_operand.hbm [shape: f32[2,1,128], index: 3, kind: input, shape index: {}]
  %s4 = inlined_call_operand.hbm [shape: bf16[2,128,384], index: 4, kind: input, shape index: {}]
  %s5 = inlined_call_operand.hbm [shape: f32[2,1,384], index: 5, kind: input, shape index: {}]
  %s6 = inlined_call_operand.vmem [shape: bf16[2,128,128], index: 6, kind: input, shape index: {}]
  %s7 = inlined_call_operand.hbm [shape: f32[2,1,128], index: 7, kind: input, shape index: {}]
  %s8 = inlined_call_operand.vmem [shape: f32[2,1,128], index: 8, kind: input, shape index: {}]
  %s9 = inlined_call_operand.vmem [shape: f32[2,1,128], index: 9, kind: input, shape index: {}]
  %s10 = inlined_call_operand.hbm [shape: bf16[2,128,512], index: 10, kind: input, shape index: {}]
  %s11 = inlined_call_operand.vmem [shape: f32[2,1,512], index: 11, kind: input, shape index: {}]
  %s12 = inlined_call_operand.hbm [shape: bf16[2,512,128], index: 12, kind: input, shape index: {}]
  %s13 = inlined_call_operand.vmem [shape: f32[2,1,128], index: 13, kind: input, shape index: {}]
  %s14 = inlined_call_operand.hbm [shape: f32[4,16,128], index: 14, kind: output, shape index: {}, may-alias: {0,14}]
  %s15 = sld [smem:[#allocation0]]
  $region121: #{tpu_custom_call.1} parent=0
    _
  %s17 = ssub.s32 1, %s15
  %s18 = scalar_select 0, %s17, %s15
  $region1: #{tpu_custom_call.1} parent=0
    #allocation2 [shape = 'u8[32768]{0}', space=vmem, size = 0x8000, scoped, tag = 'input window, operand 0, single buffered']
    #allocation3 [shape = 's32[2]{0}', space=sflag, size = 0x8, scoped, tag = 'scoped memory for tpu_custom_call.1']
    #allocation4 [shape = 's32[2]{0}', space=sflag, size = 0x8, scoped, tag = 'scoped memory for tpu_custom_call.1']
    #allocation5 [shape = 'u8[1024]{0}', space=vmem, size = 0x400, scoped, tag = 'input window, operand 3']
    #allocation6 [shape = 's32[2]{0}', space=sflag, size = 0x8, scoped, tag = 'scoped memory for tpu_custom_call.1']
    #allocation7 [shape = 'u8[196608]{0}', space=vmem, size = 0x30000, scoped, tag = 'input window, operand 4']
    #allocation8 [shape = 'u8[3072]{0}', space=vmem, size = 0xc00, scoped, tag = 'input window, operand 5']
    #allocation9 [shape = 's32[2]{0}', space=sflag, size = 0x8, scoped, tag = 'scoped memory for tpu_custom_call.1']
    #allocation10 [shape = 'u8[1024]{0}', space=vmem, size = 0x400, scoped, tag = 'input window, operand 7']
    #allocation11 [shape = 'u8[262144]{0}', space=vmem, size = 0x40000, scoped, tag = 'input window, operand 10']
    #allocation12 [shape = 's32[2]{0}', space=sflag, size = 0x8, scoped, tag = 'scoped memory for tpu_custom_call.1']
    #allocation13 [shape = 'u8[262144]{0}', space=vmem, size = 0x40000, scoped, tag = 'input window, operand 12']
    #allocation14 [shape = 'u8[32768]{0}', space=vmem, size = 0x8000, scoped, tag = 'output window, operand 0, single buffered']
    %19 = vsyncpa [#allocation3], 0
    %20 = vsyncpa [#allocation6], 0
    %s21 = scalar_lea.sflag [#allocation6], 1
    %22 = vsyncpa %s21, 0
    %23 = vsyncpa [#allocation9], 0
    %s24 = scalar_lea.sflag [#allocation9], 1
    %25 = vsyncpa %s24, 0
    %26 = vsyncpa [#allocation12], 0
    %s27 = scalar_lea.sflag [#allocation12], 1
    %28 = vsyncpa %s27, 0
    %29 = vsyncpa [#allocation4], 0
    loop: start=0, step=1, limit=4
    $region2: #{tpu_custom_call.1} parent=1 // loop_pre_header
      _
    $region3: #{tpu_custom_call.1} parent=1 // loop_header
      %s31 = sphi 0, %s35
      %p32 = scmp.ge.s32.totalorder %s31, 4
      %s38 = sphi 0, %s50
      %s39 = sphi 0, %s46
      %s40 = sphi 0, %s38
      %s41 = sphi 0, %s39
      %s42 = sphi 0, %s40
      %s43 = sphi 0, %s41
      %s53 = sphi 0, %s55
      %s56 = sphi 0, %s53
      %s57 = sphi 0, %s56
      %s73 = sphi 0, %s57
      %s77 = sphi 0, %s77
      %s79 = sphi 0, %s77
      %s80 = sphi 0, %s79
      %s94 = sphi 0, %s80
      %s100 = sphi 0, %s102
      %s103 = sphi 0, %s100
      %s104 = sphi 0, %s103
      %s120 = sphi 0, %s104
      %s126 = sphi 0, %s128
      %s129 = sphi 0, %s126
      %s130 = sphi 0, %s129
      %s146 = sphi 0, %s130
      %s152 = sphi 0, %s154
      %s155 = sphi 0, %s152
      %s156 = sphi 0, %s155
      %s172 = sphi 0, %s156
      %s178 = sphi 0, %s180
      %s181 = sphi 0, %s178
      %s182 = sphi 0, %s181
      %s198 = sphi 0, %s182
      %s204 = sphi 0, %s206
      %s207 = sphi 0, %s204
      %s208 = sphi 0, %s207
      %s224 = sphi 0, %s208
      %s230 = sphi 0, %s232
      %s233 = sphi 0, %s230
      %s234 = sphi 0, %s233
      %s250 = sphi 0, %s234
      %s256 = sphi 0, %s258
      %s259 = sphi 0, %s256
      %s260 = sphi 0, %s259
      %s276 = sphi 0, %s260
      %s282 = sphi 0, %s284
      %s285 = sphi 0, %s282
      %s286 = sphi 0, %s285
      %s302 = sphi 0, %s286
      %s308 = sphi 0, %s310
      %s311 = sphi 0, %s308
      %s312 = sphi 0, %s311
      %s328 = sphi 0, %s312
      %s334 = sphi 0, %s336
      %s337 = sphi 0, %s334
      %s338 = sphi 0, %s337
      %s354 = sphi 0, %s338
      %s360 = sphi 0, %s362
      %s363 = sphi 0, %s360
      %s364 = sphi 0, %s363
      %s380 = sphi 0, %s364
      %s386 = sphi 0, %s388
      %s389 = sphi 0, %s386
      %s390 = sphi 0, %s389
      %s406 = sphi 0, %s390
      %s412 = sphi 0, %s414
      %s415 = sphi 0, %s412
      %s416 = sphi 0, %s415
      %s432 = sphi 0, %s416
    $region4: #{tpu_custom_call.1} parent=1 // loop_header_branch
      %34 = sbr.rel (%p32) target = $region8
    $region5: #{tpu_custom_call.1} parent=1 // loop_body
      %s36 = ssub.s32 %s31, 1
      %s37 = ssub.s32 %s31, 2
      %s44 = sadd.s32 1, %s39
      %p45 = scmp.ge.s32.totalorder %s44, 2
      %s46 = scalar_select %p45, 0, %s44
      %s47 = sadd.s32 1, %s38
      %s48 = scalar_select %p45, %s47, %s38
      %p49 = scmp.ge.s32.totalorder %s48, 1
      %s50 = scalar_select %p49, 0, %s48
      %s51 = ssub.s32 %s38, %s50
      %p52 = scmp.eq.s32.totalorder %s51, 0
      %s54 = sadd.s32 %s53, 1
      %s55 = scalar_select %p52, %s53, %s54
      %p58 = pneg %p52
      %p59 = scmp.eq.s32.totalorder %s31, 1
      %p60 = por %p58, %p59
      %p61 = scmp.ne.s32.totalorder %s53, %s56
      %p62 = scmp.eq.s32.totalorder %s31, 0
      %p63 = por %p61, %p62
      %p64 = scmp.ne.s32.totalorder %s53, %s56
      %p65 = scmp.eq.s32.totalorder %s36, 1
      %p66 = por %p64, %p65
      %p67 = scmp.ne.s32.totalorder %s56, %s57
      %p68 = scmp.eq.s32.totalorder %s36, 0
      %p69 = por %p67, %p68
      %p70 = scmp.ne.s32.totalorder %s56, %s57
      %p71 = scmp.eq.s32.totalorder %s37, 1
      %p72 = por %p70, %p71
      %p74 = scmp.ne.s32.totalorder %s57, %s73
      %p75 = scmp.eq.s32.totalorder %s37, 0
      %p76 = por %p74, %p75
      %s78 = sadd.s32 %s77, 1
      %p81 = scmp.eq.s32.totalorder %s31, 1
      %p82 = scmp.ne.s32.totalorder %s77, %s79
      %p83 = scmp.eq.s32.totalorder %s31, 0
      %p84 = por %p82, %p83
      %p85 = scmp.ne.s32.totalorder %s77, %s79
      %p86 = scmp.eq.s32.totalorder %s36, 1
      %p87 = por %p85, %p86
      %p88 = scmp.ne.s32.totalorder %s79, %s80
      %p89 = scmp.eq.s32.totalorder %s36, 0
      %p90 = por %p88, %p89
      %p91 = scmp.ne.s32.totalorder %s79, %s80
      %p92 = scmp.eq.s32.totalorder %s37, 1
      %p93 = por %p91, %p92
      %p95 = scmp.ne.s32.totalorder %s80, %s94
      %p96 = scmp.eq.s32.totalorder %s37, 0
      %p97 = por %p95, %p96
      %s98 = ssub.s32 %s39, %s46
      %p99 = scmp.eq.s32.totalorder %s98, 0
      %s101 = sadd.s32 %s100, 1
      %s102 = scalar_select %p99, %s100, %s101
      %p105 = pneg %p99
      %p106 = scmp.eq.s32.totalorder %s31, 1
      %p107 = por %p105, %p106
      %p108 = scmp.ne.s32.totalorder %s100, %s103
      %p109 = scmp.eq.s32.totalorder %s31, 0
      %p110 = por %p108, %p109
      %p111 = scmp.ne.s32.totalorder %s100, %s103
      %p112 = scmp.eq.s32.totalorder %s36, 1
      %p113 = por %p111, %p112
      %p114 = scmp.ne.s32.totalorder %s103, %s104
      %p115 = scmp.eq.s32.totalorder %s36, 0
      %p116 = por %p114, %p115
      %p117 = scmp.ne.s32.totalorder %s103, %s104
      %p118 = scmp.eq.s32.totalorder %s37, 1
      %p119 = por %p117, %p118
      %p121 = scmp.ne.s32.totalorder %s104, %s120
      %p122 = scmp.eq.s32.totalorder %s37, 0
      %p123 = por %p121, %p122
      %s124 = ssub.s32 %s39, %s46
      %p125 = scmp.eq.s32.totalorder %s124, 0
      %s127 = sadd.s32 %s126, 1
      %s128 = scalar_select %p125, %s126, %s127
      %p131 = pneg %p125
      %p132 = scmp.eq.s32.totalorder %s31, 1
      %p133 = por %p131, %p132
      %p134 = scmp.ne.s32.totalorder %s126, %s129
      %p135 = scmp.eq.s32.totalorder %s31, 0
      %p136 = por %p134, %p135
      %p137 = scmp.ne.s32.totalorder %s126, %s129
      %p138 = scmp.eq.s32.totalorder %s36, 1
      %p139 = por %p137, %p138
      %p140 = scmp.ne.s32.totalorder %s129, %s130
      %p141 = scmp.eq.s32.totalorder %s36, 0
      %p142 = por %p140, %p141
      %p143 = scmp.ne.s32.totalorder %s129, %s130
      %p144 = scmp.eq.s32.totalorder %s37, 1
      %p145 = por %p143, %p144
      %p147 = scmp.ne.s32.totalorder %s130, %s146
      %p148 = scmp.eq.s32.totalorder %s37, 0
      %p149 = por %p147, %p148
      %s150 = ssub.s32 %s39, %s46
      %p151 = scmp.eq.s32.totalorder %s150, 0
      %s153 = sadd.s32 %s152, 1
      %s154 = scalar_select %p151, %s152, %s153
      %p157 = pneg %p151
      %p158 = scmp.eq.s32.totalorder %s31, 1
      %p159 = por %p157, %p158
      %p160 = scmp.ne.s32.totalorder %s152, %s155
      %p161 = scmp.eq.s32.totalorder %s31, 0
      %p162 = por %p160, %p161
      %p163 = scmp.ne.s32.totalorder %s152, %s155
      %p164 = scmp.eq.s32.totalorder %s36, 1
      %p165 = por %p163, %p164
      %p166 = scmp.ne.s32.totalorder %s155, %s156
      %p167 = scmp.eq.s32.totalorder %s36, 0
      %p168 = por %p166, %p167
      %p169 = scmp.ne.s32.totalorder %s155, %s156
      %p170 = scmp.eq.s32.totalorder %s37, 1
      %p171 = por %p169, %p170
      %p173 = scmp.ne.s32.totalorder %s156, %s172
      %p174 = scmp.eq.s32.totalorder %s37, 0
      %p175 = por %p173, %p174
      %s176 = ssub.s32 %s39, %s46
      %p177 = scmp.eq.s32.totalorder %s176, 0
      %s179 = sadd.s32 %s178, 1
      %s180 = scalar_select %p177, %s178, %s179
      %p183 = pneg %p177
      %p184 = scmp.eq.s32.totalorder %s31, 1
      %p185 = por %p183, %p184
      %p186 = scmp.ne.s32.totalorder %s178, %s181
      %p187 = scmp.eq.s32.totalorder %s31, 0
      %p188 = por %p186, %p187
      %p189 = scmp.ne.s32.totalorder %s178, %s181
      %p190 = scmp.eq.s32.totalorder %s36, 1
      %p191 = por %p189, %p190
      %p192 = scmp.ne.s32.totalorder %s181, %s182
      %p193 = scmp.eq.s32.totalorder %s36, 0
      %p194 = por %p192, %p193
      %p195 = scmp.ne.s32.totalorder %s181, %s182
      %p196 = scmp.eq.s32.totalorder %s37, 1
      %p197 = por %p195, %p196
      %p199 = scmp.ne.s32.totalorder %s182, %s198
      %p200 = scmp.eq.s32.totalorder %s37, 0
      %p201 = por %p199, %p200
      %s202 = ssub.s32 %s39, %s46
      %p203 = scmp.eq.s32.totalorder %s202, 0
      %s205 = sadd.s32 %s204, 1
      %s206 = scalar_select %p203, %s204, %s205
      %p209 = pneg %p203
      %p210 = scmp.eq.s32.totalorder %s31, 1
      %p211 = por %p209, %p210
      %p212 = scmp.ne.s32.totalorder %s204, %s207
      %p213 = scmp.eq.s32.totalorder %s31, 0
      %p214 = por %p212, %p213
      %p215 = scmp.ne.s32.totalorder %s204, %s207
      %p216 = scmp.eq.s32.totalorder %s36, 1
      %p217 = por %p215, %p216
      %p218 = scmp.ne.s32.totalorder %s207, %s208
      %p219 = scmp.eq.s32.totalorder %s36, 0
      %p220 = por %p218, %p219
      %p221 = scmp.ne.s32.totalorder %s207, %s208
      %p222 = scmp.eq.s32.totalorder %s37, 1
      %p223 = por %p221, %p222
      %p225 = scmp.ne.s32.totalorder %s208, %s224
      %p226 = scmp.eq.s32.totalorder %s37, 0
      %p227 = por %p225, %p226
      %s228 = ssub.s32 %s39, %s46
      %p229 = scmp.eq.s32.totalorder %s228, 0
      %s231 = sadd.s32 %s230, 1
      %s232 = scalar_select %p229, %s230, %s231
      %p235 = pneg %p229
      %p236 = scmp.eq.s32.totalorder %s31, 1
      %p237 = por %p235, %p236
      %p238 = scmp.ne.s32.totalorder %s230, %s233
      %p239 = scmp.eq.s32.totalorder %s31, 0
      %p240 = por %p238, %p239
      %p241 = scmp.ne.s32.totalorder %s230, %s233
      %p242 = scmp.eq.s32.totalorder %s36, 1
      %p243 = por %p241, %p242
      %p244 = scmp.ne.s32.totalorder %s233, %s234
      %p245 = scmp.eq.s32.totalorder %s36, 0
      %p246 = por %p244, %p245
      %p247 = scmp.ne.s32.totalorder %s233, %s234
      %p248 = scmp.eq.s32.totalorder %s37, 1
      %p249 = por %p247, %p248
      %p251 = scmp.ne.s32.totalorder %s234, %s250
      %p252 = scmp.eq.s32.totalorder %s37, 0
      %p253 = por %p251, %p252
      %s254 = ssub.s32 %s39, %s46
      %p255 = scmp.eq.s32.totalorder %s254, 0
      %s257 = sadd.s32 %s256, 1
      %s258 = scalar_select %p255, %s256, %s257
      %p261 = pneg %p255
      %p262 = scmp.eq.s32.totalorder %s31, 1
      %p263 = por %p261, %p262
      %p264 = scmp.ne.s32.totalorder %s256, %s259
      %p265 = scmp.eq.s32.totalorder %s31, 0
      %p266 = por %p264, %p265
      %p267 = scmp.ne.s32.totalorder %s256, %s259
      %p268 = scmp.eq.s32.totalorder %s36, 1
      %p269 = por %p267, %p268
      %p270 = scmp.ne.s32.totalorder %s259, %s260
      %p271 = scmp.eq.s32.totalorder %s36, 0
      %p272 = por %p270, %p271
      %p273 = scmp.ne.s32.totalorder %s259, %s260
      %p274 = scmp.eq.s32.totalorder %s37, 1
      %p275 = por %p273, %p274
      %p277 = scmp.ne.s32.totalorder %s260, %s276
      %p278 = scmp.eq.s32.totalorder %s37, 0
      %p279 = por %p277, %p278
      %s280 = ssub.s32 %s39, %s46
      %p281 = scmp.eq.s32.totalorder %s280, 0
      %s283 = sadd.s32 %s282, 1
      %s284 = scalar_select %p281, %s282, %s283
      %p287 = pneg %p281
      %p288 = scmp.eq.s32.totalorder %s31, 1
      %p289 = por %p287, %p288
      %p290 = scmp.ne.s32.totalorder %s282, %s285
      %p291 = scmp.eq.s32.totalorder %s31, 0
      %p292 = por %p290, %p291
      %p293 = scmp.ne.s32.totalorder %s282, %s285
      %p294 = scmp.eq.s32.totalorder %s36, 1
      %p295 = por %p293, %p294
      %p296 = scmp.ne.s32.totalorder %s285, %s286
      %p297 = scmp.eq.s32.totalorder %s36, 0
      %p298 = por %p296, %p297
      %p299 = scmp.ne.s32.totalorder %s285, %s286
      %p300 = scmp.eq.s32.totalorder %s37, 1
      %p301 = por %p299, %p300
      %p303 = scmp.ne.s32.totalorder %s286, %s302
      %p304 = scmp.eq.s32.totalorder %s37, 0
      %p305 = por %p303, %p304
      %s306 = ssub.s32 %s39, %s46
      %p307 = scmp.eq.s32.totalorder %s306, 0
      %s309 = sadd.s32 %s308, 1
      %s310 = scalar_select %p307, %s308, %s309
      %p313 = pneg %p307
      %p314 = scmp.eq.s32.totalorder %s31, 1
      %p315 = por %p313, %p314
      %p316 = scmp.ne.s32.totalorder %s308, %s311
      %p317 = scmp.eq.s32.totalorder %s31, 0
      %p318 = por %p316, %p317
      %p319 = scmp.ne.s32.totalorder %s308, %s311
      %p320 = scmp.eq.s32.totalorder %s36, 1
      %p321 = por %p319, %p320
      %p322 = scmp.ne.s32.totalorder %s311, %s312
      %p323 = scmp.eq.s32.totalorder %s36, 0
      %p324 = por %p322, %p323
      %p325 = scmp.ne.s32.totalorder %s311, %s312
      %p326 = scmp.eq.s32.totalorder %s37, 1
      %p327 = por %p325, %p326
      %p329 = scmp.ne.s32.totalorder %s312, %s328
      %p330 = scmp.eq.s32.totalorder %s37, 0
      %p331 = por %p329, %p330
      %s332 = ssub.s32 %s39, %s46
      %p333 = scmp.eq.s32.totalorder %s332, 0
      %s335 = sadd.s32 %s334, 1
      %s336 = scalar_select %p333, %s334, %s335
      %p339 = pneg %p333
      %p340 = scmp.eq.s32.totalorder %s31, 1
      %p341 = por %p339, %p340
      %p342 = scmp.ne.s32.totalorder %s334, %s337
      %p343 = scmp.eq.s32.totalorder %s31, 0
      %p344 = por %p342, %p343
      %p345 = scmp.ne.s32.totalorder %s334, %s337
      %p346 = scmp.eq.s32.totalorder %s36, 1
      %p347 = por %p345, %p346
      %p348 = scmp.ne.s32.totalorder %s337, %s338
      %p349 = scmp.eq.s32.totalorder %s36, 0
      %p350 = por %p348, %p349
      %p351 = scmp.ne.s32.totalorder %s337, %s338
      %p352 = scmp.eq.s32.totalorder %s37, 1
      %p353 = por %p351, %p352
      %p355 = scmp.ne.s32.totalorder %s338, %s354
      %p356 = scmp.eq.s32.totalorder %s37, 0
      %p357 = por %p355, %p356
      %s358 = ssub.s32 %s39, %s46
      %p359 = scmp.eq.s32.totalorder %s358, 0
      %s361 = sadd.s32 %s360, 1
      %s362 = scalar_select %p359, %s360, %s361
      %p365 = pneg %p359
      %p366 = scmp.eq.s32.totalorder %s31, 1
      %p367 = por %p365, %p366
      %p368 = scmp.ne.s32.totalorder %s360, %s363
      %p369 = scmp.eq.s32.totalorder %s31, 0
      %p370 = por %p368, %p369
      %p371 = scmp.ne.s32.totalorder %s360, %s363
      %p372 = scmp.eq.s32.totalorder %s36, 1
      %p373 = por %p371, %p372
      %p374 = scmp.ne.s32.totalorder %s363, %s364
      %p375 = scmp.eq.s32.totalorder %s36, 0
      %p376 = por %p374, %p375
      %p377 = scmp.ne.s32.totalorder %s363, %s364
      %p378 = scmp.eq.s32.totalorder %s37, 1
      %p379 = por %p377, %p378
      %p381 = scmp.ne.s32.totalorder %s364, %s380
      %p382 = scmp.eq.s32.totalorder %s37, 0
      %p383 = por %p381, %p382
      %s384 = ssub.s32 %s39, %s46
      %p385 = scmp.eq.s32.totalorder %s384, 0
      %s387 = sadd.s32 %s386, 1
      %s388 = scalar_select %p385, %s386, %s387
      %p391 = pneg %p385
      %p392 = scmp.eq.s32.totalorder %s31, 1
      %p393 = por %p391, %p392
      %p394 = scmp.ne.s32.totalorder %s386, %s389
      %p395 = scmp.eq.s32.totalorder %s31, 0
      %p396 = por %p394, %p395
      %p397 = scmp.ne.s32.totalorder %s386, %s389
      %p398 = scmp.eq.s32.totalorder %s36, 1
      %p399 = por %p397, %p398
      %p400 = scmp.ne.s32.totalorder %s389, %s390
      %p401 = scmp.eq.s32.totalorder %s36, 0
      %p402 = por %p400, %p401
      %p403 = scmp.ne.s32.totalorder %s389, %s390
      %p404 = scmp.eq.s32.totalorder %s37, 1
      %p405 = por %p403, %p404
      %p407 = scmp.ne.s32.totalorder %s390, %s406
      %p408 = scmp.eq.s32.totalorder %s37, 0
      %p409 = por %p407, %p408
      %s410 = ssub.s32 %s38, %s50
      %p411 = scmp.eq.s32.totalorder %s410, 0
      %s413 = sadd.s32 %s412, 1
      %s414 = scalar_select %p411, %s412, %s413
      %p417 = pneg %p411
      %p418 = scmp.eq.s32.totalorder %s31, 1
      %p419 = por %p417, %p418
      %p420 = scmp.ne.s32.totalorder %s412, %s415
      %p421 = scmp.eq.s32.totalorder %s31, 0
      %p422 = por %p420, %p421
      %p423 = scmp.ne.s32.totalorder %s412, %s415
      %p424 = scmp.eq.s32.totalorder %s36, 1
      %p425 = por %p423, %p424
      %p426 = scmp.ne.s32.totalorder %s415, %s416
      %p427 = scmp.eq.s32.totalorder %s36, 0
      %p428 = por %p426, %p427
      %p429 = scmp.ne.s32.totalorder %s415, %s416
      %p430 = scmp.eq.s32.totalorder %s37, 1
      %p431 = por %p429, %p430
      %p433 = scmp.ne.s32.totalorder %s416, %s432
      %p434 = scmp.eq.s32.totalorder %s37, 0
      %p435 = por %p433, %p434
      %p436 = scmp.le.s32.totalorder 1, %s31
      %p437 = scmp.lt.s32.totalorder %s31, 3
      %p438 = pnand %p436, %p437
      %p439 = pneg %p438
      // Predicated region
      $region9: #{tpu_custom_call.1} parent=5 // pred_check
        _
      $region10: #{tpu_custom_call.1} parent=5 // pred_check_branch
        %441 = sbr.rel (%p438) target = $region12
      $region11: #{tpu_custom_call.1} parent=5 // pred_region
        %s442 = ssub.s32 %s31, 1
        // Predicated region
        $region13: #{tpu_custom_call.1} parent=11 // pred_check
          %p443 = pneg %p69
        $region14: #{tpu_custom_call.1} parent=11 // pred_check_branch
          %445 = sbr.rel (%p443) target = $region16
        $region15: #{tpu_custom_call.1} parent=11 // pred_region
          %s446 = smul.u32 4, %s40
          %s448 = ssub.s32 1024, 1024
          %449 = vsyncadd [#allocation3], %s448
          %s450 = smul.addr %s446, 2
          %s451 = smul.addr %s450, 128
          %s452 = scalar_lea.hbm %s0, %s451
          %s453 = sshll.u32 [#allocation2], 4
          %s454 = int_to_ptr.vmem [resolvable:$true] %s453
          %459 = dma.hbm_to_vmem [thread:$0]  %s452, 1024, %s454, [#allocation3], 128, 128, 8
        $region16: #{tpu_custom_call.1} parent=11 // pred_fallthru
          _
        // Predicated region
        $region17: #{tpu_custom_call.1} parent=11 // pred_check
          %p460 = pneg %p90
        $region18: #{tpu_custom_call.1} parent=11 // pred_check_branch
          %462 = sbr.rel (%p460) target = $region20
        $region19: #{tpu_custom_call.1} parent=11 // pred_region
          _
        $region20: #{tpu_custom_call.1} parent=11 // pred_fallthru
          _
      $region12: #{tpu_custom_call.1} parent=5 // pred_fallthru
        _
      %p463 = scmp.lt.s32.totalorder %s31, 2
      // Predicated region
      $region21: #{tpu_custom_call.1} parent=5 // pred_check
        %p464 = pneg %p463
      $region22: #{tpu_custom_call.1} parent=5 // pred_check_branch
        %466 = sbr.rel (%p464) target = $region24
      $region23: #{tpu_custom_call.1} parent=5 // pred_region
        // Predicated region
        $region25: #{tpu_custom_call.1} parent=23 // pred_check
          %p467 = pneg %p110
        $region26: #{tpu_custom_call.1} parent=23 // pred_check_branch
          %469 = sbr.rel (%p467) target = $region28
        $region27: #{tpu_custom_call.1} parent=23 // pred_region
          %p470 = scmp.lt.s32.totalorder %s39, 1
          %s471 = scalar_select %p470, %s39, 1
          %s472 = scalar_lea.vmem %s2, %s471
        $region28: #{tpu_custom_call.1} parent=23 // pred_fallthru
          _
        // Predicated region
        $region29: #{tpu_custom_call.1} parent=23 // pred_check
          %p473 = pneg %p136
        $region30: #{tpu_custom_call.1} parent=23 // pred_check_branch
          %475 = sbr.rel (%p473) target = $region32
        $region31: #{tpu_custom_call.1} parent=23 // pred_region
          %s476 = sand.u32 %s31, 1
          %s477 = scalar_lea.sflag [#allocation6], %s476
          %s478 = sand.u32 %s126, 1
          %s479 = scalar_lea.vmem [#allocation5], %s478
          %s481 = ssub.s32 16, 16
          %482 = vsyncadd %s477, %s481
          %s483 = smul.addr %s39, 16
          %s484 = scalar_lea.hbm %s3, %s483
          %s486 = sshll.u32 %s479, 4
          %s487 = int_to_ptr.vmem [resolvable:$true] %s486
          %489 = dma.hbm_to_vmem [thread:$0]  %s484, 16, %s487, %s477
        $region32: #{tpu_custom_call.1} parent=23 // pred_fallthru
          _
        // Predicated region
        $region33: #{tpu_custom_call.1} parent=23 // pred_check
          %p490 = pneg %p162
        $region34: #{tpu_custom_call.1} parent=23 // pred_check_branch
          %492 = sbr.rel (%p490) target = $region36
        $region35: #{tpu_custom_call.1} parent=23 // pred_region
          %s493 = sand.u32 %s31, 1
          %s494 = scalar_lea.sflag [#allocation6], %s493
          %s495 = sand.u32 %s152, 1
          %s496 = smul.addr %s495, 192
          %s497 = scalar_lea.vmem [#allocation7], %s496
          %s499 = ssub.s32 3072, 3072
          %500 = vsyncadd %s494, %s499
          %s501 = smul.addr %s39, 48
          %s502 = smul.addr %s501, 64
          %s503 = scalar_lea.hbm %s4, %s502
          %s504 = sshll.u32 %s497, 4
          %s505 = int_to_ptr.vmem [resolvable:$true] %s504
          %510 = dma.hbm_to_vmem [thread:$0]  %s503, 3072, %s505, %s494, 192, 192, 12
        $region36: #{tpu_custom_call.1} parent=23 // pred_fallthru
          _
        // Predicated region
        $region37: #{tpu_custom_call.1} parent=23 // pred_check
          %p511 = pneg %p188
        $region38: #{tpu_custom_call.1} parent=23 // pred_check_branch
          %513 = sbr.rel (%p511) target = $region40
        $region39: #{tpu_custom_call.1} parent=23 // pred_region
          %s514 = sand.u32 %s31, 1
          %s515 = scalar_lea.sflag [#allocation9], %s514
          %s516 = sand.u32 %s178, 1
          %s517 = smul.addr %s516, 3
          %s518 = scalar_lea.vmem [#allocation8], %s517
          %s520 = ssub.s32 48, 48
          %521 = vsyncadd %s515, %s520
          %s522 = smul.addr %s39, 3
          %s523 = smul.addr %s522, 16
          %s524 = scalar_lea.hbm %s5, %s523
          %s526 = sshll.u32 %s518, 4
          %s527 = int_to_ptr.vmem [resolvable:$true] %s526
          %529 = dma.hbm_to_vmem [thread:$0]  %s524, 48, %s527, %s515
        $region40: #{tpu_custom_call.1} parent=23 // pred_fallthru
          _
        // Predicated region
        $region41: #{tpu_custom_call.1} parent=23 // pred_check
          %p530 = pneg %p214
        $region42: #{tpu_custom_call.1} parent=23 // pred_check_branch
          %532 = sbr.rel (%p530) target = $region44
        $region43: #{tpu_custom_call.1} parent=23 // pred_region
          %p533 = scmp.lt.s32.totalorder %s39, 1
          %s534 = scalar_select %p533, %s39, 1
          %s535 = smul.addr %s534, 16
          %s536 = smul.addr %s535, 4
          %s537 = scalar_lea.vmem %s6, %s536
        $region44: #{tpu_custom_call.1} parent=23 // pred_fallthru
          _
        // Predicated region
        $region45: #{tpu_custom_call.1} parent=23 // pred_check
          %p538 = pneg %p240
        $region46: #{tpu_custom_call.1} parent=23 // pred_check_branch
          %540 = sbr.rel (%p538) target = $region48
        $region47: #{tpu_custom_call.1} parent=23 // pred_region
          %s541 = sand.u32 %s31, 1
          %s542 = scalar_lea.sflag [#allocation9], %s541
          %s543 = sand.u32 %s230, 1
          %s544 = scalar_lea.vmem [#allocation10], %s543
          %s546 = ssub.s32 16, 16
          %547 = vsyncadd %s542, %s546
          %s548 = smul.addr %s39, 16
          %s549 = scalar_lea.hbm %s7, %s548
          %s551 = sshll.u32 %s544, 4
          %s552 = int_to_ptr.vmem [resolvable:$true] %s551
          %554 = dma.hbm_to_vmem [thread:$0]  %s549, 16, %s552, %s542
        $region48: #{tpu_custom_call.1} parent=23 // pred_fallthru
          _
        // Predicated region
        $region49: #{tpu_custom_call.1} parent=23 // pred_check
          %p555 = pneg %p266
        $region50: #{tpu_custom_call.1} parent=23 // pred_check_branch
          %557 = sbr.rel (%p555) target = $region52
        $region51: #{tpu_custom_call.1} parent=23 // pred_region
          %p558 = scmp.lt.s32.totalorder %s39, 1
          %s559 = scalar_select %p558, %s39, 1
          %s560 = scalar_lea.vmem %s8, %s559
        $region52: #{tpu_custom_call.1} parent=23 // pred_fallthru
          _
        // Predicated region
        $region53: #{tpu_custom_call.1} parent=23 // pred_check
          %p561 = pneg %p292
        $region54: #{tpu_custom_call.1} parent=23 // pred_check_branch
          %563 = sbr.rel (%p561) target = $region56
        $region55: #{tpu_custom_call.1} parent=23 // pred_region
          %p564 = scmp.lt.s32.totalorder %s39, 1
          %s565 = scalar_select %p564, %s39, 1
          %s566 = scalar_lea.vmem %s9, %s565
        $region56: #{tpu_custom_call.1} parent=23 // pred_fallthru
          _
        // Predicated region
        $region57: #{tpu_custom_call.1} parent=23 // pred_check
          %p567 = pneg %p318
        $region58: #{tpu_custom_call.1} parent=23 // pred_check_branch
          %569 = sbr.rel (%p567) target = $region60
        $region59: #{tpu_custom_call.1} parent=23 // pred_region
          %s570 = sand.u32 %s31, 1
          %s571 = scalar_lea.sflag [#allocation12], %s570
          %s572 = sand.u32 %s308, 1
          %s573 = smul.addr %s572, 256
          %s574 = scalar_lea.vmem [#allocation11], %s573
          %s576 = ssub.s32 4096, 4096
          %577 = vsyncadd %s571, %s576
          %s578 = smul.addr %s39, 64
          %s579 = smul.addr %s578, 64
          %s580 = scalar_lea.hbm %s10, %s579
          %s581 = sshll.u32 %s574, 4
          %s582 = int_to_ptr.vmem [resolvable:$true] %s581
          %587 = dma.hbm_to_vmem [thread:$0]  %s580, 4096, %s582, %s571, 256, 256, 16
        $region60: #{tpu_custom_call.1} parent=23 // pred_fallthru
          _
        // Predicated region
        $region61: #{tpu_custom_call.1} parent=23 // pred_check
          %p588 = pneg %p344
        $region62: #{tpu_custom_call.1} parent=23 // pred_check_branch
          %590 = sbr.rel (%p588) target = $region64
        $region63: #{tpu_custom_call.1} parent=23 // pred_region
          %p591 = scmp.lt.s32.totalorder %s39, 1
          %s592 = scalar_select %p591, %s39, 1
          %s593 = smul.addr %s592, 4
          %s594 = scalar_lea.vmem %s11, %s593
        $region64: #{tpu_custom_call.1} parent=23 // pred_fallthru
          _
        // Predicated region
        $region65: #{tpu_custom_call.1} parent=23 // pred_check
          %p595 = pneg %p370
        $region66: #{tpu_custom_call.1} parent=23 // pred_check_branch
          %597 = sbr.rel (%p595) target = $region68
        $region67: #{tpu_custom_call.1} parent=23 // pred_region
          %s598 = sand.u32 %s31, 1
          %s599 = scalar_lea.sflag [#allocation12], %s598
          %s600 = sand.u32 %s360, 1
          %s601 = smul.addr %s600, 256
          %s602 = scalar_lea.vmem [#allocation13], %s601
          %s604 = ssub.s32 4096, 4096
          %605 = vsyncadd %s599, %s604
          %s606 = smul.addr %s39, 64
          %s607 = smul.addr %s606, 64
          %s608 = scalar_lea.hbm %s12, %s607
          %s609 = sshll.u32 %s602, 4
          %s610 = int_to_ptr.vmem [resolvable:$true] %s609
          %615 = dma.hbm_to_vmem [thread:$0]  %s608, 4096, %s610, %s599, 64, 64, 4
        $region68: #{tpu_custom_call.1} parent=23 // pred_fallthru
          _
        // Predicated region
        $region69: #{tpu_custom_call.1} parent=23 // pred_check
          %p616 = pneg %p396
        $region70: #{tpu_custom_call.1} parent=23 // pred_check_branch
          %618 = sbr.rel (%p616) target = $region72
        $region71: #{tpu_custom_call.1} parent=23 // pred_region
          %p619 = scmp.lt.s32.totalorder %s39, 1
          %s620 = scalar_select %p619, %s39, 1
          %s621 = scalar_lea.vmem %s13, %s620
        $region72: #{tpu_custom_call.1} parent=23 // pred_fallthru
          _
      $region24: #{tpu_custom_call.1} parent=5 // pred_fallthru
        _
      %p622 = scmp.le.s32.totalorder 1, %s31
      %p623 = scmp.lt.s32.totalorder %s31, 3
      %p624 = pnand %p622, %p623
      %p625 = pneg %p624
      // Predicated region
      $region73: #{tpu_custom_call.1} parent=5 // pred_check
        _
      $region74: #{tpu_custom_call.1} parent=5 // pred_check_branch
        %627 = sbr.rel (%p624) target = $region76
      $region75: #{tpu_custom_call.1} parent=5 // pred_region
        %s628 = ssub.s32 %s31, 1
        // Predicated region
        $region77: #{tpu_custom_call.1} parent=75 // pred_check
          %p629 = pneg %p69
        $region78: #{tpu_custom_call.1} parent=75 // pred_check_branch
          %631 = sbr.rel (%p629) target = $region80
        $region79: #{tpu_custom_call.1} parent=75 // pred_region
          %632 = dma.done [#allocation3], 1024
        $region80: #{tpu_custom_call.1} parent=75 // pred_fallthru
          _
        %s633 = sand.u32 %s36, 1
        %s634 = scalar_lea.sflag [#allocation6], %s633
        %s635 = sand.u32 %s129, 1
        %s636 = scalar_lea.vmem [#allocation5], %s635
        // Predicated region
        $region81: #{tpu_custom_call.1} parent=75 // pred_check
          %p637 = pneg %p142
        $region82: #{tpu_custom_call.1} parent=75 // pred_check_branch
          %639 = sbr.rel (%p637) target = $region84
        $region83: #{tpu_custom_call.1} parent=75 // pred_region
          %640 = dma.done %s634, 16
        $region84: #{tpu_custom_call.1} parent=75 // pred_fallthru
          _
        %s641 = sand.u32 %s36, 1
        %s642 = scalar_lea.sflag [#allocation6], %s641
        %s643 = sand.u32 %s155, 1
        %s644 = smul.addr %s643, 192
        %s645 = scalar_lea.vmem [#allocation7], %s644
        // Predicated region
        $region85: #{tpu_custom_call.1} parent=75 // pred_check
          %p646 = pneg %p168
        $region86: #{tpu_custom_call.1} parent=75 // pred_check_branch
          %648 = sbr.rel (%p646) target = $region88
        $region87: #{tpu_custom_call.1} parent=75 // pred_region
          %649 = dma.done %s642, 3072
        $region88: #{tpu_custom_call.1} parent=75 // pred_fallthru
          _
        %s650 = sand.u32 %s36, 1
        %s651 = scalar_lea.sflag [#allocation9], %s650
        %s652 = sand.u32 %s181, 1
        %s653 = smul.addr %s652, 3
        %s654 = scalar_lea.vmem [#allocation8], %s653
        // Predicated region
        $region89: #{tpu_custom_call.1} parent=75 // pred_check
          %p655 = pneg %p194
        $region90: #{tpu_custom_call.1} parent=75 // pred_check_branch
          %657 = sbr.rel (%p655) target = $region92
        $region91: #{tpu_custom_call.1} parent=75 // pred_region
          %658 = dma.done %s651, 48
        $region92: #{tpu_custom_call.1} parent=75 // pred_fallthru
          _
        %s659 = sand.u32 %s36, 1
        %s660 = scalar_lea.sflag [#allocation9], %s659
        %s661 = sand.u32 %s233, 1
        %s662 = scalar_lea.vmem [#allocation10], %s661
        // Predicated region
        $region93: #{tpu_custom_call.1} parent=75 // pred_check
          %p663 = pneg %p246
        $region94: #{tpu_custom_call.1} parent=75 // pred_check_branch
          %665 = sbr.rel (%p663) target = $region96
        $region95: #{tpu_custom_call.1} parent=75 // pred_region
          %666 = dma.done %s660, 16
        $region96: #{tpu_custom_call.1} parent=75 // pred_fallthru
          _
        %s667 = sand.u32 %s36, 1
        %s668 = scalar_lea.sflag [#allocation12], %s667
        %s669 = sand.u32 %s311, 1
        %s670 = smul.addr %s669, 256
        %s671 = scalar_lea.vmem [#allocation11], %s670
        // Predicated region
        $region97: #{tpu_custom_call.1} parent=75 // pred_check
          %p672 = pneg %p324
        $region98: #{tpu_custom_call.1} parent=75 // pred_check_branch
          %674 = sbr.rel (%p672) target = $region100
        $region99: #{tpu_custom_call.1} parent=75 // pred_region
          %675 = dma.done %s668, 4096
        $region100: #{tpu_custom_call.1} parent=75 // pred_fallthru
          _
        %s676 = sand.u32 %s36, 1
        %s677 = scalar_lea.sflag [#allocation12], %s676
        %s678 = sand.u32 %s363, 1
        %s679 = smul.addr %s678, 256
        %s680 = scalar_lea.vmem [#allocation13], %s679
        // Predicated region
        $region101: #{tpu_custom_call.1} parent=75 // pred_check
          %p681 = pneg %p376
        $region102: #{tpu_custom_call.1} parent=75 // pred_check_branch
          %683 = sbr.rel (%p681) target = $region104
        $region103: #{tpu_custom_call.1} parent=75 // pred_region
          %684 = dma.done %s677, 4096
        $region104: #{tpu_custom_call.1} parent=75 // pred_fallthru
          _
        %p685 = pneg %p69
        %p686 = pneg %p66
        %p687 = pneg %p90
        %p688 = pneg %p87
        %p689 = scmp.lt.s32.totalorder %s41, 1
        %s690 = scalar_select %p689, %s41, 1
        %s691 = scalar_lea.vmem %s2, %s690
        %p692 = pneg %p116
        %p693 = pneg %p113
        %s694 = sand.u32 %s36, 1
        %s695 = scalar_lea.sflag [#allocation6], %s694
        %s696 = sand.u32 %s129, 1
        %s697 = scalar_lea.vmem [#allocation5], %s696
        %p698 = pneg %p142
        %p699 = pneg %p139
        %s700 = sand.u32 %s36, 1
        %s701 = scalar_lea.sflag [#allocation6], %s700
        %s702 = sand.u32 %s155, 1
        %s703 = smul.addr %s702, 192
        %s704 = scalar_lea.vmem [#allocation7], %s703
        %p705 = pneg %p168
        %p706 = pneg %p165
        %s707 = sand.u32 %s36, 1
        %s708 = scalar_lea.sflag [#allocation9], %s707
        %s709 = sand.u32 %s181, 1
        %s710 = smul.addr %s709, 3
        %s711 = scalar_lea.vmem [#allocation8], %s710
        %p712 = pneg %p194
        %p713 = pneg %p191
        %p714 = scmp.lt.s32.totalorder %s41, 1
        %s715 = scalar_select %p714, %s41, 1
        %s716 = smul.addr %s715, 16
        %s717 = smul.addr %s716, 4
        %s718 = scalar_lea.vmem %s6, %s717
        %p719 = pneg %p220
        %p720 = pneg %p217
        %s721 = sand.u32 %s36, 1
        %s722 = scalar_lea.sflag [#allocation9], %s721
        %s723 = sand.u32 %s233, 1
        %s724 = scalar_lea.vmem [#allocation10], %s723
        %p725 = pneg %p246
        %p726 = pneg %p243
        %p727 = scmp.lt.s32.totalorder %s41, 1
        %s728 = scalar_select %p727, %s41, 1
        %s729 = scalar_lea.vmem %s8, %s728
        %p730 = pneg %p272
        %p731 = pneg %p269
        %p732 = scmp.lt.s32.totalorder %s41, 1
        %s733 = scalar_select %p732, %s41, 1
        %s734 = scalar_lea.vmem %s9, %s733
        %p735 = pneg %p298
        %p736 = pneg %p295
        %s737 = sand.u32 %s36, 1
        %s738 = scalar_lea.sflag [#allocation12], %s737
        %s739 = sand.u32 %s311, 1
        %s740 = smul.addr %s739, 256
        %s741 = scalar_lea.vmem [#allocation11], %s740
        %p742 = pneg %p324
        %p743 = pneg %p321
        %p744 = scmp.lt.s32.totalorder %s41, 1
        %s745 = scalar_select %p744, %s41, 1
        %s746 = smul.addr %s745, 4
        %s747 = scalar_lea.vmem %s11, %s746
        %p748 = pneg %p350
        %p749 = pneg %p347
        %s750 = sand.u32 %s36, 1
        %s751 = scalar_lea.sflag [#allocation12], %s750
        %s752 = sand.u32 %s363, 1
        %s753 = smul.addr %s752, 256
        %s754 = scalar_lea.vmem [#allocation13], %s753
        %p755 = pneg %p376
        %p756 = pneg %p373
        %p757 = scmp.lt.s32.totalorder %s41, 1
        %s758 = scalar_select %p757, %s41, 1
        %s759 = scalar_lea.vmem %s13, %s758
        %p760 = pneg %p402
        %p761 = pneg %p399
        %p762 = pneg %p428
        %p763 = pneg %p425
        %s764 = smul.u32 4, %s40
        %p765 = scmp.lt.s32.totalorder %s41, 1
        %s766 = scalar_select %p765, %s41, 1
        %s767 = scalar_lea.vmem %s2, %s766
        %p768 = scmp.lt.s32.totalorder %s41, 1
        %s769 = scalar_select %p768, %s41, 1
        %s770 = smul.addr %s769, 16
        %s771 = smul.addr %s770, 4
        %s772 = scalar_lea.vmem %s6, %s771
        %p773 = scmp.lt.s32.totalorder %s41, 1
        %s774 = scalar_select %p773, %s41, 1
        %s775 = scalar_lea.vmem %s8, %s774
        %p776 = scmp.lt.s32.totalorder %s41, 1
        %s777 = scalar_select %p776, %s41, 1
        %s778 = scalar_lea.vmem %s9, %s777
        %p779 = scmp.lt.s32.totalorder %s41, 1
        %s780 = scalar_select %p779, %s41, 1
        %s781 = smul.addr %s780, 4
        %s782 = scalar_lea.vmem %s11, %s781
        %p783 = scmp.lt.s32.totalorder %s41, 1
        %s784 = scalar_select %p783, %s41, 1
        %s785 = scalar_lea.vmem %s13, %s784
        %s786 = smul.u32 4, %s40
        %p790 = scmp.eq.s32.totalorder %s41, 0
        // Predicated region
        $region105: #{tpu_custom_call.1} parent=75 // pred_check
          %p791 = pneg %p790
        $region106: #{tpu_custom_call.1} parent=75 // pred_check_branch
          %793 = sbr.rel (%p791) target = $region108
        $region107: #{tpu_custom_call.1} parent=75 // pred_region
          %v794 = vld [vmem:[#allocation2] sm:$0xff]
          %v795 = vld [vmem:[#allocation2 + $0x8] sm:$0xff]
          %v796 = vld [vmem:[#allocation2 + $0x10] sm:$0xff]
          %v797 = vld [vmem:[#allocation2 + $0x18] sm:$0xff]
          %v798 = vld [vmem:[#allocation2 + $0x20] sm:$0xff]
          %v799 = vld [vmem:[#allocation2 + $0x28] sm:$0xff]
          %v800 = vld [vmem:[#allocation2 + $0x30] sm:$0xff]
          %v801 = vld [vmem:[#allocation2 + $0x38] sm:$0xff]
          %802 = vst [vmem:[#allocation14] sm:$0xff] %v794
          %803 = vst [vmem:[#allocation14 + $0x8] sm:$0xff] %v795
          %804 = vst [vmem:[#allocation14 + $0x10] sm:$0xff] %v796
          %805 = vst [vmem:[#allocation14 + $0x18] sm:$0xff] %v797
          %806 = vst [vmem:[#allocation14 + $0x20] sm:$0xff] %v798
          %807 = vst [vmem:[#allocation14 + $0x28] sm:$0xff] %v799
          %808 = vst [vmem:[#allocation14 + $0x30] sm:$0xff] %v800
          %809 = vst [vmem:[#allocation14 + $0x38] sm:$0xff] %v801
        $region108: #{tpu_custom_call.1} parent=75 // pred_fallthru
          _
        %v810 = vld [vmem:[#allocation14] sm:$0xff]
        %v811 = vld [vmem:[#allocation14 + $0x8] sm:$0xff]
        %v812 = vld [vmem:[#allocation14 + $0x10] sm:$0xff]
        %v813 = vld [vmem:[#allocation14 + $0x18] sm:$0xff]
        %v814 = vld [vmem:[#allocation14 + $0x20] sm:$0xff]
        %v815 = vld [vmem:[#allocation14 + $0x28] sm:$0xff]
        %v816 = vld [vmem:[#allocation14 + $0x30] sm:$0xff]
        %v817 = vld [vmem:[#allocation14 + $0x38] sm:$0xff]
        %v818 = vld [vmem:[%s767] sm:$0x1]
        %v819 = vld [vmem:[%s636] sm:$0x1]
        %820 = vadd.xlane.f32.xlu0 %v810
        %v821 = vpop.xlane.xlu0 %820
        %822 = vadd.xlane.f32.xlu0 %v811
        %v823 = vpop.xlane.xlu0 %822
        %824 = vadd.xlane.f32.xlu0 %v812
        %v825 = vpop.xlane.xlu0 %824
        %826 = vadd.xlane.f32.xlu0 %v813
        %v827 = vpop.xlane.xlu0 %826
        %828 = vadd.xlane.f32.xlu0 %v814
        %v829 = vpop.xlane.xlu0 %828
        %830 = vadd.xlane.f32.xlu0 %v815
        %v831 = vpop.xlane.xlu0 %830
        %832 = vadd.xlane.f32.xlu0 %v816
        %v833 = vpop.xlane.xlu0 %832
        %834 = vadd.xlane.f32.xlu0 %v817
        %v835 = vpop.xlane.xlu0 %834
        %v836 = vrcp.pop 128.0
        %v837 = vmul.f32 %v821, %v836
        %v838 = vmul.f32 %v823, %v836
        %v839 = vmul.f32 %v825, %v836
        %v840 = vmul.f32 %v827, %v836
        %v841 = vmul.f32 %v829, %v836
        %v842 = vmul.f32 %v831, %v836
        %v843 = vmul.f32 %v833, %v836
        %v844 = vmul.f32 %v835, %v836
        %v845 = vsub.f32 %v810, %v837
        %v846 = vsub.f32 %v811, %v838
        %v847 = vsub.f32 %v812, %v839
        %v848 = vsub.f32 %v813, %v840
        %v849 = vsub.f32 %v814, %v841
        %v850 = vsub.f32 %v815, %v842
        %v851 = vsub.f32 %v816, %v843
        %v852 = vsub.f32 %v817, %v844
        %v853 = vmul.f32 %v845, %v845
        %v854 = vmul.f32 %v846, %v846
        %v855 = vmul.f32 %v847, %v847
        %v856 = vmul.f32 %v848, %v848
        %v857 = vmul.f32 %v849, %v849
        %v858 = vmul.f32 %v850, %v850
        %v859 = vmul.f32 %v851, %v851
        %v860 = vmul.f32 %v852, %v852
        %861 = vadd.xlane.f32.xlu0 %v853
        %v862 = vpop.xlane.xlu0 %861
        %863 = vadd.xlane.f32.xlu0 %v854
        %v864 = vpop.xlane.xlu0 %863
        %865 = vadd.xlane.f32.xlu0 %v855
        %v866 = vpop.xlane.xlu0 %865
        %867 = vadd.xlane.f32.xlu0 %v856
        %v868 = vpop.xlane.xlu0 %867
        %869 = vadd.xlane.f32.xlu0 %v857
        %v870 = vpop.xlane.xlu0 %869
        %871 = vadd.xlane.f32.xlu0 %v858
        %v872 = vpop.xlane.xlu0 %871
        %873 = vadd.xlane.f32.xlu0 %v859
        %v874 = vpop.xlane.xlu0 %873
        %875 = vadd.xlane.f32.xlu0 %v860
        %v876 = vpop.xlane.xlu0 %875
        %v877 = vmul.f32 %v862, %v836
        %v878 = vmul.f32 %v864, %v836
        %v879 = vmul.f32 %v866, %v836
        %v880 = vmul.f32 %v868, %v836
        %v881 = vmul.f32 %v870, %v836
        %v882 = vmul.f32 %v872, %v836
        %v883 = vmul.f32 %v874, %v836
        %v884 = vmul.f32 %v876, %v836
        %v885 = vadd.f32 %v877, 1e-05
        %v886 = vadd.f32 %v878, 1e-05
        %v887 = vadd.f32 %v879, 1e-05
        %v888 = vadd.f32 %v880, 1e-05
        %v889 = vadd.f32 %v881, 1e-05
        %v890 = vadd.f32 %v882, 1e-05
        %v891 = vadd.f32 %v883, 1e-05
        %v892 = vadd.f32 %v884, 1e-05
        %v893 = vrsqrt.pop %v885
        %v894 = vrsqrt.pop %v886
        %v895 = vrsqrt.pop %v887
        %v896 = vrsqrt.pop %v888
        %v897 = vrsqrt.pop %v889
        %v898 = vrsqrt.pop %v890
        %v899 = vrsqrt.pop %v891
        %v900 = vrsqrt.pop %v892
        %v901 = vmul.f32 %v845, %v893
        %v902 = vmul.f32 %v846, %v894
        %v903 = vmul.f32 %v847, %v895
        %v904 = vmul.f32 %v848, %v896
        %v905 = vmul.f32 %v849, %v897
        %v906 = vmul.f32 %v850, %v898
        %v907 = vmul.f32 %v851, %v899
        %v908 = vmul.f32 %v852, %v900
        %v910 = vlaneseq
        %v911 = vshrl.u32 %v910, 7
        %v912 = vsub.s32 0, %v911
        %v913 = vrot.slane %v818, %v912
        %v915 = vmul.f32 %v901, %v913
        %v916 = vmul.f32 %v902, %v913
        %v917 = vmul.f32 %v903, %v913
        %v918 = vmul.f32 %v904, %v913
        %v919 = vmul.f32 %v905, %v913
        %v920 = vmul.f32 %v906, %v913
        %v921 = vmul.f32 %v907, %v913
        %v922 = vmul.f32 %v908, %v913
        %v924 = vlaneseq
        %v925 = vshrl.u32 %v924, 7
        %v926 = vsub.s32 0, %v925
        %v927 = vrot.slane %v819, %v926
        %v929 = vadd.f32 %v915, %v927
        %v930 = vadd.f32 %v916, %v927
        %v931 = vadd.f32 %v917, %v927
        %v932 = vadd.f32 %v918, %v927
        %v933 = vadd.f32 %v919, %v927
        %v934 = vadd.f32 %v920, %v927
        %v935 = vadd.f32 %v921, %v927
        %v936 = vadd.f32 %v922, %v927
        %v937 = vpack.c.bf16 %v930, %v929
        %v938 = vpack.c.bf16 %v932, %v931
        %v939 = vpack.c.bf16 %v934, %v933
        %v940 = vpack.c.bf16 %v936, %v935
        %v941 = vld [vmem:[%s645] sm:$0xff]
        %v942 = vld [vmem:[%s645 + $0x8] sm:$0xf]
        %v943 = vld [vmem:[%s645 + $0xc] sm:$0xff]
        %v944 = vld [vmem:[%s645 + $0x14] sm:$0xf]
        %v945 = vld [vmem:[%s645 + $0x18] sm:$0xff]
        %v946 = vld [vmem:[%s645 + $0x20] sm:$0xf]
        %v947 = vld [vmem:[%s645 + $0x24] sm:$0xff]
        %v948 = vld [vmem:[%s645 + $0x2c] sm:$0xf]
        %v949 = vld [vmem:[%s645 + $0x30] sm:$0xff]
        %v950 = vld [vmem:[%s645 + $0x38] sm:$0xf]
        %v951 = vld [vmem:[%s645 + $0x3c] sm:$0xff]
        %v952 = vld [vmem:[%s645 + $0x44] sm:$0xf]
        %v953 = vld [vmem:[%s645 + $0x48] sm:$0xff]
        %v954 = vld [vmem:[%s645 + $0x50] sm:$0xf]
        %v955 = vld [vmem:[%s645 + $0x54] sm:$0xff]
        %v956 = vld [vmem:[%s645 + $0x5c] sm:$0xf]
        %v957 = vld [vmem:[%s645 + $0x60] sm:$0xff]
        %v958 = vld [vmem:[%s645 + $0x68] sm:$0xf]
        %v959 = vld [vmem:[%s645 + $0x6c] sm:$0xff]
        %v960 = vld [vmem:[%s645 + $0x74] sm:$0xf]
        %v961 = vld [vmem:[%s645 + $0x78] sm:$0xff]
        %v962 = vld [vmem:[%s645 + $0x80] sm:$0xf]
        %v963 = vld [vmem:[%s645 + $0x84] sm:$0xff]
        %v964 = vld [vmem:[%s645 + $0x8c] sm:$0xf]
        %v965 = vld [vmem:[%s645 + $0x90] sm:$0xff]
        %v966 = vld [vmem:[%s645 + $0x98] sm:$0xf]
        %v967 = vld [vmem:[%s645 + $0x9c] sm:$0xff]
        %v968 = vld [vmem:[%s645 + $0xa4] sm:$0xf]
        %v969 = vld [vmem:[%s645 + $0xa8] sm:$0xff]
        %v970 = vld [vmem:[%s645 + $0xb0] sm:$0xf]
        %v971 = vld [vmem:[%s645 + $0xb4] sm:$0xff]
        %v972 = vld [vmem:[%s645 + $0xbc] sm:$0xf]
        %v973 = vld [vmem:[%s654] sm:$0x7]
        %v975 = vlaneseq
        %v976 = vshrl.u32 %v975, 7
        %v977 = vsub.s32 0, %v976
        %v978 = vrot.slane %v973, %v977
        %v979 = vlaneseq
        %v980 = vshrl.u32 %v979, 7
        %v981 = vsub.s32 1, %v980
        %v982 = vrot.slane %v973, %v981
        %v983 = vlaneseq
        %v984 = vshrl.u32 %v983, 7
        %v985 = vsub.s32 2, %v984
        %v986 = vrot.slane %v973, %v985
        %v1022 = vunpack.c.l.b16 %v941
        %v1023 = vunpack.c.h.b16 %v941
        %v1024 = vunpack.c.l.b16 %v942
        %v1025 = vunpack.c.l.b16 %v943
        %v1026 = vunpack.c.h.b16 %v943
        %v1027 = vunpack.c.l.b16 %v944
        %v1028 = vunpack.c.l.b16 %v945
        %v1029 = vunpack.c.h.b16 %v945
        %v1030 = vunpack.c.l.b16 %v946
        %v1031 = vunpack.c.l.b16 %v947
        %v1032 = vunpack.c.h.b16 %v947
        %v1033 = vunpack.c.l.b16 %v948
        %v1034 = vunpack.c.l.b16 %v949
        %v1035 = vunpack.c.h.b16 %v949
        %v1036 = vunpack.c.l.b16 %v950
        %v1037 = vunpack.c.l.b16 %v951
        %v1038 = vunpack.c.h.b16 %v951
        %v1039 = vunpack.c.l.b16 %v952
        %v1040 = vunpack.c.l.b16 %v953
        %v1041 = vunpack.c.h.b16 %v953
        %v1042 = vunpack.c.l.b16 %v954
        %v1043 = vunpack.c.l.b16 %v955
        %v1044 = vunpack.c.h.b16 %v955
        %v1045 = vunpack.c.l.b16 %v956
        %v1046 = vunpack.c.l.b16 %v957
        %v1047 = vunpack.c.h.b16 %v957
        %v1048 = vunpack.c.l.b16 %v958
        %v1049 = vunpack.c.l.b16 %v959
        %v1050 = vunpack.c.h.b16 %v959
        %v1051 = vunpack.c.l.b16 %v960
        %v1052 = vunpack.c.l.b16 %v961
        %v1053 = vunpack.c.h.b16 %v961
        %v1054 = vunpack.c.l.b16 %v962
        %v1055 = vunpack.c.l.b16 %v963
        %v1056 = vunpack.c.h.b16 %v963
        %v1057 = vunpack.c.l.b16 %v964
        %v1058 = vunpack.c.l.b16 %v965
        %v1059 = vunpack.c.h.b16 %v965
        %v1060 = vunpack.c.l.b16 %v966
        %v1061 = vunpack.c.l.b16 %v967
        %v1062 = vunpack.c.h.b16 %v967
        %v1063 = vunpack.c.l.b16 %v968
        %v1064 = vunpack.c.l.b16 %v969
        %v1065 = vunpack.c.h.b16 %v969
        %v1066 = vunpack.c.l.b16 %v970
        %v1067 = vunpack.c.l.b16 %v971
        %v1068 = vunpack.c.h.b16 %v971
        %v1069 = vunpack.c.l.b16 %v972
        %v1070 = vpack.c.b16 %v1025, %v1022
        %v1071 = vpack.c.b16 %v1026, %v1023
        %v1072 = vpack.c.b16 %v1027, %v1024
        %v1073 = vpack.c.b16 %v1031, %v1028
        %v1074 = vpack.c.b16 %v1032, %v1029
        %v1075 = vpack.c.b16 %v1033, %v1030
        %v1076 = vpack.c.b16 %v1037, %v1034
        %v1077 = vpack.c.b16 %v1038, %v1035
        %v1078 = vpack.c.b16 %v1039, %v1036
        %v1079 = vpack.c.b16 %v1043, %v1040
        %v1080 = vpack.c.b16 %v1044, %v1041
        %v1081 = vpack.c.b16 %v1045, %v1042
        %v1082 = vpack.c.b16 %v1049, %v1046
        %v1083 = vpack.c.b16 %v1050, %v1047
        %v1084 = vpack.c.b16 %v1051, %v1048
        %v1085 = vpack.c.b16 %v1055, %v1052
        %v1086 = vpack.c.b16 %v1056, %v1053
        %v1087 = vpack.c.b16 %v1057, %v1054
        %v1088 = vpack.c.b16 %v1061, %v1058
        %v1089 = vpack.c.b16 %v1062, %v1059
        %v1090 = vpack.c.b16 %v1063, %v1060
        %v1091 = vpack.c.b16 %v1067, %v1064
        %v1092 = vpack.c.b16 %v1068, %v1065
        %v1093 = vpack.c.b16 %v1069, %v1066
        %1118 = vmatprep.subr.bf16.mxu0 %v1071
        %1119 = vmatpush1.bf16.msra.mxu0 %v1070
        %1120 = vmatprep.subr.bf16.mxu0 %v1074
        %1121 = vmatpush1.bf16.msra.mxu0 %v1073
        %1122 = vmatprep.subr.bf16.mxu0 %v1077
        %1123 = vmatpush1.bf16.msra.mxu0 %v1076
        %1124 = vmatprep.subr.bf16.mxu0 %v1080
        %1125 = vmatpush1.bf16.msra.mxu0 %v1079
        %1126 = vmatprep.subr.bf16.mxu0 %v1083
        %1127 = vmatpush1.bf16.msra.mxu0 %v1082
        %1128 = vmatprep.subr.bf16.mxu0 %v1086
        %1129 = vmatpush1.bf16.msra.mxu0 %v1085
        %1130 = vmatprep.subr.bf16.mxu0 %v1089
        %1131 = vmatpush1.bf16.msra.mxu0 %v1088
        %1132 = vmatprep.subr.bf16.mxu0 %v1092
        %1133 = vmatpush1.bf16.msra.mxu0 %v1091
        %1134 = vmatprep.subr.bf16.mxu0 0
        %1135 = vmatpush1.bf16.msra.mxu0 0
        %1136 = vmatprep.subr.bf16.mxu0 0
        %1137 = vmatpush1.bf16.msra.mxu0 0
        %1138 = vmatprep.subr.bf16.mxu0 0
        %1139 = vmatpush1.bf16.msra.mxu0 0
        %1140 = vmatprep.subr.bf16.mxu0 0
        %1141 = vmatpush1.bf16.msra.mxu0 0
        %1142 = vmatprep.subr.bf16.mxu0 0
        %1143 = vmatpush1.bf16.msra.mxu0 0
        %1144 = vmatprep.subr.bf16.mxu0 0
        %1145 = vmatpush1.bf16.msra.mxu0 0
        %1146 = vmatprep.subr.bf16.mxu0 0
        %1147 = vmatpush1.bf16.msra.mxu0 0
        %1148 = vmatprep.subr.bf16.mxu0 0
        %1149 = vmatpush1.bf16.msra.mxu0 0
        %1150 = vmatprep.mubr.bf16.mxu0 0
        %1151 = vmatmul.mubr.bf16.gmra.mrb[0].mxu0 %v937
        %v1152 = vpop.f32.mrb[0].mxu0
        %v1153 = vadd.f32 %v978, %v1152
        %v1154 = vpop.f32.mrb[0].mxu0
        %v1155 = vadd.f32 %v982, %v1154
        %v1156 = vpop.f32.mrb[0].mxu0
        %v1157 = vadd.f32 %v978, %v1156
        %v1158 = vpop.f32.mrb[0].mxu0
        %v1159 = vadd.f32 %v982, %v1158
        %1160 = vmatprep.mubr.bf16.mxu0 0
        %1161 = vmatmul.mubr.bf16.gmra.mrb[0].mxu0 %v938
        %v1162 = vpop.f32.mrb[0].mxu0
        %v1163 = vadd.f32 %v978, %v1162
        %v1164 = vpop.f32.mrb[0].mxu0
        %v1165 = vadd.f32 %v982, %v1164
        %v1166 = vpop.f32.mrb[0].mxu0
        %v1167 = vadd.f32 %v978, %v1166
        %v1168 = vpop.f32.mrb[0].mxu0
        %v1169 = vadd.f32 %v982, %v1168
        %1170 = vmatprep.mubr.bf16.mxu0 0
        %1171 = vmatmul.mubr.bf16.gmra.mrb[0].mxu0 %v939
        %v1172 = vpop.f32.mrb[0].mxu0
        %v1173 = vadd.f32 %v978, %v1172
        %v1174 = vpop.f32.mrb[0].mxu0
        %v1175 = vadd.f32 %v982, %v1174
        %v1176 = vpop.f32.mrb[0].mxu0
        %v1177 = vadd.f32 %v978, %v1176
        %v1178 = vpop.f32.mrb[0].mxu0
        %v1179 = vadd.f32 %v982, %v1178
        %1180 = vmatprep.mubr.bf16.mxu0 0
        %1181 = vmatmul.mubr.bf16.gmra.mrb[0].mxu0 %v940
        %v1182 = vpop.f32.mrb[0].mxu0
        %v1183 = vadd.f32 %v978, %v1182
        %v1184 = vpop.f32.mrb[0].mxu0
        %v1185 = vadd.f32 %v982, %v1184
        %v1186 = vpop.f32.mrb[0].mxu0
        %v1187 = vadd.f32 %v978, %v1186
        %v1188 = vpop.f32.mrb[0].mxu0
        %v1189 = vadd.f32 %v982, %v1188
        %1190 = vdwg.mxu0
        %1191 = vmatprep.subr.bf16.mxu0 0
        %1192 = vmatpush1.bf16.msra.mxu0 %v1072
        %1193 = vmatprep.subr.bf16.mxu0 0
        %1194 = vmatpush1.bf16.msra.mxu0 %v1075
        %1195 = vmatprep.subr.bf16.mxu0 0
        %1196 = vmatpush1.bf16.msra.mxu0 %v1078
        %1197 = vmatprep.subr.bf16.mxu0 0
        %1198 = vmatpush1.bf16.msra.mxu0 %v1081
        %1199 = vmatprep.subr.bf16.mxu0 0
        %1200 = vmatpush1.bf16.msra.mxu0 %v1084
        %1201 = vmatprep.subr.bf16.mxu0 0
        %1202 = vmatpush1.bf16.msra.mxu0 %v1087
        %1203 = vmatprep.subr.bf16.mxu0 0
        %1204 = vmatpush1.bf16.msra.mxu0 %v1090
        %1205 = vmatprep.subr.bf16.mxu0 0
        %1206 = vmatpush1.bf16.msra.mxu0 %v1093
        %1207 = vmatprep.subr.bf16.mxu0 0
        %1208 = vmatpush1.bf16.msra.mxu0 0
        %1209 = vmatprep.subr.bf16.mxu0 0
        %1210 = vmatpush1.bf16.msra.mxu0 0
        %1211 = vmatprep.subr.bf16.mxu0 0
        %1212 = vmatpush1.bf16.msra.mxu0 0
        %1213 = vmatprep.subr.bf16.mxu0 0
        %1214 = vmatpush1.bf16.msra.mxu0 0
        %1215 = vmatprep.subr.bf16.mxu0 0
        %1216 = vmatpush1.bf16.msra.mxu0 0
        %1217 = vmatprep.subr.bf16.mxu0 0
        %1218 = vmatpush1.bf16.msra.mxu0 0
        %1219 = vmatprep.subr.bf16.mxu0 0
        %1220 = vmatpush1.bf16.msra.mxu0 0
        %1221 = vmatprep.subr.bf16.mxu0 0
        %1222 = vmatpush1.bf16.msra.mxu0 0
        %1223 = vmatprep.mubr.bf16.mxu0 0
        %1224 = vmatmul.mubr.bf16.gmra.mrb[0].mxu0 %v937
        %v1225 = vpop.f32.mrb[0].mxu0
        %v1226 = vadd.f32 %v986, %v1225
        %v1227 = vpop.f32.mrb[0].mxu0
        %v1228 = vpop.f32.mrb[0].mxu0
        %v1229 = vadd.f32 %v986, %v1228
        %v1230 = vpop.f32.mrb[0].mxu0
        %1231 = vmatprep.mubr.bf16.mxu0 0
        %1232 = vmatmul.mubr.bf16.gmra.mrb[0].mxu0 %v938
        %v1233 = vpop.f32.mrb[0].mxu0
        %v1234 = vadd.f32 %v986, %v1233
        %v1235 = vpop.f32.mrb[0].mxu0
        %v1236 = vpop.f32.mrb[0].mxu0
        %v1237 = vadd.f32 %v986, %v1236
        %v1238 = vpop.f32.mrb[0].mxu0
        %1239 = vmatprep.mubr.bf16.mxu0 0
        %1240 = vmatmul.mubr.bf16.gmra.mrb[0].mxu0 %v939
        %v1241 = vpop.f32.mrb[0].mxu0
        %v1242 = vadd.f32 %v986, %v1241
        %v1243 = vpop.f32.mrb[0].mxu0
        %v1244 = vpop.f32.mrb[0].mxu0
        %v1245 = vadd.f32 %v986, %v1244
        %v1246 = vpop.f32.mrb[0].mxu0
        %1247 = vmatprep.mubr.bf16.mxu0 0
        %1248 = vmatmul.mubr.bf16.gmra.mrb[0].mxu0 %v940
        %v1249 = vpop.f32.mrb[0].mxu0
        %v1250 = vadd.f32 %v986, %v1249
        %v1251 = vpop.f32.mrb[0].mxu0
        %v1252 = vpop.f32.mrb[0].mxu0
        %v1253 = vadd.f32 %v986, %v1252
        %v1254 = vpop.f32.mrb[0].mxu0
        %1255 = vdwg.mxu0
        %v1256 = vpack.c.bf16 %v1157, %v1153
        %v1257 = vpack.c.bf16 %v1159, %v1155
        %v1258 = vpack.c.bf16 %v1229, %v1226
        %v1259 = vpack.c.bf16 %v1167, %v1163
        %v1260 = vpack.c.bf16 %v1169, %v1165
        %v1261 = vpack.c.bf16 %v1237, %v1234
        %v1262 = vpack.c.bf16 %v1177, %v1173
        %v1263 = vpack.c.bf16 %v1179, %v1175
        %v1264 = vpack.c.bf16 %v1245, %v1242
        %v1265 = vpack.c.bf16 %v1187, %v1183
        %v1266 = vpack.c.bf16 %v1189, %v1185
        %v1267 = vpack.c.bf16 %v1253, %v1250
        %1272 = vrot.lane.b32.xlu0 %v1256, 64
        %v1273 = vpop.permute.xlu0 %1272
        %1274 = vrot.lane.b32.xlu0 %v1259, 64
        %v1275 = vpop.permute.xlu0 %1274
        %1276 = vrot.lane.b32.xlu0 %v1262, 64
        %v1277 = vpop.permute.xlu0 %1276
        %1278 = vrot.lane.b32.xlu0 %v1265, 64
        %v1279 = vpop.permute.xlu0 %1278
        %1284 = vrot.lane.b32.xlu0 %v1257, 64
        %v1285 = vpop.permute.xlu0 %1284
        %1286 = vrot.lane.b32.xlu0 %v1260, 64
        %v1287 = vpop.permute.xlu0 %1286
        %1288 = vrot.lane.b32.xlu0 %v1263, 64
        %v1289 = vpop.permute.xlu0 %1288
        %1290 = vrot.lane.b32.xlu0 %v1266, 64
        %v1291 = vpop.permute.xlu0 %1290
        %1296 = vrot.lane.b32.xlu0 %v1258, 64
        %v1297 = vpop.permute.xlu0 %1296
        %1298 = vrot.lane.b32.xlu0 %v1261, 64
        %v1299 = vpop.permute.xlu0 %1298
        %1300 = vrot.lane.b32.xlu0 %v1264, 64
        %v1301 = vpop.permute.xlu0 %1300
        %1302 = vrot.lane.b32.xlu0 %v1267, 64
        %v1303 = vpop.permute.xlu0 %1302
        %v1308 = vld [vmem:[%s1] sm:$0xff]
        %v1309 = vld [vmem:[%s1 + $0x8] sm:$0xff]
        %vm1310 = vcmask 523264
        %v1312 = vsel %vm1310, %v1256, 0
        %v1315 = vsel %vm1310, %v1257, 0
        %1317 = vmatprep.subr.bf16.mxu0 0
        %1318 = vmatpush1.bf16.xpose.msra.mxu0 %v1315
        %1319 = vmatprep.subr.bf16.mxu0 0
        %1320 = vmatpush1.bf16.xpose.msra.mxu0 0
        %1321 = vmatprep.subr.bf16.mxu0 0
        %1322 = vmatpush1.bf16.xpose.msra.mxu0 0
        %1323 = vmatprep.subr.bf16.mxu0 0
        %1324 = vmatpush1.bf16.xpose.msra.mxu0 0
        %1325 = vmatprep.subr.bf16.mxu0 0
        %1326 = vmatpush1.bf16.xpose.msra.mxu0 0
        %1327 = vmatprep.subr.bf16.mxu0 0
        %1328 = vmatpush1.bf16.xpose.msra.mxu0 0
        %1329 = vmatprep.subr.bf16.mxu0 0
        %1330 = vmatpush1.bf16.xpose.msra.mxu0 0
        %1331 = vmatprep.subr.bf16.mxu0 0
        %1332 = vmatpush1.bf16.xpose.msra.mxu0 0
        %1333 = vmatprep.subr.bf16.mxu0 0
        %1334 = vmatpush1.bf16.xpose.msra.mxu0 0
        %1335 = vmatprep.subr.bf16.mxu0 0
        %1336 = vmatpush1.bf16.xpose.msra.mxu0 0
        %1337 = vmatprep.subr.bf16.mxu0 0
        %1338 = vmatpush1.bf16.xpose.msra.mxu0 0
        %1339 = vmatprep.subr.bf16.mxu0 0
        %1340 = vmatpush1.bf16.xpose.msra.mxu0 0
        %1341 = vmatprep.subr.bf16.mxu0 0
        %1342 = vmatpush1.bf16.xpose.msra.mxu0 0
        %1343 = vmatprep.subr.bf16.mxu0 0
        %1344 = vmatpush1.bf16.xpose.msra.mxu0 0
        %1345 = vmatprep.subr.bf16.mxu0 0
        %1346 = vmatpush1.bf16.xpose.msra.mxu0 0
        %1347 = vmatprep.subr.bf16.mxu0 0
        %1348 = vmatpush1.bf16.xpose.msra.mxu0 0
        %1349 = vmatprep.mubr.bf16.mxu0 0
        %1350 = vmatmul.mubr.bf16.gmra.mrb[0].mxu0 %v1312
        %v1351 = vpop.f32.mrb[0].mxu0
        %v1352 = vadd.f32 %v1308, %v1351
        %v1353 = vpop.f32.mrb[0].mxu0
        %v1354 = vpop.f32.mrb[0].mxu0
        %v1355 = vadd.f32 %v1309, %v1354
        %v1356 = vpop.f32.mrb[0].mxu0
        %1357 = vdwg.mxu0
        %v1359 = vsel %vm1310, %v1259, 0
        %v1362 = vsel %vm1310, %v1260, 0
        %1364 = vmatprep.subr.bf16.mxu0 0
        %1365 = vmatpush1.bf16.xpose.msra.mxu0 %v1362
        %1366 = vmatprep.subr.bf16.mxu0 0
        %1367 = vmatpush1.bf16.xpose.msra.mxu0 0
        %1368 = vmatprep.subr.bf16.mxu0 0
        %1369 = vmatpush1.bf16.xpose.msra.mxu0 0
        %1370 = vmatprep.subr.bf16.mxu0 0
        %1371 = vmatpush1.bf16.xpose.msra.mxu0 0
        %1372 = vmatprep.subr.bf16.mxu0 0
        %1373 = vmatpush1.bf16.xpose.msra.mxu0 0
        %1374 = vmatprep.subr.bf16.mxu0 0
        %1375 = vmatpush1.bf16.xpose.msra.mxu0 0
        %1376 = vmatprep.subr.bf16.mxu0 0
        %1377 = vmatpush1.bf16.xpose.msra.mxu0 0
        %1378 = vmatprep.subr.bf16.mxu0 0
        %1379 = vmatpush1.bf16.xpose.msra.mxu0 0
        %1380 = vmatprep.subr.bf16.mxu0 0
        %1381 = vmatpush1.bf16.xpose.msra.mxu0 0
        %1382 = vmatprep.subr.bf16.mxu0 0
        %1383 = vmatpush1.bf16.xpose.msra.mxu0 0
        %1384 = vmatprep.subr.bf16.mxu0 0
        %1385 = vmatpush1.bf16.xpose.msra.mxu0 0
        %1386 = vmatprep.subr.bf16.mxu0 0
        %1387 = vmatpush1.bf16.xpose.msra.mxu0 0
        %1388 = vmatprep.subr.bf16.mxu0 0
        %1389 = vmatpush1.bf16.xpose.msra.mxu0 0
        %1390 = vmatprep.subr.bf16.mxu0 0
        %1391 = vmatpush1.bf16.xpose.msra.mxu0 0
        %1392 = vmatprep.subr.bf16.mxu0 0
        %1393 = vmatpush1.bf16.xpose.msra.mxu0 0
        %1394 = vmatprep.subr.bf16.mxu0 0
        %1395 = vmatpush1.bf16.xpose.msra.mxu0 0
        %1396 = vmatprep.mubr.bf16.mxu0 0
        %1397 = vmatmul.mubr.bf16.gmra.mrb[0].mxu0 %v1359
        %v1398 = vpop.f32.mrb[0].mxu0
        %v1399 = vadd.f32 %v1308, %v1398
        %v1400 = vpop.f32.mrb[0].mxu0
        %v1401 = vpop.f32.mrb[0].mxu0
        %v1402 = vadd.f32 %v1309, %v1401
        %v1403 = vpop.f32.mrb[0].mxu0
        %1404 = vdwg.mxu0
        %v1406 = vsel %vm1310, %v1262, 0
        %v1409 = vsel %vm1310, %v1263, 0
        %1411 = vmatprep.subr.bf16.mxu0 0
        %1412 = vmatpush1.bf16.xpose.msra.mxu0 %v1409
        %1413 = vmatprep.subr.bf16.mxu0 0
        %1414 = vmatpush1.bf16.xpose.msra.mxu0 0
        %1415 = vmatprep.subr.bf16.mxu0 0
        %1416 = vmatpush1.bf16.xpose.msra.mxu0 0
        %1417 = vmatprep.subr.bf16.mxu0 0
        %1418 = vmatpush1.bf16.xpose.msra.mxu0 0
        %1419 = vmatprep.subr.bf16.mxu0 0
        %1420 = vmatpush1.bf16.xpose.msra.mxu0 0
        %1421 = vmatprep.subr.bf16.mxu0 0
        %1422 = vmatpush1.bf16.xpose.msra.mxu0 0
        %1423 = vmatprep.subr.bf16.mxu0 0
        %1424 = vmatpush1.bf16.xpose.msra.mxu0 0
        %1425 = vmatprep.subr.bf16.mxu0 0
        %1426 = vmatpush1.bf16.xpose.msra.mxu0 0
        %1427 = vmatprep.subr.bf16.mxu0 0
        %1428 = vmatpush1.bf16.xpose.msra.mxu0 0
        %1429 = vmatprep.subr.bf16.mxu0 0
        %1430 = vmatpush1.bf16.xpose.msra.mxu0 0
        %1431 = vmatprep.subr.bf16.mxu0 0
        %1432 = vmatpush1.bf16.xpose.msra.mxu0 0
        %1433 = vmatprep.subr.bf16.mxu0 0
        %1434 = vmatpush1.bf16.xpose.msra.mxu0 0
        %1435 = vmatprep.subr.bf16.mxu0 0
        %1436 = vmatpush1.bf16.xpose.msra.mxu0 0
        %1437 = vmatprep.subr.bf16.mxu0 0
        %1438 = vmatpush1.bf16.xpose.msra.mxu0 0
        %1439 = vmatprep.subr.bf16.mxu0 0
        %1440 = vmatpush1.bf16.xpose.msra.mxu0 0
        %1441 = vmatprep.subr.bf16.mxu0 0
        %1442 = vmatpush1.bf16.xpose.msra.mxu0 0
        %1443 = vmatprep.mubr.bf16.mxu0 0
        %1444 = vmatmul.mubr.bf16.gmra.mrb[0].mxu0 %v1406
        %v1445 = vpop.f32.mrb[0].mxu0
        %v1446 = vadd.f32 %v1308, %v1445
        %v1447 = vpop.f32.mrb[0].mxu0
        %v1448 = vpop.f32.mrb[0].mxu0
        %v1449 = vadd.f32 %v1309, %v1448
        %v1450 = vpop.f32.mrb[0].mxu0
        %1451 = vdwg.mxu0
        %v1453 = vsel %vm1310, %v1265, 0
        %v1456 = vsel %vm1310, %v1266, 0
        %1458 = vmatprep.subr.bf16.mxu0 0
        %1459 = vmatpush1.bf16.xpose.msra.mxu0 %v1456
        %1460 = vmatprep.subr.bf16.mxu0 0
        %1461 = vmatpush1.bf16.xpose.msra.mxu0 0
        %1462 = vmatprep.subr.bf16.mxu0 0
        %1463 = vmatpush1.bf16.xpose.msra.mxu0 0
        %1464 = vmatprep.subr.bf16.mxu0 0
        %1465 = vmatpush1.bf16.xpose.msra.mxu0 0
        %1466 = vmatprep.subr.bf16.mxu0 0
        %1467 = vmatpush1.bf16.xpose.msra.mxu0 0
        %1468 = vmatprep.subr.bf16.mxu0 0
        %1469 = vmatpush1.bf16.xpose.msra.mxu0 0
        %1470 = vmatprep.subr.bf16.mxu0 0
        %1471 = vmatpush1.bf16.xpose.msra.mxu0 0
        %1472 = vmatprep.subr.bf16.mxu0 0
        %1473 = vmatpush1.bf16.xpose.msra.mxu0 0
        %1474 = vmatprep.subr.bf16.mxu0 0
        %1475 = vmatpush1.bf16.xpose.msra.mxu0 0
        %1476 = vmatprep.subr.bf16.mxu0 0
        %1477 = vmatpush1.bf16.xpose.msra.mxu0 0
        %1478 = vmatprep.subr.bf16.mxu0 0
        %1479 = vmatpush1.bf16.xpose.msra.mxu0 0
        %1480 = vmatprep.subr.bf16.mxu0 0
        %1481 = vmatpush1.bf16.xpose.msra.mxu0 0
        %1482 = vmatprep.subr.bf16.mxu0 0
        %1483 = vmatpush1.bf16.xpose.msra.mxu0 0
        %1484 = vmatprep.subr.bf16.mxu0 0
        %1485 = vmatpush1.bf16.xpose.msra.mxu0 0
        %1486 = vmatprep.subr.bf16.mxu0 0
        %1487 = vmatpush1.bf16.xpose.msra.mxu0 0
        %1488 = vmatprep.subr.bf16.mxu0 0
        %1489 = vmatpush1.bf16.xpose.msra.mxu0 0
        %1490 = vmatprep.mubr.bf16.mxu0 0
        %1491 = vmatmul.mubr.bf16.gmra.mrb[0].mxu0 %v1453
        %v1492 = vpop.f32.mrb[0].mxu0
        %v1493 = vadd.f32 %v1308, %v1492
        %v1494 = vpop.f32.mrb[0].mxu0
        %v1495 = vpop.f32.mrb[0].mxu0
        %v1496 = vadd.f32 %v1309, %v1495
        %v1497 = vpop.f32.mrb[0].mxu0
        %1498 = vdwg.mxu0
        %v1500 = vsel %vm1310, %v1273, 0
        %v1503 = vsel %vm1310, %v1285, 0
        %1505 = vmatprep.subr.bf16.mxu0 0
        %1506 = vmatpush1.bf16.xpose.msra.mxu0 %v1503
        %1507 = vmatprep.subr.bf16.mxu0 0
        %1508 = vmatpush1.bf16.xpose.msra.mxu0 0
        %1509 = vmatprep.subr.bf16.mxu0 0
        %1510 = vmatpush1.bf16.xpose.msra.mxu0 0
        %1511 = vmatprep.subr.bf16.mxu0 0
        %1512 = vmatpush1.bf16.xpose.msra.mxu0 0
        %1513 = vmatprep.subr.bf16.mxu0 0
        %1514 = vmatpush1.bf16.xpose.msra.mxu0 0
        %1515 = vmatprep.subr.bf16.mxu0 0
        %1516 = vmatpush1.bf16.xpose.msra.mxu0 0
        %1517 = vmatprep.subr.bf16.mxu0 0
        %1518 = vmatpush1.bf16.xpose.msra.mxu0 0
        %1519 = vmatprep.subr.bf16.mxu0 0
        %1520 = vmatpush1.bf16.xpose.msra.mxu0 0
        %1521 = vmatprep.subr.bf16.mxu0 0
        %1522 = vmatpush1.bf16.xpose.msra.mxu0 0
        %1523 = vmatprep.subr.bf16.mxu0 0
        %1524 = vmatpush1.bf16.xpose.msra.mxu0 0
        %1525 = vmatprep.subr.bf16.mxu0 0
        %1526 = vmatpush1.bf16.xpose.msra.mxu0 0
        %1527 = vmatprep.subr.bf16.mxu0 0
        %1528 = vmatpush1.bf16.xpose.msra.mxu0 0
        %1529 = vmatprep.subr.bf16.mxu0 0
        %1530 = vmatpush1.bf16.xpose.msra.mxu0 0
        %1531 = vmatprep.subr.bf16.mxu0 0
        %1532 = vmatpush1.bf16.xpose.msra.mxu0 0
        %1533 = vmatprep.subr.bf16.mxu0 0
        %1534 = vmatpush1.bf16.xpose.msra.mxu0 0
        %1535 = vmatprep.subr.bf16.mxu0 0
        %1536 = vmatpush1.bf16.xpose.msra.mxu0 0
        %1537 = vmatprep.mubr.bf16.mxu0 0
        %1538 = vmatmul.mubr.bf16.gmra.mrb[0].mxu0 %v1500
        %v1539 = vpop.f32.mrb[0].mxu0
        %v1540 = vadd.f32 %v1308, %v1539
        %v1541 = vpop.f32.mrb[0].mxu0
        %v1542 = vpop.f32.mrb[0].mxu0
        %v1543 = vadd.f32 %v1309, %v1542
        %v1544 = vpop.f32.mrb[0].mxu0
        %1545 = vdwg.mxu0
        %v1547 = vsel %vm1310, %v1275, 0
        %v1550 = vsel %vm1310, %v1287, 0
        %1552 = vmatprep.subr.bf16.mxu0 0
        %1553 = vmatpush1.bf16.xpose.msra.mxu0 %v1550
        %1554 = vmatprep.subr.bf16.mxu0 0
        %1555 = vmatpush1.bf16.xpose.msra.mxu0 0
        %1556 = vmatprep.subr.bf16.mxu0 0
        %1557 = vmatpush1.bf16.xpose.msra.mxu0 0
        %1558 = vmatprep.subr.bf16.mxu0 0
        %1559 = vmatpush1.bf16.xpose.msra.mxu0 0
        %1560 = vmatprep.subr.bf16.mxu0 0
        %1561 = vmatpush1.bf16.xpose.msra.mxu0 0
        %1562 = vmatprep.subr.bf16.mxu0 0
        %1563 = vmatpush1.bf16.xpose.msra.mxu0 0
        %1564 = vmatprep.subr.bf16.mxu0 0
        %1565 = vmatpush1.bf16.xpose.msra.mxu0 0
        %1566 = vmatprep.subr.bf16.mxu0 0
        %1567 = vmatpush1.bf16.xpose.msra.mxu0 0
        %1568 = vmatprep.subr.bf16.mxu0 0
        %1569 = vmatpush1.bf16.xpose.msra.mxu0 0
        %1570 = vmatprep.subr.bf16.mxu0 0
        %1571 = vmatpush1.bf16.xpose.msra.mxu0 0
        %1572 = vmatprep.subr.bf16.mxu0 0
        %1573 = vmatpush1.bf16.xpose.msra.mxu0 0
        %1574 = vmatprep.subr.bf16.mxu0 0
        %1575 = vmatpush1.bf16.xpose.msra.mxu0 0
        %1576 = vmatprep.subr.bf16.mxu0 0
        %1577 = vmatpush1.bf16.xpose.msra.mxu0 0
        %1578 = vmatprep.subr.bf16.mxu0 0
        %1579 = vmatpush1.bf16.xpose.msra.mxu0 0
        %1580 = vmatprep.subr.bf16.mxu0 0
        %1581 = vmatpush1.bf16.xpose.msra.mxu0 0
        %1582 = vmatprep.subr.bf16.mxu0 0
        %1583 = vmatpush1.bf16.xpose.msra.mxu0 0
        %1584 = vmatprep.mubr.bf16.mxu0 0
        %1585 = vmatmul.mubr.bf16.gmra.mrb[0].mxu0 %v1547
        %v1586 = vpop.f32.mrb[0].mxu0
        %v1587 = vadd.f32 %v1308, %v1586
        %v1588 = vpop.f32.mrb[0].mxu0
        %v1589 = vpop.f32.mrb[0].mxu0
        %v1590 = vadd.f32 %v1309, %v1589
        %v1591 = vpop.f32.mrb[0].mxu0
        %1592 = vdwg.mxu0
        %v1594 = vsel %vm1310, %v1277, 0
        %v1597 = vsel %vm1310, %v1289, 0
        %1599 = vmatprep.subr.bf16.mxu0 0
        %1600 = vmatpush1.bf16.xpose.msra.mxu0 %v1597
        %1601 = vmatprep.subr.bf16.mxu0 0
        %1602 = vmatpush1.bf16.xpose.msra.mxu0 0
        %1603 = vmatprep.subr.bf16.mxu0 0
        %1604 = vmatpush1.bf16.xpose.msra.mxu0 0
        %1605 = vmatprep.subr.bf16.mxu0 0
        %1606 = vmatpush1.bf16.xpose.msra.mxu0 0
        %1607 = vmatprep.subr.bf16.mxu0 0
        %1608 = vmatpush1.bf16.xpose.msra.mxu0 0
        %1609 = vmatprep.subr.bf16.mxu0 0
        %1610 = vmatpush1.bf16.xpose.msra.mxu0 0
        %1611 = vmatprep.subr.bf16.mxu0 0
        %1612 = vmatpush1.bf16.xpose.msra.mxu0 0
        %1613 = vmatprep.subr.bf16.mxu0 0
        %1614 = vmatpush1.bf16.xpose.msra.mxu0 0
        %1615 = vmatprep.subr.bf16.mxu0 0
        %1616 = vmatpush1.bf16.xpose.msra.mxu0 0
        %1617 = vmatprep.subr.bf16.mxu0 0
        %1618 = vmatpush1.bf16.xpose.msra.mxu0 0
        %1619 = vmatprep.subr.bf16.mxu0 0
        %1620 = vmatpush1.bf16.xpose.msra.mxu0 0
        %1621 = vmatprep.subr.bf16.mxu0 0
        %1622 = vmatpush1.bf16.xpose.msra.mxu0 0
        %1623 = vmatprep.subr.bf16.mxu0 0
        %1624 = vmatpush1.bf16.xpose.msra.mxu0 0
        %1625 = vmatprep.subr.bf16.mxu0 0
        %1626 = vmatpush1.bf16.xpose.msra.mxu0 0
        %1627 = vmatprep.subr.bf16.mxu0 0
        %1628 = vmatpush1.bf16.xpose.msra.mxu0 0
        %1629 = vmatprep.subr.bf16.mxu0 0
        %1630 = vmatpush1.bf16.xpose.msra.mxu0 0
        %1631 = vmatprep.mubr.bf16.mxu0 0
        %1632 = vmatmul.mubr.bf16.gmra.mrb[0].mxu0 %v1594
        %v1633 = vpop.f32.mrb[0].mxu0
        %v1634 = vadd.f32 %v1308, %v1633
        %v1635 = vpop.f32.mrb[0].mxu0
        %v1636 = vpop.f32.mrb[0].mxu0
        %v1637 = vadd.f32 %v1309, %v1636
        %v1638 = vpop.f32.mrb[0].mxu0
        %1639 = vdwg.mxu0
        %v1641 = vsel %vm1310, %v1279, 0
        %v1644 = vsel %vm1310, %v1291, 0
        %1646 = vmatprep.subr.bf16.mxu0 0
        %1647 = vmatpush1.bf16.xpose.msra.mxu0 %v1644
        %1648 = vmatprep.subr.bf16.mxu0 0
        %1649 = vmatpush1.bf16.xpose.msra.mxu0 0
        %1650 = vmatprep.subr.bf16.mxu0 0
        %1651 = vmatpush1.bf16.xpose.msra.mxu0 0
        %1652 = vmatprep.subr.bf16.mxu0 0
        %1653 = vmatpush1.bf16.xpose.msra.mxu0 0
        %1654 = vmatprep.subr.bf16.mxu0 0
        %1655 = vmatpush1.bf16.xpose.msra.mxu0 0
        %1656 = vmatprep.subr.bf16.mxu0 0
        %1657 = vmatpush1.bf16.xpose.msra.mxu0 0
        %1658 = vmatprep.subr.bf16.mxu0 0
        %1659 = vmatpush1.bf16.xpose.msra.mxu0 0
        %1660 = vmatprep.subr.bf16.mxu0 0
        %1661 = vmatpush1.bf16.xpose.msra.mxu0 0
        %1662 = vmatprep.subr.bf16.mxu0 0
        %1663 = vmatpush1.bf16.xpose.msra.mxu0 0
        %1664 = vmatprep.subr.bf16.mxu0 0
        %1665 = vmatpush1.bf16.xpose.msra.mxu0 0
        %1666 = vmatprep.subr.bf16.mxu0 0
        %1667 = vmatpush1.bf16.xpose.msra.mxu0 0
        %1668 = vmatprep.subr.bf16.mxu0 0
        %1669 = vmatpush1.bf16.xpose.msra.mxu0 0
        %1670 = vmatprep.subr.bf16.mxu0 0
        %1671 = vmatpush1.bf16.xpose.msra.mxu0 0
        %1672 = vmatprep.subr.bf16.mxu0 0
        %1673 = vmatpush1.bf16.xpose.msra.mxu0 0
        %1674 = vmatprep.subr.bf16.mxu0 0
        %1675 = vmatpush1.bf16.xpose.msra.mxu0 0
        %1676 = vmatprep.subr.bf16.mxu0 0
        %1677 = vmatpush1.bf16.xpose.msra.mxu0 0
        %1678 = vmatprep.mubr.bf16.mxu0 0
        %1679 = vmatmul.mubr.bf16.gmra.mrb[0].mxu0 %v1641
        %v1680 = vpop.f32.mrb[0].mxu0
        %v1681 = vadd.f32 %v1308, %v1680
        %v1682 = vpop.f32.mrb[0].mxu0
        %v1683 = vpop.f32.mrb[0].mxu0
        %v1684 = vadd.f32 %v1309, %v1683
        %v1685 = vpop.f32.mrb[0].mxu0
        %1686 = vdwg.mxu0
        %vm1687 = vcmask 130048
        %v1688 = vsel %vm1687, %v1352, -inf
        %1689 = vmax.xlane.f32.xlu0 %v1688
        %v1690 = vpop.xlane.xlu0 %1689
        %v1691 = vsel %vm1687, %v1355, -inf
        %1692 = vmax.xlane.f32.xlu0 %v1691
        %v1693 = vpop.xlane.xlu0 %1692
        %v1694 = vsel %vm1687, %v1399, -inf
        %1695 = vmax.xlane.f32.xlu0 %v1694
        %v1696 = vpop.xlane.xlu0 %1695
        %v1697 = vsel %vm1687, %v1402, -inf
        %1698 = vmax.xlane.f32.xlu0 %v1697
        %v1699 = vpop.xlane.xlu0 %1698
        %v1700 = vsel %vm1687, %v1446, -inf
        %1701 = vmax.xlane.f32.xlu0 %v1700
        %v1702 = vpop.xlane.xlu0 %1701
        %v1703 = vsel %vm1687, %v1449, -inf
        %1704 = vmax.xlane.f32.xlu0 %v1703
        %v1705 = vpop.xlane.xlu0 %1704
        %v1706 = vsel %vm1687, %v1493, -inf
        %1707 = vmax.xlane.f32.xlu0 %v1706
        %v1708 = vpop.xlane.xlu0 %1707
        %v1709 = vsel %vm1687, %v1496, -inf
        %1710 = vmax.xlane.f32.xlu0 %v1709
        %v1711 = vpop.xlane.xlu0 %1710
        %v1712 = vsel %vm1687, %v1540, -inf
        %1713 = vmax.xlane.f32.xlu0 %v1712
        %v1714 = vpop.xlane.xlu0 %1713
        %v1715 = vsel %vm1687, %v1543, -inf
        %1716 = vmax.xlane.f32.xlu0 %v1715
        %v1717 = vpop.xlane.xlu0 %1716
        %v1718 = vsel %vm1687, %v1587, -inf
        %1719 = vmax.xlane.f32.xlu0 %v1718
        %v1720 = vpop.xlane.xlu0 %1719
        %v1721 = vsel %vm1687, %v1590, -inf
        %1722 = vmax.xlane.f32.xlu0 %v1721
        %v1723 = vpop.xlane.xlu0 %1722
        %v1724 = vsel %vm1687, %v1634, -inf
        %1725 = vmax.xlane.f32.xlu0 %v1724
        %v1726 = vpop.xlane.xlu0 %1725
        %v1727 = vsel %vm1687, %v1637, -inf
        %1728 = vmax.xlane.f32.xlu0 %v1727
        %v1729 = vpop.xlane.xlu0 %1728
        %v1730 = vsel %vm1687, %v1681, -inf
        %1731 = vmax.xlane.f32.xlu0 %v1730
        %v1732 = vpop.xlane.xlu0 %1731
        %v1733 = vsel %vm1687, %v1684, -inf
        %1734 = vmax.xlane.f32.xlu0 %v1733
        %v1735 = vpop.xlane.xlu0 %1734
        %v1736 = vsub.f32 %v1352, %v1690
        %v1737 = vsub.f32 %v1355, %v1693
        %v1738 = vsub.f32 %v1399, %v1696
        %v1739 = vsub.f32 %v1402, %v1699
        %v1740 = vsub.f32 %v1446, %v1702
        %v1741 = vsub.f32 %v1449, %v1705
        %v1742 = vsub.f32 %v1493, %v1708
        %v1743 = vsub.f32 %v1496, %v1711
        %v1744 = vsub.f32 %v1540, %v1714
        %v1745 = vsub.f32 %v1543, %v1717
        %v1746 = vsub.f32 %v1587, %v1720
        %v1747 = vsub.f32 %v1590, %v1723
        %v1748 = vsub.f32 %v1634, %v1726
        %v1749 = vsub.f32 %v1637, %v1729
        %v1750 = vsub.f32 %v1681, %v1732
        %v1751 = vsub.f32 %v1684, %v1735
        %v1752 = vmul.f32 %v1736, 1.442695
        %v1753 = vpow.pop %v1752
        %v1754 = vmul.f32 %v1737, 1.442695
        %v1755 = vpow.pop %v1754
        %v1756 = vmul.f32 %v1738, 1.442695
        %v1757 = vpow.pop %v1756
        %v1758 = vmul.f32 %v1739, 1.442695
        %v1759 = vpow.pop %v1758
        %v1760 = vmul.f32 %v1740, 1.442695
        %v1761 = vpow.pop %v1760
        %v1762 = vmul.f32 %v1741, 1.442695
        %v1763 = vpow.pop %v1762
        %v1764 = vmul.f32 %v1742, 1.442695
        %v1765 = vpow.pop %v1764
        %v1766 = vmul.f32 %v1743, 1.442695
        %v1767 = vpow.pop %v1766
        %v1768 = vmul.f32 %v1744, 1.442695
        %v1769 = vpow.pop %v1768
        %v1770 = vmul.f32 %v1745, 1.442695
        %v1771 = vpow.pop %v1770
        %v1772 = vmul.f32 %v1746, 1.442695
        %v1773 = vpow.pop %v1772
        %v1774 = vmul.f32 %v1747, 1.442695
        %v1775 = vpow.pop %v1774
        %v1776 = vmul.f32 %v1748, 1.442695
        %v1777 = vpow.pop %v1776
        %v1778 = vmul.f32 %v1749, 1.442695
        %v1779 = vpow.pop %v1778
        %v1780 = vmul.f32 %v1750, 1.442695
        %v1781 = vpow.pop %v1780
        %v1782 = vmul.f32 %v1751, 1.442695
        %v1783 = vpow.pop %v1782
        %v1784 = vsel %vm1687, %v1753, 0.0
        %1785 = vadd.xlane.f32.xlu0 %v1784
        %v1786 = vpop.xlane.xlu0 %1785
        %v1787 = vsel %vm1687, %v1755, 0.0
        %1788 = vadd.xlane.f32.xlu0 %v1787
        %v1789 = vpop.xlane.xlu0 %1788
        %v1790 = vsel %vm1687, %v1757, 0.0
        %1791 = vadd.xlane.f32.xlu0 %v1790
        %v1792 = vpop.xlane.xlu0 %1791
        %v1793 = vsel %vm1687, %v1759, 0.0
        %1794 = vadd.xlane.f32.xlu0 %v1793
        %v1795 = vpop.xlane.xlu0 %1794
        %v1796 = vsel %vm1687, %v1761, 0.0
        %1797 = vadd.xlane.f32.xlu0 %v1796
        %v1798 = vpop.xlane.xlu0 %1797
        %v1799 = vsel %vm1687, %v1763, 0.0
        %1800 = vadd.xlane.f32.xlu0 %v1799
        %v1801 = vpop.xlane.xlu0 %1800
        %v1802 = vsel %vm1687, %v1765, 0.0
        %1803 = vadd.xlane.f32.xlu0 %v1802
        %v1804 = vpop.xlane.xlu0 %1803
        %v1805 = vsel %vm1687, %v1767, 0.0
        %1806 = vadd.xlane.f32.xlu0 %v1805
        %v1807 = vpop.xlane.xlu0 %1806
        %v1808 = vsel %vm1687, %v1769, 0.0
        %1809 = vadd.xlane.f32.xlu0 %v1808
        %v1810 = vpop.xlane.xlu0 %1809
        %v1811 = vsel %vm1687, %v1771, 0.0
        %1812 = vadd.xlane.f32.xlu0 %v1811
        %v1813 = vpop.xlane.xlu0 %1812
        %v1814 = vsel %vm1687, %v1773, 0.0
        %1815 = vadd.xlane.f32.xlu0 %v1814
        %v1816 = vpop.xlane.xlu0 %1815
        %v1817 = vsel %vm1687, %v1775, 0.0
        %1818 = vadd.xlane.f32.xlu0 %v1817
        %v1819 = vpop.xlane.xlu0 %1818
        %v1820 = vsel %vm1687, %v1777, 0.0
        %1821 = vadd.xlane.f32.xlu0 %v1820
        %v1822 = vpop.xlane.xlu0 %1821
        %v1823 = vsel %vm1687, %v1779, 0.0
        %1824 = vadd.xlane.f32.xlu0 %v1823
        %v1825 = vpop.xlane.xlu0 %1824
        %v1826 = vsel %vm1687, %v1781, 0.0
        %1827 = vadd.xlane.f32.xlu0 %v1826
        %v1828 = vpop.xlane.xlu0 %1827
        %v1829 = vsel %vm1687, %v1783, 0.0
        %1830 = vadd.xlane.f32.xlu0 %v1829
        %v1831 = vpop.xlane.xlu0 %1830
        %v1832 = vpack.c.bf16 %v1755, %v1753
        %v1833 = vpack.c.bf16 %v1759, %v1757
        %v1834 = vpack.c.bf16 %v1763, %v1761
        %v1835 = vpack.c.bf16 %v1767, %v1765
        %v1836 = vpack.c.bf16 %v1771, %v1769
        %v1837 = vpack.c.bf16 %v1775, %v1773
        %v1838 = vpack.c.bf16 %v1779, %v1777
        %v1839 = vpack.c.bf16 %v1783, %v1781
        %v1841 = vsel %vm1687, %v1832, 0
        %1843 = vmatprep.subr.bf16.mxu0 0
        %1844 = vmatpush1.bf16.msra.mxu0 %v1258
        %1845 = vmatprep.subr.bf16.mxu0 0
        %1846 = vmatpush1.bf16.msra.mxu0 0
        %1847 = vmatprep.subr.bf16.mxu0 0
        %1848 = vmatpush1.bf16.msra.mxu0 0
        %1849 = vmatprep.subr.bf16.mxu0 0
        %1850 = vmatpush1.bf16.msra.mxu0 0
        %1851 = vmatprep.subr.bf16.mxu0 0
        %1852 = vmatpush1.bf16.msra.mxu0 0
        %1853 = vmatprep.subr.bf16.mxu0 0
        %1854 = vmatpush1.bf16.msra.mxu0 0
        %1855 = vmatprep.subr.bf16.mxu0 0
        %1856 = vmatpush1.bf16.msra.mxu0 0
        %1857 = vmatprep.subr.bf16.mxu0 0
        %1858 = vmatpush1.bf16.msra.mxu0 0
        %1859 = vmatprep.subr.bf16.mxu0 0
        %1860 = vmatpush1.bf16.msra.mxu0 0
        %1861 = vmatprep.subr.bf16.mxu0 0
        %1862 = vmatpush1.bf16.msra.mxu0 0
        %1863 = vmatprep.subr.bf16.mxu0 0
        %1864 = vmatpush1.bf16.msra.mxu0 0
        %1865 = vmatprep.subr.bf16.mxu0 0
        %1866 = vmatpush1.bf16.msra.mxu0 0
        %1867 = vmatprep.subr.bf16.mxu0 0
        %1868 = vmatpush1.bf16.msra.mxu0 0
        %1869 = vmatprep.subr.bf16.mxu0 0
        %1870 = vmatpush1.bf16.msra.mxu0 0
        %1871 = vmatprep.subr.bf16.mxu0 0
        %1872 = vmatpush1.bf16.msra.mxu0 0
        %1873 = vmatprep.subr.bf16.mxu0 0
        %1874 = vmatpush1.bf16.msra.mxu0 0
        %1875 = vmatprep.mubr.bf16.mxu0 0
        %1876 = vmatmul.mubr.bf16.gmra.mrb[0].mxu0 %v1841
        %v1877 = vpop.f32.mrb[0].mxu0
        %v1878 = vadd.f32 0.0, %v1877
        %v1879 = vpop.f32.mrb[0].mxu0
        %v1880 = vpop.f32.mrb[0].mxu0
        %v1881 = vadd.f32 0.0, %v1880
        %v1882 = vpop.f32.mrb[0].mxu0
        %1883 = vdwg.mxu0
        %v1885 = vsel %vm1687, %v1833, 0
        %1887 = vmatprep.subr.bf16.mxu0 0
        %1888 = vmatpush1.bf16.msra.mxu0 %v1261
        %1889 = vmatprep.subr.bf16.mxu0 0
        %1890 = vmatpush1.bf16.msra.mxu0 0
        %1891 = vmatprep.subr.bf16.mxu0 0
        %1892 = vmatpush1.bf16.msra.mxu0 0
        %1893 = vmatprep.subr.bf16.mxu0 0
        %1894 = vmatpush1.bf16.msra.mxu0 0
        %1895 = vmatprep.subr.bf16.mxu0 0
        %1896 = vmatpush1.bf16.msra.mxu0 0
        %1897 = vmatprep.subr.bf16.mxu0 0
        %1898 = vmatpush1.bf16.msra.mxu0 0
        %1899 = vmatprep.subr.bf16.mxu0 0
        %1900 = vmatpush1.bf16.msra.mxu0 0
        %1901 = vmatprep.subr.bf16.mxu0 0
        %1902 = vmatpush1.bf16.msra.mxu0 0
        %1903 = vmatprep.subr.bf16.mxu0 0
        %1904 = vmatpush1.bf16.msra.mxu0 0
        %1905 = vmatprep.subr.bf16.mxu0 0
        %1906 = vmatpush1.bf16.msra.mxu0 0
        %1907 = vmatprep.subr.bf16.mxu0 0
        %1908 = vmatpush1.bf16.msra.mxu0 0
        %1909 = vmatprep.subr.bf16.mxu0 0
        %1910 = vmatpush1.bf16.msra.mxu0 0
        %1911 = vmatprep.subr.bf16.mxu0 0
        %1912 = vmatpush1.bf16.msra.mxu0 0
        %1913 = vmatprep.subr.bf16.mxu0 0
        %1914 = vmatpush1.bf16.msra.mxu0 0
        %1915 = vmatprep.subr.bf16.mxu0 0
        %1916 = vmatpush1.bf16.msra.mxu0 0
        %1917 = vmatprep.subr.bf16.mxu0 0
        %1918 = vmatpush1.bf16.msra.mxu0 0
        %1919 = vmatprep.mubr.bf16.mxu0 0
        %1920 = vmatmul.mubr.bf16.gmra.mrb[0].mxu0 %v1885
        %v1921 = vpop.f32.mrb[0].mxu0
        %v1922 = vadd.f32 0.0, %v1921
        %v1923 = vpop.f32.mrb[0].mxu0
        %v1924 = vpop.f32.mrb[0].mxu0
        %v1925 = vadd.f32 0.0, %v1924
        %v1926 = vpop.f32.mrb[0].mxu0
        %1927 = vdwg.mxu0
        %v1929 = vsel %vm1687, %v1834, 0
        %1931 = vmatprep.subr.bf16.mxu0 0
        %1932 = vmatpush1.bf16.msra.mxu0 %v1264
        %1933 = vmatprep.subr.bf16.mxu0 0
        %1934 = vmatpush1.bf16.msra.mxu0 0
        %1935 = vmatprep.subr.bf16.mxu0 0
        %1936 = vmatpush1.bf16.msra.mxu0 0
        %1937 = vmatprep.subr.bf16.mxu0 0
        %1938 = vmatpush1.bf16.msra.mxu0 0
        %1939 = vmatprep.subr.bf16.mxu0 0
        %1940 = vmatpush1.bf16.msra.mxu0 0
        %1941 = vmatprep.subr.bf16.mxu0 0
        %1942 = vmatpush1.bf16.msra.mxu0 0
        %1943 = vmatprep.subr.bf16.mxu0 0
        %1944 = vmatpush1.bf16.msra.mxu0 0
        %1945 = vmatprep.subr.bf16.mxu0 0
        %1946 = vmatpush1.bf16.msra.mxu0 0
        %1947 = vmatprep.subr.bf16.mxu0 0
        %1948 = vmatpush1.bf16.msra.mxu0 0
        %1949 = vmatprep.subr.bf16.mxu0 0
        %1950 = vmatpush1.bf16.msra.mxu0 0
        %1951 = vmatprep.subr.bf16.mxu0 0
        %1952 = vmatpush1.bf16.msra.mxu0 0
        %1953 = vmatprep.subr.bf16.mxu0 0
        %1954 = vmatpush1.bf16.msra.mxu0 0
        %1955 = vmatprep.subr.bf16.mxu0 0
        %1956 = vmatpush1.bf16.msra.mxu0 0
        %1957 = vmatprep.subr.bf16.mxu0 0
        %1958 = vmatpush1.bf16.msra.mxu0 0
        %1959 = vmatprep.subr.bf16.mxu0 0
        %1960 = vmatpush1.bf16.msra.mxu0 0
        %1961 = vmatprep.subr.bf16.mxu0 0
        %1962 = vmatpush1.bf16.msra.mxu0 0
        %1963 = vmatprep.mubr.bf16.mxu0 0
        %1964 = vmatmul.mubr.bf16.gmra.mrb[0].mxu0 %v1929
        %v1965 = vpop.f32.mrb[0].mxu0
        %v1966 = vadd.f32 0.0, %v1965
        %v1967 = vpop.f32.mrb[0].mxu0
        %v1968 = vpop.f32.mrb[0].mxu0
        %v1969 = vadd.f32 0.0, %v1968
        %v1970 = vpop.f32.mrb[0].mxu0
        %1971 = vdwg.mxu0
        %v1973 = vsel %vm1687, %v1835, 0
        %1975 = vmatprep.subr.bf16.mxu0 0
        %1976 = vmatpush1.bf16.msra.mxu0 %v1267
        %1977 = vmatprep.subr.bf16.mxu0 0
        %1978 = vmatpush1.bf16.msra.mxu0 0
        %1979 = vmatprep.subr.bf16.mxu0 0
        %1980 = vmatpush1.bf16.msra.mxu0 0
        %1981 = vmatprep.subr.bf16.mxu0 0
        %1982 = vmatpush1.bf16.msra.mxu0 0
        %1983 = vmatprep.subr.bf16.mxu0 0
        %1984 = vmatpush1.bf16.msra.mxu0 0
        %1985 = vmatprep.subr.bf16.mxu0 0
        %1986 = vmatpush1.bf16.msra.mxu0 0
        %1987 = vmatprep.subr.bf16.mxu0 0
        %1988 = vmatpush1.bf16.msra.mxu0 0
        %1989 = vmatprep.subr.bf16.mxu0 0
        %1990 = vmatpush1.bf16.msra.mxu0 0
        %1991 = vmatprep.subr.bf16.mxu0 0
        %1992 = vmatpush1.bf16.msra.mxu0 0
        %1993 = vmatprep.subr.bf16.mxu0 0
        %1994 = vmatpush1.bf16.msra.mxu0 0
        %1995 = vmatprep.subr.bf16.mxu0 0
        %1996 = vmatpush1.bf16.msra.mxu0 0
        %1997 = vmatprep.subr.bf16.mxu0 0
        %1998 = vmatpush1.bf16.msra.mxu0 0
        %1999 = vmatprep.subr.bf16.mxu0 0
        %2000 = vmatpush1.bf16.msra.mxu0 0
        %2001 = vmatprep.subr.bf16.mxu0 0
        %2002 = vmatpush1.bf16.msra.mxu0 0
        %2003 = vmatprep.subr.bf16.mxu0 0
        %2004 = vmatpush1.bf16.msra.mxu0 0
        %2005 = vmatprep.subr.bf16.mxu0 0
        %2006 = vmatpush1.bf16.msra.mxu0 0
        %2007 = vmatprep.mubr.bf16.mxu0 0
        %2008 = vmatmul.mubr.bf16.gmra.mrb[0].mxu0 %v1973
        %v2009 = vpop.f32.mrb[0].mxu0
        %v2010 = vadd.f32 0.0, %v2009
        %v2011 = vpop.f32.mrb[0].mxu0
        %v2012 = vpop.f32.mrb[0].mxu0
        %v2013 = vadd.f32 0.0, %v2012
        %v2014 = vpop.f32.mrb[0].mxu0
        %2015 = vdwg.mxu0
        %v2017 = vsel %vm1687, %v1836, 0
        %2019 = vmatprep.subr.bf16.mxu0 0
        %2020 = vmatpush1.bf16.msra.mxu0 %v1297
        %2021 = vmatprep.subr.bf16.mxu0 0
        %2022 = vmatpush1.bf16.msra.mxu0 0
        %2023 = vmatprep.subr.bf16.mxu0 0
        %2024 = vmatpush1.bf16.msra.mxu0 0
        %2025 = vmatprep.subr.bf16.mxu0 0
        %2026 = vmatpush1.bf16.msra.mxu0 0
        %2027 = vmatprep.subr.bf16.mxu0 0
        %2028 = vmatpush1.bf16.msra.mxu0 0
        %2029 = vmatprep.subr.bf16.mxu0 0
        %2030 = vmatpush1.bf16.msra.mxu0 0
        %2031 = vmatprep.subr.bf16.mxu0 0
        %2032 = vmatpush1.bf16.msra.mxu0 0
        %2033 = vmatprep.subr.bf16.mxu0 0
        %2034 = vmatpush1.bf16.msra.mxu0 0
        %2035 = vmatprep.subr.bf16.mxu0 0
        %2036 = vmatpush1.bf16.msra.mxu0 0
        %2037 = vmatprep.subr.bf16.mxu0 0
        %2038 = vmatpush1.bf16.msra.mxu0 0
        %2039 = vmatprep.subr.bf16.mxu0 0
        %2040 = vmatpush1.bf16.msra.mxu0 0
        %2041 = vmatprep.subr.bf16.mxu0 0
        %2042 = vmatpush1.bf16.msra.mxu0 0
        %2043 = vmatprep.subr.bf16.mxu0 0
        %2044 = vmatpush1.bf16.msra.mxu0 0
        %2045 = vmatprep.subr.bf16.mxu0 0
        %2046 = vmatpush1.bf16.msra.mxu0 0
        %2047 = vmatprep.subr.bf16.mxu0 0
        %2048 = vmatpush1.bf16.msra.mxu0 0
        %2049 = vmatprep.subr.bf16.mxu0 0
        %2050 = vmatpush1.bf16.msra.mxu0 0
        %2051 = vmatprep.mubr.bf16.mxu0 0
        %2052 = vmatmul.mubr.bf16.gmra.mrb[0].mxu0 %v2017
        %v2053 = vpop.f32.mrb[0].mxu0
        %v2054 = vadd.f32 0.0, %v2053
        %v2055 = vpop.f32.mrb[0].mxu0
        %v2056 = vpop.f32.mrb[0].mxu0
        %v2057 = vadd.f32 0.0, %v2056
        %v2058 = vpop.f32.mrb[0].mxu0
        %2059 = vdwg.mxu0
        %v2061 = vsel %vm1687, %v1837, 0
        %2063 = vmatprep.subr.bf16.mxu0 0
        %2064 = vmatpush1.bf16.msra.mxu0 %v1299
        %2065 = vmatprep.subr.bf16.mxu0 0
        %2066 = vmatpush1.bf16.msra.mxu0 0
        %2067 = vmatprep.subr.bf16.mxu0 0
        %2068 = vmatpush1.bf16.msra.mxu0 0
        %2069 = vmatprep.subr.bf16.mxu0 0
        %2070 = vmatpush1.bf16.msra.mxu0 0
        %2071 = vmatprep.subr.bf16.mxu0 0
        %2072 = vmatpush1.bf16.msra.mxu0 0
        %2073 = vmatprep.subr.bf16.mxu0 0
        %2074 = vmatpush1.bf16.msra.mxu0 0
        %2075 = vmatprep.subr.bf16.mxu0 0
        %2076 = vmatpush1.bf16.msra.mxu0 0
        %2077 = vmatprep.subr.bf16.mxu0 0
        %2078 = vmatpush1.bf16.msra.mxu0 0
        %2079 = vmatprep.subr.bf16.mxu0 0
        %2080 = vmatpush1.bf16.msra.mxu0 0
        %2081 = vmatprep.subr.bf16.mxu0 0
        %2082 = vmatpush1.bf16.msra.mxu0 0
        %2083 = vmatprep.subr.bf16.mxu0 0
        %2084 = vmatpush1.bf16.msra.mxu0 0
        %2085 = vmatprep.subr.bf16.mxu0 0
        %2086 = vmatpush1.bf16.msra.mxu0 0
        %2087 = vmatprep.subr.bf16.mxu0 0
        %2088 = vmatpush1.bf16.msra.mxu0 0
        %2089 = vmatprep.subr.bf16.mxu0 0
        %2090 = vmatpush1.bf16.msra.mxu0 0
        %2091 = vmatprep.subr.bf16.mxu0 0
        %2092 = vmatpush1.bf16.msra.mxu0 0
        %2093 = vmatprep.subr.bf16.mxu0 0
        %2094 = vmatpush1.bf16.msra.mxu0 0
        %2095 = vmatprep.mubr.bf16.mxu0 0
        %2096 = vmatmul.mubr.bf16.gmra.mrb[0].mxu0 %v2061
        %v2097 = vpop.f32.mrb[0].mxu0
        %v2098 = vadd.f32 0.0, %v2097
        %v2099 = vpop.f32.mrb[0].mxu0
        %v2100 = vpop.f32.mrb[0].mxu0
        %v2101 = vadd.f32 0.0, %v2100
        %v2102 = vpop.f32.mrb[0].mxu0
        %2103 = vdwg.mxu0
        %v2105 = vsel %vm1687, %v1838, 0
        %2107 = vmatprep.subr.bf16.mxu0 0
        %2108 = vmatpush1.bf16.msra.mxu0 %v1301
        %2109 = vmatprep.subr.bf16.mxu0 0
        %2110 = vmatpush1.bf16.msra.mxu0 0
        %2111 = vmatprep.subr.bf16.mxu0 0
        %2112 = vmatpush1.bf16.msra.mxu0 0
        %2113 = vmatprep.subr.bf16.mxu0 0
        %2114 = vmatpush1.bf16.msra.mxu0 0
        %2115 = vmatprep.subr.bf16.mxu0 0
        %2116 = vmatpush1.bf16.msra.mxu0 0
        %2117 = vmatprep.subr.bf16.mxu0 0
        %2118 = vmatpush1.bf16.msra.mxu0 0
        %2119 = vmatprep.subr.bf16.mxu0 0
        %2120 = vmatpush1.bf16.msra.mxu0 0
        %2121 = vmatprep.subr.bf16.mxu0 0
        %2122 = vmatpush1.bf16.msra.mxu0 0
        %2123 = vmatprep.subr.bf16.mxu0 0
        %2124 = vmatpush1.bf16.msra.mxu0 0
        %2125 = vmatprep.subr.bf16.mxu0 0
        %2126 = vmatpush1.bf16.msra.mxu0 0
        %2127 = vmatprep.subr.bf16.mxu0 0
        %2128 = vmatpush1.bf16.msra.mxu0 0
        %2129 = vmatprep.subr.bf16.mxu0 0
        %2130 = vmatpush1.bf16.msra.mxu0 0
        %2131 = vmatprep.subr.bf16.mxu0 0
        %2132 = vmatpush1.bf16.msra.mxu0 0
        %2133 = vmatprep.subr.bf16.mxu0 0
        %2134 = vmatpush1.bf16.msra.mxu0 0
        %2135 = vmatprep.subr.bf16.mxu0 0
        %2136 = vmatpush1.bf16.msra.mxu0 0
        %2137 = vmatprep.subr.bf16.mxu0 0
        %2138 = vmatpush1.bf16.msra.mxu0 0
        %2139 = vmatprep.mubr.bf16.mxu0 0
        %2140 = vmatmul.mubr.bf16.gmra.mrb[0].mxu0 %v2105
        %v2141 = vpop.f32.mrb[0].mxu0
        %v2142 = vadd.f32 0.0, %v2141
        %v2143 = vpop.f32.mrb[0].mxu0
        %v2144 = vpop.f32.mrb[0].mxu0
        %v2145 = vadd.f32 0.0, %v2144
        %v2146 = vpop.f32.mrb[0].mxu0
        %2147 = vdwg.mxu0
        %v2149 = vsel %vm1687, %v1839, 0
        %2151 = vmatprep.subr.bf16.mxu0 0
        %2152 = vmatpush1.bf16.msra.mxu0 %v1303
        %2153 = vmatprep.subr.bf16.mxu0 0
        %2154 = vmatpush1.bf16.msra.mxu0 0
        %2155 = vmatprep.subr.bf16.mxu0 0
        %2156 = vmatpush1.bf16.msra.mxu0 0
        %2157 = vmatprep.subr.bf16.mxu0 0
        %2158 = vmatpush1.bf16.msra.mxu0 0
        %2159 = vmatprep.subr.bf16.mxu0 0
        %2160 = vmatpush1.bf16.msra.mxu0 0
        %2161 = vmatprep.subr.bf16.mxu0 0
        %2162 = vmatpush1.bf16.msra.mxu0 0
        %2163 = vmatprep.subr.bf16.mxu0 0
        %2164 = vmatpush1.bf16.msra.mxu0 0
        %2165 = vmatprep.subr.bf16.mxu0 0
        %2166 = vmatpush1.bf16.msra.mxu0 0
        %2167 = vmatprep.subr.bf16.mxu0 0
        %2168 = vmatpush1.bf16.msra.mxu0 0
        %2169 = vmatprep.subr.bf16.mxu0 0
        %2170 = vmatpush1.bf16.msra.mxu0 0
        %2171 = vmatprep.subr.bf16.mxu0 0
        %2172 = vmatpush1.bf16.msra.mxu0 0
        %2173 = vmatprep.subr.bf16.mxu0 0
        %2174 = vmatpush1.bf16.msra.mxu0 0
        %2175 = vmatprep.subr.bf16.mxu0 0
        %2176 = vmatpush1.bf16.msra.mxu0 0
        %2177 = vmatprep.subr.bf16.mxu0 0
        %2178 = vmatpush1.bf16.msra.mxu0 0
        %2179 = vmatprep.subr.bf16.mxu0 0
        %2180 = vmatpush1.bf16.msra.mxu0 0
        %2181 = vmatprep.subr.bf16.mxu0 0
        %2182 = vmatpush1.bf16.msra.mxu0 0
        %2183 = vmatprep.mubr.bf16.mxu0 0
        %2184 = vmatmul.mubr.bf16.gmra.mrb[0].mxu0 %v2149
        %v2185 = vpop.f32.mrb[0].mxu0
        %v2186 = vadd.f32 0.0, %v2185
        %v2187 = vpop.f32.mrb[0].mxu0
        %v2188 = vpop.f32.mrb[0].mxu0
        %v2189 = vadd.f32 0.0, %v2188
        %v2190 = vpop.f32.mrb[0].mxu0
        %2191 = vdwg.mxu0
        %v2192 = vrcp.pop %v1786
        %v2193 = vrcp.pop %v1789
        %v2194 = vrcp.pop %v1792
        %v2195 = vrcp.pop %v1795
        %v2196 = vrcp.pop %v1798
        %v2197 = vrcp.pop %v1801
        %v2198 = vrcp.pop %v1804
        %v2199 = vrcp.pop %v1807
        %v2200 = vrcp.pop %v1810
        %v2201 = vrcp.pop %v1813
        %v2202 = vrcp.pop %v1816
        %v2203 = vrcp.pop %v1819
        %v2204 = vrcp.pop %v1822
        %v2205 = vrcp.pop %v1825
        %v2206 = vrcp.pop %v1828
        %v2207 = vrcp.pop %v1831
        %v2208 = vmul.f32 %v1878, %v2192
        %v2209 = vmul.f32 %v1881, %v2193
        %v2210 = vmul.f32 %v1922, %v2194
        %v2211 = vmul.f32 %v1925, %v2195
        %v2212 = vmul.f32 %v1966, %v2196
        %v2213 = vmul.f32 %v1969, %v2197
        %v2214 = vmul.f32 %v2010, %v2198
        %v2215 = vmul.f32 %v2013, %v2199
        %v2216 = vmul.f32 %v2054, %v2200
        %v2217 = vmul.f32 %v2057, %v2201
        %v2218 = vmul.f32 %v2098, %v2202
        %v2219 = vmul.f32 %v2101, %v2203
        %v2220 = vmul.f32 %v2142, %v2204
        %v2221 = vmul.f32 %v2145, %v2205
        %v2222 = vmul.f32 %v2186, %v2206
        %v2223 = vmul.f32 %v2189, %v2207
        %2232 = vrot.lane.b32.xlu0 %v2216, 64
        %v2233 = vpop.permute.xlu0 %2232
        %2234 = vrot.lane.b32.xlu0 %v2217, 64
        %v2235 = vpop.permute.xlu0 %2234
        %2236 = vrot.lane.b32.xlu0 %v2218, 64
        %v2237 = vpop.permute.xlu0 %2236
        %2238 = vrot.lane.b32.xlu0 %v2219, 64
        %v2239 = vpop.permute.xlu0 %2238
        %2240 = vrot.lane.b32.xlu0 %v2220, 64
        %v2241 = vpop.permute.xlu0 %2240
        %2242 = vrot.lane.b32.xlu0 %v2221, 64
        %v2243 = vpop.permute.xlu0 %2242
        %2244 = vrot.lane.b32.xlu0 %v2222, 64
        %v2245 = vpop.permute.xlu0 %2244
        %2246 = vrot.lane.b32.xlu0 %v2223, 64
        %v2247 = vpop.permute.xlu0 %2246
        %v2256 = vsel %vm1310, %v2208, %v2233
        %v2257 = vsel %vm1310, %v2209, %v2235
        %v2258 = vsel %vm1310, %v2210, %v2237
        %v2259 = vsel %vm1310, %v2211, %v2239
        %v2260 = vsel %vm1310, %v2212, %v2241
        %v2261 = vsel %vm1310, %v2213, %v2243
        %v2262 = vsel %vm1310, %v2214, %v2245
        %v2263 = vsel %vm1310, %v2215, %v2247
        %v2264 = vpack.c.bf16 %v2257, %v2256
        %v2265 = vpack.c.bf16 %v2259, %v2258
        %v2266 = vpack.c.bf16 %v2261, %v2260
        %v2267 = vpack.c.bf16 %v2263, %v2262
        %v2268 = vld [vmem:[%s772] sm:$0xf]
        %v2269 = vld [vmem:[%s772 + $0x4] sm:$0xf]
        %v2270 = vld [vmem:[%s772 + $0x8] sm:$0xf]
        %v2271 = vld [vmem:[%s772 + $0xc] sm:$0xf]
        %v2272 = vld [vmem:[%s772 + $0x10] sm:$0xf]
        %v2273 = vld [vmem:[%s772 + $0x14] sm:$0xf]
        %v2274 = vld [vmem:[%s772 + $0x18] sm:$0xf]
        %v2275 = vld [vmem:[%s772 + $0x1c] sm:$0xf]
        %v2276 = vld [vmem:[%s772 + $0x20] sm:$0xf]
        %v2277 = vld [vmem:[%s772 + $0x24] sm:$0xf]
        %v2278 = vld [vmem:[%s772 + $0x28] sm:$0xf]
        %v2279 = vld [vmem:[%s772 + $0x2c] sm:$0xf]
        %v2280 = vld [vmem:[%s772 + $0x30] sm:$0xf]
        %v2281 = vld [vmem:[%s772 + $0x34] sm:$0xf]
        %v2282 = vld [vmem:[%s772 + $0x38] sm:$0xf]
        %v2283 = vld [vmem:[%s772 + $0x3c] sm:$0xf]
        %v2284 = vld [vmem:[%s662] sm:$0x1]
        %v2286 = vlaneseq
        %v2287 = vshrl.u32 %v2286, 7
        %v2288 = vsub.s32 0, %v2287
        %v2289 = vrot.slane %v2284, %v2288
        %v2307 = vunpack.c.l.b16 %v2268
        %v2308 = vunpack.c.l.b16 %v2269
        %v2309 = vunpack.c.l.b16 %v2270
        %v2310 = vunpack.c.l.b16 %v2271
        %v2311 = vunpack.c.l.b16 %v2272
        %v2312 = vunpack.c.l.b16 %v2273
        %v2313 = vunpack.c.l.b16 %v2274
        %v2314 = vunpack.c.l.b16 %v2275
        %v2315 = vunpack.c.l.b16 %v2276
        %v2316 = vunpack.c.l.b16 %v2277
        %v2317 = vunpack.c.l.b16 %v2278
        %v2318 = vunpack.c.l.b16 %v2279
        %v2319 = vunpack.c.l.b16 %v2280
        %v2320 = vunpack.c.l.b16 %v2281
        %v2321 = vunpack.c.l.b16 %v2282
        %v2322 = vunpack.c.l.b16 %v2283
        %v2323 = vpack.c.b16 %v2308, %v2307
        %v2324 = vpack.c.b16 %v2310, %v2309
        %v2325 = vpack.c.b16 %v2312, %v2311
        %v2326 = vpack.c.b16 %v2314, %v2313
        %v2327 = vpack.c.b16 %v2316, %v2315
        %v2328 = vpack.c.b16 %v2318, %v2317
        %v2329 = vpack.c.b16 %v2320, %v2319
        %v2330 = vpack.c.b16 %v2322, %v2321
        %2339 = vmatprep.subr.bf16.mxu0 0
        %2340 = vmatpush1.bf16.msra.mxu0 %v2323
        %2341 = vmatprep.subr.bf16.mxu0 0
        %2342 = vmatpush1.bf16.msra.mxu0 %v2324
        %2343 = vmatprep.subr.bf16.mxu0 0
        %2344 = vmatpush1.bf16.msra.mxu0 %v2325
        %2345 = vmatprep.subr.bf16.mxu0 0
        %2346 = vmatpush1.bf16.msra.mxu0 %v2326
        %2347 = vmatprep.subr.bf16.mxu0 0
        %2348 = vmatpush1.bf16.msra.mxu0 %v2327
        %2349 = vmatprep.subr.bf16.mxu0 0
        %2350 = vmatpush1.bf16.msra.mxu0 %v2328
        %2351 = vmatprep.subr.bf16.mxu0 0
        %2352 = vmatpush1.bf16.msra.mxu0 %v2329
        %2353 = vmatprep.subr.bf16.mxu0 0
        %2354 = vmatpush1.bf16.msra.mxu0 %v2330
        %2355 = vmatprep.subr.bf16.mxu0 0
        %2356 = vmatpush1.bf16.msra.mxu0 0
        %2357 = vmatprep.subr.bf16.mxu0 0
        %2358 = vmatpush1.bf16.msra.mxu0 0
        %2359 = vmatprep.subr.bf16.mxu0 0
        %2360 = vmatpush1.bf16.msra.mxu0 0
        %2361 = vmatprep.subr.bf16.mxu0 0
        %2362 = vmatpush1.bf16.msra.mxu0 0
        %2363 = vmatprep.subr.bf16.mxu0 0
        %2364 = vmatpush1.bf16.msra.mxu0 0
        %2365 = vmatprep.subr.bf16.mxu0 0
        %2366 = vmatpush1.bf16.msra.mxu0 0
        %2367 = vmatprep.subr.bf16.mxu0 0
        %2368 = vmatpush1.bf16.msra.mxu0 0
        %2369 = vmatprep.subr.bf16.mxu0 0
        %2370 = vmatpush1.bf16.msra.mxu0 0
        %2371 = vmatprep.mubr.bf16.mxu0 0
        %2372 = vmatmul.mubr.bf16.gmra.mrb[0].mxu0 %v2264
        %v2373 = vpop.f32.mrb[0].mxu0
        %v2374 = vadd.f32 %v2289, %v2373
        %v2375 = vpop.f32.mrb[0].mxu0
        %v2376 = vpop.f32.mrb[0].mxu0
        %v2377 = vadd.f32 %v2289, %v2376
        %v2378 = vpop.f32.mrb[0].mxu0
        %2379 = vmatprep.mubr.bf16.mxu0 0
        %2380 = vmatmul.mubr.bf16.gmra.mrb[0].mxu0 %v2265
        %v2381 = vpop.f32.mrb[0].mxu0
        %v2382 = vadd.f32 %v2289, %v2381
        %v2383 = vpop.f32.mrb[0].mxu0
        %v2384 = vpop.f32.mrb[0].mxu0
        %v2385 = vadd.f32 %v2289, %v2384
        %v2386 = vpop.f32.mrb[0].mxu0
        %2387 = vmatprep.mubr.bf16.mxu0 0
        %2388 = vmatmul.mubr.bf16.gmra.mrb[0].mxu0 %v2266
        %v2389 = vpop.f32.mrb[0].mxu0
        %v2390 = vadd.f32 %v2289, %v2389
        %v2391 = vpop.f32.mrb[0].mxu0
        %v2392 = vpop.f32.mrb[0].mxu0
        %v2393 = vadd.f32 %v2289, %v2392
        %v2394 = vpop.f32.mrb[0].mxu0
        %2395 = vmatprep.mubr.bf16.mxu0 0
        %2396 = vmatmul.mubr.bf16.gmra.mrb[0].mxu0 %v2267
        %v2397 = vpop.f32.mrb[0].mxu0
        %v2398 = vadd.f32 %v2289, %v2397
        %v2399 = vpop.f32.mrb[0].mxu0
        %v2400 = vpop.f32.mrb[0].mxu0
        %v2401 = vadd.f32 %v2289, %v2400
        %v2402 = vpop.f32.mrb[0].mxu0
        %2403 = vdwg.mxu0
        %v2404 = vadd.f32 %v810, %v2374
        %v2405 = vadd.f32 %v811, %v2377
        %v2406 = vadd.f32 %v812, %v2382
        %v2407 = vadd.f32 %v813, %v2385
        %v2408 = vadd.f32 %v814, %v2390
        %v2409 = vadd.f32 %v815, %v2393
        %v2410 = vadd.f32 %v816, %v2398
        %v2411 = vadd.f32 %v817, %v2401
        %v2412 = vld [vmem:[%s775] sm:$0x1]
        %v2413 = vld [vmem:[%s778] sm:$0x1]
        %2414 = vadd.xlane.f32.xlu0 %v2404
        %v2415 = vpop.xlane.xlu0 %2414
        %2416 = vadd.xlane.f32.xlu0 %v2405
        %v2417 = vpop.xlane.xlu0 %2416
        %2418 = vadd.xlane.f32.xlu0 %v2406
        %v2419 = vpop.xlane.xlu0 %2418
        %2420 = vadd.xlane.f32.xlu0 %v2407
        %v2421 = vpop.xlane.xlu0 %2420
        %2422 = vadd.xlane.f32.xlu0 %v2408
        %v2423 = vpop.xlane.xlu0 %2422
        %2424 = vadd.xlane.f32.xlu0 %v2409
        %v2425 = vpop.xlane.xlu0 %2424
        %2426 = vadd.xlane.f32.xlu0 %v2410
        %v2427 = vpop.xlane.xlu0 %2426
        %2428 = vadd.xlane.f32.xlu0 %v2411
        %v2429 = vpop.xlane.xlu0 %2428
        %v2430 = vmul.f32 %v2415, %v836
        %v2431 = vmul.f32 %v2417, %v836
        %v2432 = vmul.f32 %v2419, %v836
        %v2433 = vmul.f32 %v2421, %v836
        %v2434 = vmul.f32 %v2423, %v836
        %v2435 = vmul.f32 %v2425, %v836
        %v2436 = vmul.f32 %v2427, %v836
        %v2437 = vmul.f32 %v2429, %v836
        %v2438 = vsub.f32 %v2404, %v2430
        %v2439 = vsub.f32 %v2405, %v2431
        %v2440 = vsub.f32 %v2406, %v2432
        %v2441 = vsub.f32 %v2407, %v2433
        %v2442 = vsub.f32 %v2408, %v2434
        %v2443 = vsub.f32 %v2409, %v2435
        %v2444 = vsub.f32 %v2410, %v2436
        %v2445 = vsub.f32 %v2411, %v2437
        %v2446 = vmul.f32 %v2438, %v2438
        %v2447 = vmul.f32 %v2439, %v2439
        %v2448 = vmul.f32 %v2440, %v2440
        %v2449 = vmul.f32 %v2441, %v2441
        %v2450 = vmul.f32 %v2442, %v2442
        %v2451 = vmul.f32 %v2443, %v2443
        %v2452 = vmul.f32 %v2444, %v2444
        %v2453 = vmul.f32 %v2445, %v2445
        %2454 = vadd.xlane.f32.xlu0 %v2446
        %v2455 = vpop.xlane.xlu0 %2454
        %2456 = vadd.xlane.f32.xlu0 %v2447
        %v2457 = vpop.xlane.xlu0 %2456
        %2458 = vadd.xlane.f32.xlu0 %v2448
        %v2459 = vpop.xlane.xlu0 %2458
        %2460 = vadd.xlane.f32.xlu0 %v2449
        %v2461 = vpop.xlane.xlu0 %2460
        %2462 = vadd.xlane.f32.xlu0 %v2450
        %v2463 = vpop.xlane.xlu0 %2462
        %2464 = vadd.xlane.f32.xlu0 %v2451
        %v2465 = vpop.xlane.xlu0 %2464
        %2466 = vadd.xlane.f32.xlu0 %v2452
        %v2467 = vpop.xlane.xlu0 %2466
        %2468 = vadd.xlane.f32.xlu0 %v2453
        %v2469 = vpop.xlane.xlu0 %2468
        %v2470 = vmul.f32 %v2455, %v836
        %v2471 = vmul.f32 %v2457, %v836
        %v2472 = vmul.f32 %v2459, %v836
        %v2473 = vmul.f32 %v2461, %v836
        %v2474 = vmul.f32 %v2463, %v836
        %v2475 = vmul.f32 %v2465, %v836
        %v2476 = vmul.f32 %v2467, %v836
        %v2477 = vmul.f32 %v2469, %v836
        %v2478 = vadd.f32 %v2470, 1e-05
        %v2479 = vadd.f32 %v2471, 1e-05
        %v2480 = vadd.f32 %v2472, 1e-05
        %v2481 = vadd.f32 %v2473, 1e-05
        %v2482 = vadd.f32 %v2474, 1e-05
        %v2483 = vadd.f32 %v2475, 1e-05
        %v2484 = vadd.f32 %v2476, 1e-05
        %v2485 = vadd.f32 %v2477, 1e-05
        %v2486 = vrsqrt.pop %v2478
        %v2487 = vrsqrt.pop %v2479
        %v2488 = vrsqrt.pop %v2480
        %v2489 = vrsqrt.pop %v2481
        %v2490 = vrsqrt.pop %v2482
        %v2491 = vrsqrt.pop %v2483
        %v2492 = vrsqrt.pop %v2484
        %v2493 = vrsqrt.pop %v2485
        %v2494 = vmul.f32 %v2438, %v2486
        %v2495 = vmul.f32 %v2439, %v2487
        %v2496 = vmul.f32 %v2440, %v2488
        %v2497 = vmul.f32 %v2441, %v2489
        %v2498 = vmul.f32 %v2442, %v2490
        %v2499 = vmul.f32 %v2443, %v2491
        %v2500 = vmul.f32 %v2444, %v2492
        %v2501 = vmul.f32 %v2445, %v2493
        %v2503 = vlaneseq
        %v2504 = vshrl.u32 %v2503, 7
        %v2505 = vsub.s32 0, %v2504
        %v2506 = vrot.slane %v2412, %v2505
        %v2508 = vmul.f32 %v2494, %v2506
        %v2509 = vmul.f32 %v2495, %v2506
        %v2510 = vmul.f32 %v2496, %v2506
        %v2511 = vmul.f32 %v2497, %v2506
        %v2512 = vmul.f32 %v2498, %v2506
        %v2513 = vmul.f32 %v2499, %v2506
        %v2514 = vmul.f32 %v2500, %v2506
        %v2515 = vmul.f32 %v2501, %v2506
        %v2517 = vlaneseq
        %v2518 = vshrl.u32 %v2517, 7
        %v2519 = vsub.s32 0, %v2518
        %v2520 = vrot.slane %v2413, %v2519
        %v2522 = vadd.f32 %v2508, %v2520
        %v2523 = vadd.f32 %v2509, %v2520
        %v2524 = vadd.f32 %v2510, %v2520
        %v2525 = vadd.f32 %v2511, %v2520
        %v2526 = vadd.f32 %v2512, %v2520
        %v2527 = vadd.f32 %v2513, %v2520
        %v2528 = vadd.f32 %v2514, %v2520
        %v2529 = vadd.f32 %v2515, %v2520
        %v2530 = vpack.c.bf16 %v2523, %v2522
        %v2531 = vpack.c.bf16 %v2525, %v2524
        %v2532 = vpack.c.bf16 %v2527, %v2526
        %v2533 = vpack.c.bf16 %v2529, %v2528
        %v2534 = vld [vmem:[%s671] sm:$0xff]
        %v2535 = vld [vmem:[%s671 + $0x8] sm:$0xff]
        %v2536 = vld [vmem:[%s671 + $0x10] sm:$0xff]
        %v2537 = vld [vmem:[%s671 + $0x18] sm:$0xff]
        %v2538 = vld [vmem:[%s671 + $0x20] sm:$0xff]
        %v2539 = vld [vmem:[%s671 + $0x28] sm:$0xff]
        %v2540 = vld [vmem:[%s671 + $0x30] sm:$0xff]
        %v2541 = vld [vmem:[%s671 + $0x38] sm:$0xff]
        %v2542 = vld [vmem:[%s671 + $0x40] sm:$0xff]
        %v2543 = vld [vmem:[%s671 + $0x48] sm:$0xff]
        %v2544 = vld [vmem:[%s671 + $0x50] sm:$0xff]
        %v2545 = vld [vmem:[%s671 + $0x58] sm:$0xff]
        %v2546 = vld [vmem:[%s671 + $0x60] sm:$0xff]
        %v2547 = vld [vmem:[%s671 + $0x68] sm:$0xff]
        %v2548 = vld [vmem:[%s671 + $0x70] sm:$0xff]
        %v2549 = vld [vmem:[%s671 + $0x78] sm:$0xff]
        %v2550 = vld [vmem:[%s671 + $0x80] sm:$0xff]
        %v2551 = vld [vmem:[%s671 + $0x88] sm:$0xff]
        %v2552 = vld [vmem:[%s671 + $0x90] sm:$0xff]
        %v2553 = vld [vmem:[%s671 + $0x98] sm:$0xff]
        %v2554 = vld [vmem:[%s671 + $0xa0] sm:$0xff]
        %v2555 = vld [vmem:[%s671 + $0xa8] sm:$0xff]
        %v2556 = vld [vmem:[%s671 + $0xb0] sm:$0xff]
        %v2557 = vld [vmem:[%s671 + $0xb8] sm:$0xff]
        %v2558 = vld [vmem:[%s671 + $0xc0] sm:$0xff]
        %v2559 = vld [vmem:[%s671 + $0xc8] sm:$0xff]
        %v2560 = vld [vmem:[%s671 + $0xd0] sm:$0xff]
        %v2561 = vld [vmem:[%s671 + $0xd8] sm:$0xff]
        %v2562 = vld [vmem:[%s671 + $0xe0] sm:$0xff]
        %v2563 = vld [vmem:[%s671 + $0xe8] sm:$0xff]
        %v2564 = vld [vmem:[%s671 + $0xf0] sm:$0xff]
        %v2565 = vld [vmem:[%s671 + $0xf8] sm:$0xff]
        %v2566 = vld [vmem:[%s782] sm:$0xf]
        %v2568 = vlaneseq
        %v2569 = vshrl.u32 %v2568, 7
        %v2570 = vsub.s32 0, %v2569
        %v2571 = vrot.slane %v2566, %v2570
        %v2572 = vlaneseq
        %v2573 = vshrl.u32 %v2572, 7
        %v2574 = vsub.s32 1, %v2573
        %v2575 = vrot.slane %v2566, %v2574
        %v2576 = vlaneseq
        %v2577 = vshrl.u32 %v2576, 7
        %v2578 = vsub.s32 2, %v2577
        %v2579 = vrot.slane %v2566, %v2578
        %v2580 = vlaneseq
        %v2581 = vshrl.u32 %v2580, 7
        %v2582 = vsub.s32 3, %v2581
        %v2583 = vrot.slane %v2566, %v2582
        %v2620 = vunpack.c.l.b16 %v2534
        %v2621 = vunpack.c.h.b16 %v2534
        %v2622 = vunpack.c.l.b16 %v2535
        %v2623 = vunpack.c.h.b16 %v2535
        %v2624 = vunpack.c.l.b16 %v2536
        %v2625 = vunpack.c.h.b16 %v2536
        %v2626 = vunpack.c.l.b16 %v2537
        %v2627 = vunpack.c.h.b16 %v2537
        %v2628 = vunpack.c.l.b16 %v2538
        %v2629 = vunpack.c.h.b16 %v2538
        %v2630 = vunpack.c.l.b16 %v2539
        %v2631 = vunpack.c.h.b16 %v2539
        %v2632 = vunpack.c.l.b16 %v2540
        %v2633 = vunpack.c.h.b16 %v2540
        %v2634 = vunpack.c.l.b16 %v2541
        %v2635 = vunpack.c.h.b16 %v2541
        %v2636 = vunpack.c.l.b16 %v2542
        %v2637 = vunpack.c.h.b16 %v2542
        %v2638 = vunpack.c.l.b16 %v2543
        %v2639 = vunpack.c.h.b16 %v2543
        %v2640 = vunpack.c.l.b16 %v2544
        %v2641 = vunpack.c.h.b16 %v2544
        %v2642 = vunpack.c.l.b16 %v2545
        %v2643 = vunpack.c.h.b16 %v2545
        %v2644 = vunpack.c.l.b16 %v2546
        %v2645 = vunpack.c.h.b16 %v2546
        %v2646 = vunpack.c.l.b16 %v2547
        %v2647 = vunpack.c.h.b16 %v2547
        %v2648 = vunpack.c.l.b16 %v2548
        %v2649 = vunpack.c.h.b16 %v2548
        %v2650 = vunpack.c.l.b16 %v2549
        %v2651 = vunpack.c.h.b16 %v2549
        %v2652 = vunpack.c.l.b16 %v2550
        %v2653 = vunpack.c.h.b16 %v2550
        %v2654 = vunpack.c.l.b16 %v2551
        %v2655 = vunpack.c.h.b16 %v2551
        %v2656 = vunpack.c.l.b16 %v2552
        %v2657 = vunpack.c.h.b16 %v2552
        %v2658 = vunpack.c.l.b16 %v2553
        %v2659 = vunpack.c.h.b16 %v2553
        %v2660 = vunpack.c.l.b16 %v2554
        %v2661 = vunpack.c.h.b16 %v2554
        %v2662 = vunpack.c.l.b16 %v2555
        %v2663 = vunpack.c.h.b16 %v2555
        %v2664 = vunpack.c.l.b16 %v2556
        %v2665 = vunpack.c.h.b16 %v2556
        %v2666 = vunpack.c.l.b16 %v2557
        %v2667 = vunpack.c.h.b16 %v2557
        %v2668 = vunpack.c.l.b16 %v2558
        %v2669 = vunpack.c.h.b16 %v2558
        %v2670 = vunpack.c.l.b16 %v2559
        %v2671 = vunpack.c.h.b16 %v2559
        %v2672 = vunpack.c.l.b16 %v2560
        %v2673 = vunpack.c.h.b16 %v2560
        %v2674 = vunpack.c.l.b16 %v2561
        %v2675 = vunpack.c.h.b16 %v2561
        %v2676 = vunpack.c.l.b16 %v2562
        %v2677 = vunpack.c.h.b16 %v2562
        %v2678 = vunpack.c.l.b16 %v2563
        %v2679 = vunpack.c.h.b16 %v2563
        %v2680 = vunpack.c.l.b16 %v2564
        %v2681 = vunpack.c.h.b16 %v2564
        %v2682 = vunpack.c.l.b16 %v2565
        %v2683 = vunpack.c.h.b16 %v2565
        %v2684 = vpack.c.b16 %v2624, %v2620
        %v2685 = vpack.c.b16 %v2625, %v2621
        %v2686 = vpack.c.b16 %v2626, %v2622
        %v2687 = vpack.c.b16 %v2627, %v2623
        %v2688 = vpack.c.b16 %v2632, %v2628
        %v2689 = vpack.c.b16 %v2633, %v2629
        %v2690 = vpack.c.b16 %v2634, %v2630
        %v2691 = vpack.c.b16 %v2635, %v2631
        %v2692 = vpack.c.b16 %v2640, %v2636
        %v2693 = vpack.c.b16 %v2641, %v2637
        %v2694 = vpack.c.b16 %v2642, %v2638
        %v2695 = vpack.c.b16 %v2643, %v2639
        %v2696 = vpack.c.b16 %v2648, %v2644
        %v2697 = vpack.c.b16 %v2649, %v2645
        %v2698 = vpack.c.b16 %v2650, %v2646
        %v2699 = vpack.c.b16 %v2651, %v2647
        %v2700 = vpack.c.b16 %v2656, %v2652
        %v2701 = vpack.c.b16 %v2657, %v2653
        %v2702 = vpack.c.b16 %v2658, %v2654
        %v2703 = vpack.c.b16 %v2659, %v2655
        %v2704 = vpack.c.b16 %v2664, %v2660
        %v2705 = vpack.c.b16 %v2665, %v2661
        %v2706 = vpack.c.b16 %v2666, %v2662
        %v2707 = vpack.c.b16 %v2667, %v2663
        %v2708 = vpack.c.b16 %v2672, %v2668
        %v2709 = vpack.c.b16 %v2673, %v2669
        %v2710 = vpack.c.b16 %v2674, %v2670
        %v2711 = vpack.c.b16 %v2675, %v2671
        %v2712 = vpack.c.b16 %v2680, %v2676
        %v2713 = vpack.c.b16 %v2681, %v2677
        %v2714 = vpack.c.b16 %v2682, %v2678
        %v2715 = vpack.c.b16 %v2683, %v2679
        %2748 = vmatprep.subr.bf16.mxu0 %v2685
        %2749 = vmatpush1.bf16.msra.mxu0 %v2684
        %2750 = vmatprep.subr.bf16.mxu0 %v2689
        %2751 = vmatpush1.bf16.msra.mxu0 %v2688
        %2752 = vmatprep.subr.bf16.mxu0 %v2693
        %2753 = vmatpush1.bf16.msra.mxu0 %v2692
        %2754 = vmatprep.subr.bf16.mxu0 %v2697
        %2755 = vmatpush1.bf16.msra.mxu0 %v2696
        %2756 = vmatprep.subr.bf16.mxu0 %v2701
        %2757 = vmatpush1.bf16.msra.mxu0 %v2700
        %2758 = vmatprep.subr.bf16.mxu0 %v2705
        %2759 = vmatpush1.bf16.msra.mxu0 %v2704
        %2760 = vmatprep.subr.bf16.mxu0 %v2709
        %2761 = vmatpush1.bf16.msra.mxu0 %v2708
        %2762 = vmatprep.subr.bf16.mxu0 %v2713
        %2763 = vmatpush1.bf16.msra.mxu0 %v2712
        %2764 = vmatprep.subr.bf16.mxu0 0
        %2765 = vmatpush1.bf16.msra.mxu0 0
        %2766 = vmatprep.subr.bf16.mxu0 0
        %2767 = vmatpush1.bf16.msra.mxu0 0
        %2768 = vmatprep.subr.bf16.mxu0 0
        %2769 = vmatpush1.bf16.msra.mxu0 0
        %2770 = vmatprep.subr.bf16.mxu0 0
        %2771 = vmatpush1.bf16.msra.mxu0 0
        %2772 = vmatprep.subr.bf16.mxu0 0
        %2773 = vmatpush1.bf16.msra.mxu0 0
        %2774 = vmatprep.subr.bf16.mxu0 0
        %2775 = vmatpush1.bf16.msra.mxu0 0
        %2776 = vmatprep.subr.bf16.mxu0 0
        %2777 = vmatpush1.bf16.msra.mxu0 0
        %2778 = vmatprep.subr.bf16.mxu0 0
        %2779 = vmatpush1.bf16.msra.mxu0 0
        %2780 = vmatprep.mubr.bf16.mxu0 0
        %2781 = vmatmul.mubr.bf16.gmra.mrb[0].mxu0 %v2530
        %v2782 = vpop.f32.mrb[0].mxu0
        %v2783 = vadd.f32 %v2571, %v2782
        %v2784 = vpop.f32.mrb[0].mxu0
        %v2785 = vadd.f32 %v2575, %v2784
        %v2786 = vpop.f32.mrb[0].mxu0
        %v2787 = vadd.f32 %v2571, %v2786
        %v2788 = vpop.f32.mrb[0].mxu0
        %v2789 = vadd.f32 %v2575, %v2788
        %2790 = vmatprep.mubr.bf16.mxu0 0
        %2791 = vmatmul.mubr.bf16.gmra.mrb[0].mxu0 %v2531
        %v2792 = vpop.f32.mrb[0].mxu0
        %v2793 = vadd.f32 %v2571, %v2792
        %v2794 = vpop.f32.mrb[0].mxu0
        %v2795 = vadd.f32 %v2575, %v2794
        %v2796 = vpop.f32.mrb[0].mxu0
        %v2797 = vadd.f32 %v2571, %v2796
        %v2798 = vpop.f32.mrb[0].mxu0
        %v2799 = vadd.f32 %v2575, %v2798
        %2800 = vmatprep.mubr.bf16.mxu0 0
        %2801 = vmatmul.mubr.bf16.gmra.mrb[0].mxu0 %v2532
        %v2802 = vpop.f32.mrb[0].mxu0
        %v2803 = vadd.f32 %v2571, %v2802
        %v2804 = vpop.f32.mrb[0].mxu0
        %v2805 = vadd.f32 %v2575, %v2804
        %v2806 = vpop.f32.mrb[0].mxu0
        %v2807 = vadd.f32 %v2571, %v2806
        %v2808 = vpop.f32.mrb[0].mxu0
        %v2809 = vadd.f32 %v2575, %v2808
        %2810 = vmatprep.mubr.bf16.mxu0 0
        %2811 = vmatmul.mubr.bf16.gmra.mrb[0].mxu0 %v2533
        %v2812 = vpop.f32.mrb[0].mxu0
        %v2813 = vadd.f32 %v2571, %v2812
        %v2814 = vpop.f32.mrb[0].mxu0
        %v2815 = vadd.f32 %v2575, %v2814
        %v2816 = vpop.f32.mrb[0].mxu0
        %v2817 = vadd.f32 %v2571, %v2816
        %v2818 = vpop.f32.mrb[0].mxu0
        %v2819 = vadd.f32 %v2575, %v2818
        %2820 = vdwg.mxu0
        %2821 = vmatprep.subr.bf16.mxu0 %v2687
        %2822 = vmatpush1.bf16.msra.mxu0 %v2686
        %2823 = vmatprep.subr.bf16.mxu0 %v2691
        %2824 = vmatpush1.bf16.msra.mxu0 %v2690
        %2825 = vmatprep.subr.bf16.mxu0 %v2695
        %2826 = vmatpush1.bf16.msra.mxu0 %v2694
        %2827 = vmatprep.subr.bf16.mxu0 %v2699
        %2828 = vmatpush1.bf16.msra.mxu0 %v2698
        %2829 = vmatprep.subr.bf16.mxu0 %v2703
        %2830 = vmatpush1.bf16.msra.mxu0 %v2702
        %2831 = vmatprep.subr.bf16.mxu0 %v2707
        %2832 = vmatpush1.bf16.msra.mxu0 %v2706
        %2833 = vmatprep.subr.bf16.mxu0 %v2711
        %2834 = vmatpush1.bf16.msra.mxu0 %v2710
        %2835 = vmatprep.subr.bf16.mxu0 %v2715
        %2836 = vmatpush1.bf16.msra.mxu0 %v2714
        %2837 = vmatprep.subr.bf16.mxu0 0
        %2838 = vmatpush1.bf16.msra.mxu0 0
        %2839 = vmatprep.subr.bf16.mxu0 0
        %2840 = vmatpush1.bf16.msra.mxu0 0
        %2841 = vmatprep.subr.bf16.mxu0 0
        %2842 = vmatpush1.bf16.msra.mxu0 0
        %2843 = vmatprep.subr.bf16.mxu0 0
        %2844 = vmatpush1.bf16.msra.mxu0 0
        %2845 = vmatprep.subr.bf16.mxu0 0
        %2846 = vmatpush1.bf16.msra.mxu0 0
        %2847 = vmatprep.subr.bf16.mxu0 0
        %2848 = vmatpush1.bf16.msra.mxu0 0
        %2849 = vmatprep.subr.bf16.mxu0 0
        %2850 = vmatpush1.bf16.msra.mxu0 0
        %2851 = vmatprep.subr.bf16.mxu0 0
        %2852 = vmatpush1.bf16.msra.mxu0 0
        %2853 = vmatprep.mubr.bf16.mxu0 0
        %2854 = vmatmul.mubr.bf16.gmra.mrb[0].mxu0 %v2530
        %v2855 = vpop.f32.mrb[0].mxu0
        %v2856 = vadd.f32 %v2579, %v2855
        %v2857 = vpop.f32.mrb[0].mxu0
        %v2858 = vadd.f32 %v2583, %v2857
        %v2859 = vpop.f32.mrb[0].mxu0
        %v2860 = vadd.f32 %v2579, %v2859
        %v2861 = vpop.f32.mrb[0].mxu0
        %v2862 = vadd.f32 %v2583, %v2861
        %2863 = vmatprep.mubr.bf16.mxu0 0
        %2864 = vmatmul.mubr.bf16.gmra.mrb[0].mxu0 %v2531
        %v2865 = vpop.f32.mrb[0].mxu0
        %v2866 = vadd.f32 %v2579, %v2865
        %v2867 = vpop.f32.mrb[0].mxu0
        %v2868 = vadd.f32 %v2583, %v2867
        %v2869 = vpop.f32.mrb[0].mxu0
        %v2870 = vadd.f32 %v2579, %v2869
        %v2871 = vpop.f32.mrb[0].mxu0
        %v2872 = vadd.f32 %v2583, %v2871
        %2873 = vmatprep.mubr.bf16.mxu0 0
        %2874 = vmatmul.mubr.bf16.gmra.mrb[0].mxu0 %v2532
        %v2875 = vpop.f32.mrb[0].mxu0
        %v2876 = vadd.f32 %v2579, %v2875
        %v2877 = vpop.f32.mrb[0].mxu0
        %v2878 = vadd.f32 %v2583, %v2877
        %v2879 = vpop.f32.mrb[0].mxu0
        %v2880 = vadd.f32 %v2579, %v2879
        %v2881 = vpop.f32.mrb[0].mxu0
        %v2882 = vadd.f32 %v2583, %v2881
        %2883 = vmatprep.mubr.bf16.mxu0 0
        %2884 = vmatmul.mubr.bf16.gmra.mrb[0].mxu0 %v2533
        %v2885 = vpop.f32.mrb[0].mxu0
        %v2886 = vadd.f32 %v2579, %v2885
        %v2887 = vpop.f32.mrb[0].mxu0
        %v2888 = vadd.f32 %v2583, %v2887
        %v2889 = vpop.f32.mrb[0].mxu0
        %v2890 = vadd.f32 %v2579, %v2889
        %v2891 = vpop.f32.mrb[0].mxu0
        %v2892 = vadd.f32 %v2583, %v2891
        %2893 = vdwg.mxu0
        %v2894 = vpack.c.bf16 %v2787, %v2783
        %v2895 = vpack.c.bf16 %v2789, %v2785
        %v2896 = vpack.c.bf16 %v2860, %v2856
        %v2897 = vpack.c.bf16 %v2862, %v2858
        %v2898 = vpack.c.bf16 %v2797, %v2793
        %v2899 = vpack.c.bf16 %v2799, %v2795
        %v2900 = vpack.c.bf16 %v2870, %v2866
        %v2901 = vpack.c.bf16 %v2872, %v2868
        %v2902 = vpack.c.bf16 %v2807, %v2803
        %v2903 = vpack.c.bf16 %v2809, %v2805
        %v2904 = vpack.c.bf16 %v2880, %v2876
        %v2905 = vpack.c.bf16 %v2882, %v2878
        %v2906 = vpack.c.bf16 %v2817, %v2813
        %v2907 = vpack.c.bf16 %v2819, %v2815
        %v2908 = vpack.c.bf16 %v2890, %v2886
        %v2909 = vpack.c.bf16 %v2892, %v2888
        %v2910 = vmul.bf16 %v2894, 1071267802
        %v2911 = vmul.bf16 %v2895, 1071267802
        %v2912 = vmul.bf16 %v2896, 1071267802
        %v2913 = vmul.bf16 %v2897, 1071267802
        %v2914 = vmul.bf16 %v2898, 1071267802
        %v2915 = vmul.bf16 %v2899, 1071267802
        %v2916 = vmul.bf16 %v2900, 1071267802
        %v2917 = vmul.bf16 %v2901, 1071267802
        %v2918 = vmul.bf16 %v2902, 1071267802
        %v2919 = vmul.bf16 %v2903, 1071267802
        %v2920 = vmul.bf16 %v2904, 1071267802
        %v2921 = vmul.bf16 %v2905, 1071267802
        %v2922 = vmul.bf16 %v2906, 1071267802
        %v2923 = vmul.bf16 %v2907, 1071267802
        %v2924 = vmul.bf16 %v2908, 1071267802
        %v2925 = vmul.bf16 %v2909, 1071267802
        %v2926 = vxor.u32 %v2910, 2147516416
        %v2927 = vxor.u32 %v2911, 2147516416
        %v2928 = vxor.u32 %v2912, 2147516416
        %v2929 = vxor.u32 %v2913, 2147516416
        %v2930 = vxor.u32 %v2914, 2147516416
        %v2931 = vxor.u32 %v2915, 2147516416
        %v2932 = vxor.u32 %v2916, 2147516416
        %v2933 = vxor.u32 %v2917, 2147516416
        %v2934 = vxor.u32 %v2918, 2147516416
        %v2935 = vxor.u32 %v2919, 2147516416
        %v2936 = vxor.u32 %v2920, 2147516416
        %v2937 = vxor.u32 %v2921, 2147516416
        %v2938 = vxor.u32 %v2922, 2147516416
        %v2939 = vxor.u32 %v2923, 2147516416
        %v2940 = vxor.u32 %v2924, 2147516416
        %v2941 = vxor.u32 %v2925, 2147516416
        %v2943 = vmul.bf16 %v2926, 1069105081
        %v2944 = vpow.bf16.pop %v2943
        %v2946 = vmul.bf16 %v2927, 1069105081
        %v2947 = vpow.bf16.pop %v2946
        %v2949 = vmul.bf16 %v2928, 1069105081
        %v2950 = vpow.bf16.pop %v2949
        %v2952 = vmul.bf16 %v2929, 1069105081
        %v2953 = vpow.bf16.pop %v2952
        %v2955 = vmul.bf16 %v2930, 1069105081
        %v2956 = vpow.bf16.pop %v2955
        %v2958 = vmul.bf16 %v2931, 1069105081
        %v2959 = vpow.bf16.pop %v2958
        %v2961 = vmul.bf16 %v2932, 1069105081
        %v2962 = vpow.bf16.pop %v2961
        %v2964 = vmul.bf16 %v2933, 1069105081
        %v2965 = vpow.bf16.pop %v2964
        %v2967 = vmul.bf16 %v2934, 1069105081
        %v2968 = vpow.bf16.pop %v2967
        %v2970 = vmul.bf16 %v2935, 1069105081
        %v2971 = vpow.bf16.pop %v2970
        %v2973 = vmul.bf16 %v2936, 1069105081
        %v2974 = vpow.bf16.pop %v2973
        %v2976 = vmul.bf16 %v2937, 1069105081
        %v2977 = vpow.bf16.pop %v2976
        %v2979 = vmul.bf16 %v2938, 1069105081
        %v2980 = vpow.bf16.pop %v2979
        %v2982 = vmul.bf16 %v2939, 1069105081
        %v2983 = vpow.bf16.pop %v2982
        %v2985 = vmul.bf16 %v2940, 1069105081
        %v2986 = vpow.bf16.pop %v2985
        %v2988 = vmul.bf16 %v2941, 1069105081
        %v2989 = vpow.bf16.pop %v2988
        %v2990 = vadd.bf16 %v2944, 1065369472
        %v2991 = vadd.bf16 %v2947, 1065369472
        %v2992 = vadd.bf16 %v2950, 1065369472
        %v2993 = vadd.bf16 %v2953, 1065369472
        %v2994 = vadd.bf16 %v2956, 1065369472
        %v2995 = vadd.bf16 %v2959, 1065369472
        %v2996 = vadd.bf16 %v2962, 1065369472
        %v2997 = vadd.bf16 %v2965, 1065369472
        %v2998 = vadd.bf16 %v2968, 1065369472
        %v2999 = vadd.bf16 %v2971, 1065369472
        %v3000 = vadd.bf16 %v2974, 1065369472
        %v3001 = vadd.bf16 %v2977, 1065369472
        %v3002 = vadd.bf16 %v2980, 1065369472
        %v3003 = vadd.bf16 %v2983, 1065369472
        %v3004 = vadd.bf16 %v2986, 1065369472
        %v3005 = vadd.bf16 %v2989, 1065369472
        %v3006 = vrcp.bf16.pop %v2990
        %v3007 = vmul.bf16 1065369472, %v3006
        %v3008 = vrcp.bf16.pop %v2991
        %v3009 = vmul.bf16 1065369472, %v3008
        %v3010 = vrcp.bf16.pop %v2992
        %v3011 = vmul.bf16 1065369472, %v3010
        %v3012 = vrcp.bf16.pop %v2993
        %v3013 = vmul.bf16 1065369472, %v3012
        %v3014 = vrcp.bf16.pop %v2994
        %v3015 = vmul.bf16 1065369472, %v3014
        %v3016 = vrcp.bf16.pop %v2995
        %v3017 = vmul.bf16 1065369472, %v3016
        %v3018 = vrcp.bf16.pop %v2996
        %v3019 = vmul.bf16 1065369472, %v3018
        %v3020 = vrcp.bf16.pop %v2997
        %v3021 = vmul.bf16 1065369472, %v3020
        %v3022 = vrcp.bf16.pop %v2998
        %v3023 = vmul.bf16 1065369472, %v3022
        %v3024 = vrcp.bf16.pop %v2999
        %v3025 = vmul.bf16 1065369472, %v3024
        %v3026 = vrcp.bf16.pop %v3000
        %v3027 = vmul.bf16 1065369472, %v3026
        %v3028 = vrcp.bf16.pop %v3001
        %v3029 = vmul.bf16 1065369472, %v3028
        %v3030 = vrcp.bf16.pop %v3002
        %v3031 = vmul.bf16 1065369472, %v3030
        %v3032 = vrcp.bf16.pop %v3003
        %v3033 = vmul.bf16 1065369472, %v3032
        %v3034 = vrcp.bf16.pop %v3004
        %v3035 = vmul.bf16 1065369472, %v3034
        %v3036 = vrcp.bf16.pop %v3005
        %v3037 = vmul.bf16 1065369472, %v3036
        %v3038 = vmul.bf16 %v2894, %v3007
        %v3039 = vmul.bf16 %v2895, %v3009
        %v3040 = vmul.bf16 %v2896, %v3011
        %v3041 = vmul.bf16 %v2897, %v3013
        %v3042 = vmul.bf16 %v2898, %v3015
        %v3043 = vmul.bf16 %v2899, %v3017
        %v3044 = vmul.bf16 %v2900, %v3019
        %v3045 = vmul.bf16 %v2901, %v3021
        %v3046 = vmul.bf16 %v2902, %v3023
        %v3047 = vmul.bf16 %v2903, %v3025
        %v3048 = vmul.bf16 %v2904, %v3027
        %v3049 = vmul.bf16 %v2905, %v3029
        %v3050 = vmul.bf16 %v2906, %v3031
        %v3051 = vmul.bf16 %v2907, %v3033
        %v3052 = vmul.bf16 %v2908, %v3035
        %v3053 = vmul.bf16 %v2909, %v3037
        %v3054 = vld [vmem:[%s680] sm:$0xf]
        %v3055 = vld [vmem:[%s680 + $0x4] sm:$0xf]
        %v3056 = vld [vmem:[%s680 + $0x8] sm:$0xf]
        %v3057 = vld [vmem:[%s680 + $0xc] sm:$0xf]
        %v3058 = vld [vmem:[%s680 + $0x10] sm:$0xf]
        %v3059 = vld [vmem:[%s680 + $0x14] sm:$0xf]
        %v3060 = vld [vmem:[%s680 + $0x18] sm:$0xf]
        %v3061 = vld [vmem:[%s680 + $0x1c] sm:$0xf]
        %v3062 = vld [vmem:[%s680 + $0x20] sm:$0xf]
        %v3063 = vld [vmem:[%s680 + $0x24] sm:$0xf]
        %v3064 = vld [vmem:[%s680 + $0x28] sm:$0xf]
        %v3065 = vld [vmem:[%s680 + $0x2c] sm:$0xf]
        %v3066 = vld [vmem:[%s680 + $0x30] sm:$0xf]
        %v3067 = vld [vmem:[%s680 + $0x34] sm:$0xf]
        %v3068 = vld [vmem:[%s680 + $0x38] sm:$0xf]
        %v3069 = vld [vmem:[%s680 + $0x3c] sm:$0xf]
        %v3070 = vld [vmem:[%s680 + $0x40] sm:$0xf]
        %v3071 = vld [vmem:[%s680 + $0x44] sm:$0xf]
        %v3072 = vld [vmem:[%s680 + $0x48] sm:$0xf]
        %v3073 = vld [vmem:[%s680 + $0x4c] sm:$0xf]
        %v3074 = vld [vmem:[%s680 + $0x50] sm:$0xf]
        %v3075 = vld [vmem:[%s680 + $0x54] sm:$0xf]
        %v3076 = vld [vmem:[%s680 + $0x58] sm:$0xf]
        %v3077 = vld [vmem:[%s680 + $0x5c] sm:$0xf]
        %v3078 = vld [vmem:[%s680 + $0x60] sm:$0xf]
        %v3079 = vld [vmem:[%s680 + $0x64] sm:$0xf]
        %v3080 = vld [vmem:[%s680 + $0x68] sm:$0xf]
        %v3081 = vld [vmem:[%s680 + $0x6c] sm:$0xf]
        %v3082 = vld [vmem:[%s680 + $0x70] sm:$0xf]
        %v3083 = vld [vmem:[%s680 + $0x74] sm:$0xf]
        %v3084 = vld [vmem:[%s680 + $0x78] sm:$0xf]
        %v3085 = vld [vmem:[%s680 + $0x7c] sm:$0xf]
        %v3086 = vld [vmem:[%s680 + $0x80] sm:$0xf]
        %v3087 = vld [vmem:[%s680 + $0x84] sm:$0xf]
        %v3088 = vld [vmem:[%s680 + $0x88] sm:$0xf]
        %v3089 = vld [vmem:[%s680 + $0x8c] sm:$0xf]
        %v3090 = vld [vmem:[%s680 + $0x90] sm:$0xf]
        %v3091 = vld [vmem:[%s680 + $0x94] sm:$0xf]
        %v3092 = vld [vmem:[%s680 + $0x98] sm:$0xf]
        %v3093 = vld [vmem:[%s680 + $0x9c] sm:$0xf]
        %v3094 = vld [vmem:[%s680 + $0xa0] sm:$0xf]
        %v3095 = vld [vmem:[%s680 + $0xa4] sm:$0xf]
        %v3096 = vld [vmem:[%s680 + $0xa8] sm:$0xf]
        %v3097 = vld [vmem:[%s680 + $0xac] sm:$0xf]
        %v3098 = vld [vmem:[%s680 + $0xb0] sm:$0xf]
        %v3099 = vld [vmem:[%s680 + $0xb4] sm:$0xf]
        %v3100 = vld [vmem:[%s680 + $0xb8] sm:$0xf]
        %v3101 = vld [vmem:[%s680 + $0xbc] sm:$0xf]
        %v3102 = vld [vmem:[%s680 + $0xc0] sm:$0xf]
        %v3103 = vld [vmem:[%s680 + $0xc4] sm:$0xf]
        %v3104 = vld [vmem:[%s680 + $0xc8] sm:$0xf]
        %v3105 = vld [vmem:[%s680 + $0xcc] sm:$0xf]
        %v3106 = vld [vmem:[%s680 + $0xd0] sm:$0xf]
        %v3107 = vld [vmem:[%s680 + $0xd4] sm:$0xf]
        %v3108 = vld [vmem:[%s680 + $0xd8] sm:$0xf]
        %v3109 = vld [vmem:[%s680 + $0xdc] sm:$0xf]
        %v3110 = vld [vmem:[%s680 + $0xe0] sm:$0xf]
        %v3111 = vld [vmem:[%s680 + $0xe4] sm:$0xf]
        %v3112 = vld [vmem:[%s680 + $0xe8] sm:$0xf]
        %v3113 = vld [vmem:[%s680 + $0xec] sm:$0xf]
        %v3114 = vld [vmem:[%s680 + $0xf0] sm:$0xf]
        %v3115 = vld [vmem:[%s680 + $0xf4] sm:$0xf]
        %v3116 = vld [vmem:[%s680 + $0xf8] sm:$0xf]
        %v3117 = vld [vmem:[%s680 + $0xfc] sm:$0xf]
        %v3118 = vld [vmem:[%s785] sm:$0x1]
        %v3120 = vlaneseq
        %v3121 = vshrl.u32 %v3120, 7
        %v3122 = vsub.s32 0, %v3121
        %v3123 = vrot.slane %v3118, %v3122
        %v3189 = vunpack.c.l.b16 %v3054
        %v3190 = vunpack.c.l.b16 %v3055
        %v3191 = vunpack.c.l.b16 %v3056
        %v3192 = vunpack.c.l.b16 %v3057
        %v3193 = vunpack.c.l.b16 %v3058
        %v3194 = vunpack.c.l.b16 %v3059
        %v3195 = vunpack.c.l.b16 %v3060
        %v3196 = vunpack.c.l.b16 %v3061
        %v3197 = vunpack.c.l.b16 %v3062
        %v3198 = vunpack.c.l.b16 %v3063
        %v3199 = vunpack.c.l.b16 %v3064
        %v3200 = vunpack.c.l.b16 %v3065
        %v3201 = vunpack.c.l.b16 %v3066
        %v3202 = vunpack.c.l.b16 %v3067
        %v3203 = vunpack.c.l.b16 %v3068
        %v3204 = vunpack.c.l.b16 %v3069
        %v3205 = vunpack.c.l.b16 %v3070
        %v3206 = vunpack.c.l.b16 %v3071
        %v3207 = vunpack.c.l.b16 %v3072
        %v3208 = vunpack.c.l.b16 %v3073
        %v3209 = vunpack.c.l.b16 %v3074
        %v3210 = vunpack.c.l.b16 %v3075
        %v3211 = vunpack.c.l.b16 %v3076
        %v3212 = vunpack.c.l.b16 %v3077
        %v3213 = vunpack.c.l.b16 %v3078
        %v3214 = vunpack.c.l.b16 %v3079
        %v3215 = vunpack.c.l.b16 %v3080
        %v3216 = vunpack.c.l.b16 %v3081
        %v3217 = vunpack.c.l.b16 %v3082
        %v3218 = vunpack.c.l.b16 %v3083
        %v3219 = vunpack.c.l.b16 %v3084
        %v3220 = vunpack.c.l.b16 %v3085
        %v3221 = vunpack.c.l.b16 %v3086
        %v3222 = vunpack.c.l.b16 %v3087
        %v3223 = vunpack.c.l.b16 %v3088
        %v3224 = vunpack.c.l.b16 %v3089
        %v3225 = vunpack.c.l.b16 %v3090
        %v3226 = vunpack.c.l.b16 %v3091
        %v3227 = vunpack.c.l.b16 %v3092
        %v3228 = vunpack.c.l.b16 %v3093
        %v3229 = vunpack.c.l.b16 %v3094
        %v3230 = vunpack.c.l.b16 %v3095
        %v3231 = vunpack.c.l.b16 %v3096
        %v3232 = vunpack.c.l.b16 %v3097
        %v3233 = vunpack.c.l.b16 %v3098
        %v3234 = vunpack.c.l.b16 %v3099
        %v3235 = vunpack.c.l.b16 %v3100
        %v3236 = vunpack.c.l.b16 %v3101
        %v3237 = vunpack.c.l.b16 %v3102
        %v3238 = vunpack.c.l.b16 %v3103
        %v3239 = vunpack.c.l.b16 %v3104
        %v3240 = vunpack.c.l.b16 %v3105
        %v3241 = vunpack.c.l.b16 %v3106
        %v3242 = vunpack.c.l.b16 %v3107
        %v3243 = vunpack.c.l.b16 %v3108
        %v3244 = vunpack.c.l.b16 %v3109
        %v3245 = vunpack.c.l.b16 %v3110
        %v3246 = vunpack.c.l.b16 %v3111
        %v3247 = vunpack.c.l.b16 %v3112
        %v3248 = vunpack.c.l.b16 %v3113
        %v3249 = vunpack.c.l.b16 %v3114
        %v3250 = vunpack.c.l.b16 %v3115
        %v3251 = vunpack.c.l.b16 %v3116
        %v3252 = vunpack.c.l.b16 %v3117
        %v3253 = vpack.c.b16 %v3190, %v3189
        %v3254 = vpack.c.b16 %v3192, %v3191
        %v3255 = vpack.c.b16 %v3194, %v3193
        %v3256 = vpack.c.b16 %v3196, %v3195
        %v3257 = vpack.c.b16 %v3198, %v3197
        %v3258 = vpack.c.b16 %v3200, %v3199
        %v3259 = vpack.c.b16 %v3202, %v3201
        %v3260 = vpack.c.b16 %v3204, %v3203
        %v3261 = vpack.c.b16 %v3206, %v3205
        %v3262 = vpack.c.b16 %v3208, %v3207
        %v3263 = vpack.c.b16 %v3210, %v3209
        %v3264 = vpack.c.b16 %v3212, %v3211
        %v3265 = vpack.c.b16 %v3214, %v3213
        %v3266 = vpack.c.b16 %v3216, %v3215
        %v3267 = vpack.c.b16 %v3218, %v3217
        %v3268 = vpack.c.b16 %v3220, %v3219
        %v3269 = vpack.c.b16 %v3222, %v3221
        %v3270 = vpack.c.b16 %v3224, %v3223
        %v3271 = vpack.c.b16 %v3226, %v3225
        %v3272 = vpack.c.b16 %v3228, %v3227
        %v3273 = vpack.c.b16 %v3230, %v3229
        %v3274 = vpack.c.b16 %v3232, %v3231
        %v3275 = vpack.c.b16 %v3234, %v3233
        %v3276 = vpack.c.b16 %v3236, %v3235
        %v3277 = vpack.c.b16 %v3238, %v3237
        %v3278 = vpack.c.b16 %v3240, %v3239
        %v3279 = vpack.c.b16 %v3242, %v3241
        %v3280 = vpack.c.b16 %v3244, %v3243
        %v3281 = vpack.c.b16 %v3246, %v3245
        %v3282 = vpack.c.b16 %v3248, %v3247
        %v3283 = vpack.c.b16 %v3250, %v3249
        %v3284 = vpack.c.b16 %v3252, %v3251
        %3317 = vmatprep.subr.bf16.mxu0 0
        %3318 = vmatpush1.bf16.msra.mxu0 %v3253
        %3319 = vmatprep.subr.bf16.mxu0 0
        %3320 = vmatpush1.bf16.msra.mxu0 %v3254
        %3321 = vmatprep.subr.bf16.mxu0 0
        %3322 = vmatpush1.bf16.msra.mxu0 %v3255
        %3323 = vmatprep.subr.bf16.mxu0 0
        %3324 = vmatpush1.bf16.msra.mxu0 %v3256
        %3325 = vmatprep.subr.bf16.mxu0 0
        %3326 = vmatpush1.bf16.msra.mxu0 %v3257
        %3327 = vmatprep.subr.bf16.mxu0 0
        %3328 = vmatpush1.bf16.msra.mxu0 %v3258
        %3329 = vmatprep.subr.bf16.mxu0 0
        %3330 = vmatpush1.bf16.msra.mxu0 %v3259
        %3331 = vmatprep.subr.bf16.mxu0 0
        %3332 = vmatpush1.bf16.msra.mxu0 %v3260
        %3333 = vmatprep.subr.bf16.mxu0 0
        %3334 = vmatpush1.bf16.msra.mxu0 %v3261
        %3335 = vmatprep.subr.bf16.mxu0 0
        %3336 = vmatpush1.bf16.msra.mxu0 %v3262
        %3337 = vmatprep.subr.bf16.mxu0 0
        %3338 = vmatpush1.bf16.msra.mxu0 %v3263
        %3339 = vmatprep.subr.bf16.mxu0 0
        %3340 = vmatpush1.bf16.msra.mxu0 %v3264
        %3341 = vmatprep.subr.bf16.mxu0 0
        %3342 = vmatpush1.bf16.msra.mxu0 %v3265
        %3343 = vmatprep.subr.bf16.mxu0 0
        %3344 = vmatpush1.bf16.msra.mxu0 %v3266
        %3345 = vmatprep.subr.bf16.mxu0 0
        %3346 = vmatpush1.bf16.msra.mxu0 %v3267
        %3347 = vmatprep.subr.bf16.mxu0 0
        %3348 = vmatpush1.bf16.msra.mxu0 %v3268
        %3349 = vmatprep.mubr.bf16.mxu0 %v3039
        %3350 = vmatmul.mubr.bf16.gmra.mrb[0].mxu0 %v3038
        %v3351 = vpop.f32.mrb[0].mxu0
        %v3352 = vadd.f32 %v3123, %v3351
        %v3353 = vpop.f32.mrb[0].mxu0
        %v3354 = vpop.f32.mrb[0].mxu0
        %v3355 = vadd.f32 %v3123, %v3354
        %v3356 = vpop.f32.mrb[0].mxu0
        %3357 = vmatprep.mubr.bf16.mxu0 %v3043
        %3358 = vmatmul.mubr.bf16.gmra.mrb[0].mxu0 %v3042
        %v3359 = vpop.f32.mrb[0].mxu0
        %v3360 = vadd.f32 %v3123, %v3359
        %v3361 = vpop.f32.mrb[0].mxu0
        %v3362 = vpop.f32.mrb[0].mxu0
        %v3363 = vadd.f32 %v3123, %v3362
        %v3364 = vpop.f32.mrb[0].mxu0
        %3365 = vmatprep.mubr.bf16.mxu0 %v3047
        %3366 = vmatmul.mubr.bf16.gmra.mrb[0].mxu0 %v3046
        %v3367 = vpop.f32.mrb[0].mxu0
        %v3368 = vadd.f32 %v3123, %v3367
        %v3369 = vpop.f32.mrb[0].mxu0
        %v3370 = vpop.f32.mrb[0].mxu0
        %v3371 = vadd.f32 %v3123, %v3370
        %v3372 = vpop.f32.mrb[0].mxu0
        %3373 = vmatprep.mubr.bf16.mxu0 %v3051
        %3374 = vmatmul.mubr.bf16.gmra.mrb[0].mxu0 %v3050
        %v3375 = vpop.f32.mrb[0].mxu0
        %v3376 = vadd.f32 %v3123, %v3375
        %v3377 = vpop.f32.mrb[0].mxu0
        %v3378 = vpop.f32.mrb[0].mxu0
        %v3379 = vadd.f32 %v3123, %v3378
        %v3380 = vpop.f32.mrb[0].mxu0
        %3381 = vdwg.mxu0
        %3382 = vmatprep.subr.bf16.mxu0 0
        %3383 = vmatpush1.bf16.msra.mxu0 %v3269
        %3384 = vmatprep.subr.bf16.mxu0 0
        %3385 = vmatpush1.bf16.msra.mxu0 %v3270
        %3386 = vmatprep.subr.bf16.mxu0 0
        %3387 = vmatpush1.bf16.msra.mxu0 %v3271
        %3388 = vmatprep.subr.bf16.mxu0 0
        %3389 = vmatpush1.bf16.msra.mxu0 %v3272
        %3390 = vmatprep.subr.bf16.mxu0 0
        %3391 = vmatpush1.bf16.msra.mxu0 %v3273
        %3392 = vmatprep.subr.bf16.mxu0 0
        %3393 = vmatpush1.bf16.msra.mxu0 %v3274
        %3394 = vmatprep.subr.bf16.mxu0 0
        %3395 = vmatpush1.bf16.msra.mxu0 %v3275
        %3396 = vmatprep.subr.bf16.mxu0 0
        %3397 = vmatpush1.bf16.msra.mxu0 %v3276
        %3398 = vmatprep.subr.bf16.mxu0 0
        %3399 = vmatpush1.bf16.msra.mxu0 %v3277
        %3400 = vmatprep.subr.bf16.mxu0 0
        %3401 = vmatpush1.bf16.msra.mxu0 %v3278
        %3402 = vmatprep.subr.bf16.mxu0 0
        %3403 = vmatpush1.bf16.msra.mxu0 %v3279
        %3404 = vmatprep.subr.bf16.mxu0 0
        %3405 = vmatpush1.bf16.msra.mxu0 %v3280
        %3406 = vmatprep.subr.bf16.mxu0 0
        %3407 = vmatpush1.bf16.msra.mxu0 %v3281
        %3408 = vmatprep.subr.bf16.mxu0 0
        %3409 = vmatpush1.bf16.msra.mxu0 %v3282
        %3410 = vmatprep.subr.bf16.mxu0 0
        %3411 = vmatpush1.bf16.msra.mxu0 %v3283
        %3412 = vmatprep.subr.bf16.mxu0 0
        %3413 = vmatpush1.bf16.msra.mxu0 %v3284
        %3414 = vmatprep.mubr.bf16.mxu0 %v3041
        %3415 = vmatmul.mubr.bf16.gmra.mrb[0].mxu0 %v3040
        %v3416 = vpop.f32.mrb[0].mxu0
        %v3417 = vadd.f32 %v3352, %v3416
        %v3418 = vpop.f32.mrb[0].mxu0
        %v3419 = vpop.f32.mrb[0].mxu0
        %v3420 = vadd.f32 %v3355, %v3419
        %v3421 = vpop.f32.mrb[0].mxu0
        %3422 = vmatprep.mubr.bf16.mxu0 %v3045
        %3423 = vmatmul.mubr.bf16.gmra.mrb[0].mxu0 %v3044
        %v3424 = vpop.f32.mrb[0].mxu0
        %v3425 = vadd.f32 %v3360, %v3424
        %v3426 = vpop.f32.mrb[0].mxu0
        %v3427 = vpop.f32.mrb[0].mxu0
        %v3428 = vadd.f32 %v3363, %v3427
        %v3429 = vpop.f32.mrb[0].mxu0
        %3430 = vmatprep.mubr.bf16.mxu0 %v3049
        %3431 = vmatmul.mubr.bf16.gmra.mrb[0].mxu0 %v3048
        %v3432 = vpop.f32.mrb[0].mxu0
        %v3433 = vadd.f32 %v3368, %v3432
        %v3434 = vpop.f32.mrb[0].mxu0
        %v3435 = vpop.f32.mrb[0].mxu0
        %v3436 = vadd.f32 %v3371, %v3435
        %v3437 = vpop.f32.mrb[0].mxu0
        %3438 = vmatprep.mubr.bf16.mxu0 %v3053
        %3439 = vmatmul.mubr.bf16.gmra.mrb[0].mxu0 %v3052
        %v3440 = vpop.f32.mrb[0].mxu0
        %v3441 = vadd.f32 %v3376, %v3440
        %v3442 = vpop.f32.mrb[0].mxu0
        %v3443 = vpop.f32.mrb[0].mxu0
        %v3444 = vadd.f32 %v3379, %v3443
        %v3445 = vpop.f32.mrb[0].mxu0
        %3446 = vdwg.mxu0
        %v3447 = vadd.f32 %v2404, %v3417
        %v3448 = vadd.f32 %v2405, %v3420
        %v3449 = vadd.f32 %v2406, %v3425
        %v3450 = vadd.f32 %v2407, %v3428
        %v3451 = vadd.f32 %v2408, %v3433
        %v3452 = vadd.f32 %v2409, %v3436
        %v3453 = vadd.f32 %v2410, %v3441
        %v3454 = vadd.f32 %v2411, %v3444
        %3455 = vst [vmem:[#allocation14] sm:$0xff] %v3447
        %3456 = vst [vmem:[#allocation14 + $0x8] sm:$0xff] %v3448
        %3457 = vst [vmem:[#allocation14 + $0x10] sm:$0xff] %v3449
        %3458 = vst [vmem:[#allocation14 + $0x18] sm:$0xff] %v3450
        %3459 = vst [vmem:[#allocation14 + $0x20] sm:$0xff] %v3451
        %3460 = vst [vmem:[#allocation14 + $0x28] sm:$0xff] %v3452
        %3461 = vst [vmem:[#allocation14 + $0x30] sm:$0xff] %v3453
        %3462 = vst [vmem:[#allocation14 + $0x38] sm:$0xff] %v3454
        // Predicated region
        $region109: #{tpu_custom_call.1} parent=75 // pred_check
          %p3463 = pneg %p425
        $region110: #{tpu_custom_call.1} parent=75 // pred_check_branch
          %3465 = sbr.rel (%p3463) target = $region112
        $region111: #{tpu_custom_call.1} parent=75 // pred_region
          %s3466 = smul.u32 4, %s40
          %s3468 = ssub.s32 1024, 1024
          %3469 = vsyncadd [#allocation4], %s3468
          %s3470 = smul.addr %s3466, 2
          %s3471 = smul.addr %s3470, 128
          %s3472 = scalar_lea.hbm %s14, %s3471
          %s3473 = sshll.u32 [#allocation14], 4
          %s3474 = int_to_ptr.vmem [resolvable:$true] %s3473
          %3479 = dma.vmem_to_hbm [thread:$0]  %s3474, 1024, %s3472, [#allocation4], 128, 128, 8
        $region112: #{tpu_custom_call.1} parent=75 // pred_fallthru
          _
        // Predicated region
        $region113: #{tpu_custom_call.1} parent=75 // pred_check
          %p3480 = pneg %p425
        $region114: #{tpu_custom_call.1} parent=75 // pred_check_branch
          %3482 = sbr.rel (%p3480) target = $region116
        $region115: #{tpu_custom_call.1} parent=75 // pred_region
          %3483 = dma.done [#allocation4], 1024
        $region116: #{tpu_custom_call.1} parent=75 // pred_fallthru
          _
      $region76: #{tpu_custom_call.1} parent=5 // pred_fallthru
        _
      %p3484 = scmp.le.s32.totalorder 2, %s31
      // Predicated region
      $region117: #{tpu_custom_call.1} parent=5 // pred_check
        %p3485 = pneg %p3484
      $region118: #{tpu_custom_call.1} parent=5 // pred_check_branch
        %3487 = sbr.rel (%p3485) target = $region120
      $region119: #{tpu_custom_call.1} parent=5 // pred_region
        %s3488 = ssub.s32 %s31, 2
      $region120: #{tpu_custom_call.1} parent=5 // pred_fallthru
        _
    $region6: #{tpu_custom_call.1} parent=1 // loop_footer
      %s35 = sadd.s32 1, %s31
    $region7: #{tpu_custom_call.1} parent=1 // loop_footer_branch
      %30 = sbr.rel target = $region3
    $region8: #{tpu_custom_call.1} parent=1 // loop_exit
      _
    %3489 = vsyncpa [#allocation3], 1
    %s3490 = scalar_lea.sflag [#allocation3], 1
    %3491 = vsyncpa %s3490, 1
    %3492 = vsyncpa [#allocation6], 1
    %s3493 = scalar_lea.sflag [#allocation6], 1
    %3494 = vsyncpa %s3493, 1
    %3495 = vsyncpa [#allocation9], 1
    %s3496 = scalar_lea.sflag [#allocation9], 1
    %3497 = vsyncpa %s3496, 1
    %3498 = vsyncpa [#allocation12], 1
    %s3499 = scalar_lea.sflag [#allocation12], 1
    %3500 = vsyncpa %s3499, 1
    %3501 = vsyncpa [#allocation4], 1
    %s3502 = scalar_lea.sflag [#allocation4], 1
    %3503 = vsyncpa %s3502, 1

</llo_original>
